<compile_context>
chip_gen: v7x
topology: tpu7x:2x2x1
jax: 0.10.0
libtpu: 0.0.40
codegen_flags: <defaults>
</compile_context>

<pallas_src>
import functools

import numpy as np
import jax
import jax.numpy as jnp
from jax.experimental import pallas as pl
from jax.experimental.pallas import tpu as pltpu

_VMEM = pltpu.MemorySpace.VMEM
_HIGH = jax.lax.Precision.HIGHEST


# ------------------------------ fused kernel --------------------------------

def _atloc_fused_kernel(patches_ref, slab_ref, mask_ref, o_ref, *,
                        layout, batch, hw, c8):
    """conv(im2col matmul, lane-dense)+ReLU -> avgpool -> fc+ReLU
    -> AttentionBlock -> dropout (precomputed mask) -> fused heads."""
    f32 = jnp.float32

    def blk(name):                      # static, tile-aligned slab view
        r0, nrows = layout[name]
        return slab_ref[r0:r0 + nrows, :]

    # backbone conv, transposed / lane-dense, bias folded into K
    convt = jnp.dot(blk("conv_w"), patches_ref[...],
                    preferred_element_type=f32, precision=_HIGH)
    convt = jnp.maximum(convt, 0.0)                         # (Cout, B*HW)

    # AdaptiveAvgPool2d(1): per-batch spatial mean.  Selector built in-kernel
    # from 2-D iotas, contracted along the lane axis (NT matmul) -> (B, Cout).
    col = jax.lax.broadcasted_iota(jnp.int32, (batch, batch * hw), 1)
    row = jax.lax.broadcasted_iota(jnp.int32, (batch, batch * hw), 0)
    lo = row * hw
    sel = jnp.where((col >= lo) & (col < lo + hw), f32(1.0 / hw), f32(0.0))
    pooled = jax.lax.dot_general(sel, convt, (((1,), (1,)), ((), ())),
                                 preferred_element_type=f32, precision=_HIGH)

    # feature_extractor.fc + AtLoc-level F.relu
    feat = jnp.dot(pooled, blk("fc_w"),
                   preferred_element_type=f32, precision=_HIGH) + blk("fc_b")
    feat = jnp.maximum(feat, 0.0)                           # (B, feat_dim)

    # AttentionBlock: fused g|theta|phi projection, static lane slices
    proj = jnp.dot(feat, blk("gtp_w"),
                   preferred_element_type=f32, precision=_HIGH) + blk("gtp_b")
    g = proj[:, 0:c8]
    th = proj[:, c8:2 * c8]
    ph = proj[:, 2 * c8:3 * c8]

    f = ph[:, :, None] * th[:, None, :]                     # (B, c8, c8)
    f = f - jnp.max(f, axis=-1, keepdims=True)              # stable softmax
    e = jnp.exp(f)
    p = e / jnp.sum(e, axis=-1, keepdims=True)
    y = jnp.sum(p * g[:, None, :], axis=-1)                 # (B, c8)

    wy = jnp.dot(y, blk("W_w"),
                 preferred_element_type=f32, precision=_HIGH) + blk("W_b")
    z = (wy + feat) * mask_ref[...]                         # residual + dropout

    # fused heads (fc_xyz | fc_wpqr), written straight to the output ref
    out = jnp.dot(z, blk("head_w"),
                  preferred_element_type=f32, precision=_HIGH) + blk("head_b")
    o_ref[...] = out[:, 0:o_ref.shape[1]]


# ------------------------------ JAX wrapper ----------------------------------

def _im2col_3x3_same_t(x_nchw):
    """im2col for a 3x3 'SAME' conv, transposed: (Cin*9, B*H*W)."""
    B, C, H, W = x_nchw.shape
    xp = jnp.pad(x_nchw, ((0, 0), (0, 0), (1, 1), (1, 1)))
    cols = []
    for kh in range(3):
        for kw in range(3):
            cols.append(xp[:, :, kh:kh + H, kw:kw + W])     # (B, C, H, W)
    p = jnp.stack(cols, axis=2)                             # (B, C, 9, H, W)
    p = p.transpose(1, 2, 0, 3, 4)                          # (C, 9, B, H, W)
    return p.reshape(C * 9, B * H * W)


def _round_up(n, m):
    return -(-n // m) * m


def _build_param_slab(params, *, cin, cout, feat_dim, c8):
    """Pack every weight/bias into one f32 (rows, feat_dim) slab.

    Each block is zero-padded to `feat_dim` lanes and a multiple of 8 rows so
    the kernel reads it with static tile-aligned slices.  Returns
    (slab, layout) with layout[name] = (row_offset, true_rows)."""
    kdim = cin * 9 + 1                                      # +1 = folded conv bias
    assert kdim <= feat_dim and 3 * c8 <= feat_dim and 6 <= feat_dim

    wc = params["conv_w"].reshape(cout, cin * 9)
    wc_ext = jnp.concatenate([wc, params["conv_b"][:, None]], axis=1)
    gtp_w = jnp.concatenate(
        [params["g_w"], params["theta_w"], params["phi_w"]], axis=1)
    gtp_b = jnp.concatenate(
        [params["g_b"], params["theta_b"], params["phi_b"]], axis=0)
    head_w = jnp.concatenate([params["xyz_w"], params["wpqr_w"]], axis=1)
    head_b = jnp.concatenate([params["xyz_b"], params["wpqr_b"]], axis=0)

    blocks = [("conv_w", wc_ext), ("fc_w", params["fc_w"]),
              ("fc_b", params["fc_b"]), ("gtp_w", gtp_w), ("gtp_b", gtp_b),
              ("W_w", params["W_w"]), ("W_b", params["W_b"]),
              ("head_w", head_w), ("head_b", head_b)]

    layout, padded, off = {}, [], 0
    for name, a in blocks:
        a = jnp.asarray(a, jnp.float32)
        if a.ndim == 1:
            a = a[None, :]
        rows = _round_up(a.shape[0], 8)
        padded.append(jnp.pad(a, ((0, rows - a.shape[0]),
                                  (0, feat_dim - a.shape[1]))))
        layout[name] = (off, a.shape[0])
        off += rows
    return jnp.concatenate(padded, axis=0), layout


def atloc_forward(data_x, edge_index, edge_attr, params, dropout_key, *,
                  droprate=0.5, input_img_height=16):
    """Fused AtLoc forward. Returns (out (B, 6), dropout_mask (B, feat_dim))."""
    # edge_index / edge_attr are unpacked but unused by the reference forward.
    del edge_index, edge_attr
    B = data_x.shape[0]
    x = data_x.reshape(B, 3, input_img_height, -1)          # NCHW
    cin, H, W = x.shape[1], x.shape[2], x.shape[3]
    hw = H * W
    cout = params["conv_w"].shape[0]
    feat_dim = params["fc_w"].shape[1]
    c8 = feat_dim // 8
    keep = 1.0 - float(droprate)
    kdim = cin * 9 + 1
    assert kdim <= feat_dim

    # Transposed, lane-dense patches with a ones row (folded conv bias) and
    # zero padding up to the slab lane width -> no in-kernel lane slicing of K.
    patches = _im2col_3x3_same_t(x)                         # (cin*9, B*hw)
    patches = jnp.concatenate(
        [patches, jnp.ones((1, B * hw), jnp.float32)], axis=0)
    patches = jnp.pad(patches, ((0, feat_dim - kdim), (0, 0)))

    slab, layout = _build_param_slab(params, cin=cin, cout=cout,
                                     feat_dim=feat_dim, c8=c8)

    # F.dropout (train-mode) mask, generated with jax.random in the wrapper:
    # portable across Mosaic and interpret mode (pltpu.prng_* is TPU-only).
    if keep < 1.0:
        mask = (jax.random.bernoulli(dropout_key, p=keep, shape=(B, feat_dim))
                .astype(jnp.float32)) * (1.0 / keep)
    else:
        mask = jnp.ones((B, feat_dim), jnp.float32)

    kernel = functools.partial(_atloc_fused_kernel, layout=layout,
                               batch=B, hw=hw, c8=c8)
    out = pl.pallas_call(
        kernel,
        out_shape=jax.ShapeDtypeStruct((B, 6), jnp.float32),
        in_specs=[pl.BlockSpec(memory_space=_VMEM)] * 3,
        out_specs=pl.BlockSpec(memory_space=_VMEM),
    )(patches, slab, mask)
    return out, mask


# ----------------------------- parameter setup -------------------------------

def _kaiming(key, shape, fan_in):
    return (jnp.sqrt(2.0 / fan_in) * jax.random.normal(key, shape)).astype(jnp.float32)


def make_params(key, *, fe_out=16, feat_dim=64):
    ks = jax.random.split(key, 12)
    c8 = feat_dim // 8
    return {
        # backbone conv stand-in (OIHW) and its bias
        "conv_w": _kaiming(ks[0], (fe_out, 3, 3, 3), 3 * 9),
        "conv_b": jnp.zeros((fe_out,), jnp.float32),
        # feature_extractor.fc : Linear(fe_out, feat_dim), stored (in, out)
        "fc_w": _kaiming(ks[1], (fe_out, feat_dim), fe_out),
        "fc_b": jnp.zeros((feat_dim,), jnp.float32),
        # AttentionBlock linears, stored (in, out)
        "g_w": _kaiming(ks[2], (feat_dim, c8), feat_dim),
        "g_b": 0.01 * jax.random.normal(ks[3], (c8,)).astype(jnp.float32),
        "theta_w": _kaiming(ks[4], (feat_dim, c8), feat_dim),
        "theta_b": 0.01 * jax.random.normal(ks[5], (c8,)).astype(jnp.float32),
        "phi_w": _kaiming(ks[6], (feat_dim, c8), feat_dim),
        "phi_b": 0.01 * jax.random.normal(ks[7], (c8,)).astype(jnp.float32),
        "W_w": _kaiming(ks[8], (c8, feat_dim), c8),
        "W_b": jnp.zeros((feat_dim,), jnp.float32),
        # heads
        "xyz_w": _kaiming(ks[9], (feat_dim, 3), feat_dim),
        "xyz_b": jnp.zeros((3,), jnp.float32),
        "wpqr_w": _kaiming(ks[10], (feat_dim, 3), feat_dim),
        "wpqr_b": jnp.zeros((3,), jnp.float32),
    }


# --------------------------- plain-JAX reference -----------------------------

def reference_forward(data_x, params, mask, *, input_img_height=16):
    B = data_x.shape[0]
    x = data_x.reshape(B, 3, input_img_height, -1)
    conv = jax.lax.conv_general_dilated(
        x, params["conv_w"], (1, 1), "SAME",
        dimension_numbers=("NCHW", "OIHW", "NCHW"), precision=_HIGH)
    conv = jnp.maximum(conv + params["conv_b"][None, :, None, None], 0.0)
    pooled = conv.mean(axis=(2, 3))
    feat = jnp.maximum(
        jnp.dot(pooled, params["fc_w"], precision=_HIGH) + params["fc_b"], 0.0)
    g = jnp.dot(feat, params["g_w"], precision=_HIGH) + params["g_b"]
    th = jnp.dot(feat, params["theta_w"], precision=_HIGH) + params["theta_b"]
    ph = jnp.dot(feat, params["phi_w"], precision=_HIGH) + params["phi_b"]
    f = ph[:, :, None] * th[:, None, :]
    p = jax.nn.softmax(f, axis=-1)
    y = jnp.einsum("bij,bj->bi", p, g, precision=_HIGH)
    wy = jnp.dot(y, params["W_w"], precision=_HIGH) + params["W_b"]
    z = (wy + feat) * mask
    xyz = jnp.dot(z, params["xyz_w"], precision=_HIGH) + params["xyz_b"]
    wpqr = jnp.dot(z, params["wpqr_w"], precision=_HIGH) + params["wpqr_b"]
    return jnp.concatenate([xyz, wpqr], axis=1)


# ----------------------------------- main -------------------------------------

if __name__ == "__main__":
    B, H, W = 2, 16, 16
    FEAT_DIM = 64
    DROPRATE = 0.5

    root = jax.random.PRNGKey(0)
    k_data, k_params, k_edge, k_drop = jax.random.split(root, 4)

    data_x = jax.random.normal(k_data, (B, 3 * H * W), dtype=jnp.float32)
    edge_index = jnp.zeros((2, 4), jnp.int32)                         # unused
    edge_attr = jax.random.normal(k_edge, (4, 1), dtype=jnp.float32)  # unused
    params = make_params(k_params, fe_out=16, feat_dim=FEAT_DIM)

    fwd = jax.jit(functools.partial(atloc_forward,
                                    droprate=DROPRATE, input_img_height=H))
    out, mask = fwd(data_x, edge_index, edge_attr, params, k_drop)
    out = jax.block_until_ready(out)
    mask_np = np.asarray(mask)

    # Reference uses the exact dropout mask fed to the kernel.
    ref = reference_forward(data_x, params, mask, input_img_height=H)
    np.testing.assert_allclose(np.asarray(out), np.asarray(ref),
                               rtol=1e-3, atol=1e-3)

    # dropout mask sanity: entries are 0 or 1/keep
    keep = 1.0 - DROPRATE
    assert np.all(np.isclose(mask_np, 0.0) | np.isclose(mask_np, 1.0 / keep))
    assert out.shape == (B, 6) and out.dtype == jnp.float32
    print("KERNEL_OK")
</pallas_src>

<mosaic_0001>
module attributes {stable_mosaic.version = 11 : i64} {
  func.func @_atloc_fused_kernel(%arg0: memref<64x512xf32, #tpu.memory_space<vmem>>, %arg1: memref<200x64xf32, #tpu.memory_space<vmem>>, %arg2: memref<2x64xf32, #tpu.memory_space<vmem>>, %arg3: memref<2x6xf32, #tpu.memory_space<vmem>>) attributes {dimension_semantics = [], scalar_prefetch = 0 : i64, scratch_operands = 0 : i64, tpu.core_type = #tpu.core_type<tc>} {
    %c0 = arith.constant 0 : index
    %c0_0 = arith.constant 0 : index
    %0 = vector.load %arg1[%c0, %c0_0] : memref<200x64xf32, #tpu.memory_space<vmem>>, vector<16x64xf32>
    %c0_1 = arith.constant 0 : index
    %c0_2 = arith.constant 0 : index
    %1 = vector.load %arg0[%c0_1, %c0_2] : memref<64x512xf32, #tpu.memory_space<vmem>>, vector<64x512xf32>
    %cst = arith.constant dense<0.000000e+00> : vector<16x512xf32>
    %2 = tpu.matmul %0, %1, %cst {dimension_numbers = #tpu.dot_dimension_numbers<[1], [0], [0], [1], [0, 0, 1, 1], [], []>, precision = #tpu.contract_precision<fp32>} : vector<16x64xf32>, vector<64x512xf32>, vector<16x512xf32> -> vector<16x512xf32>
    %cst_3 = arith.constant 0.000000e+00 : f32
    %3 = vector.broadcast %cst_3 : f32 to vector<16x512xf32>
    %4 = arith.maximumf %2, %3 : vector<16x512xf32>
    %5 = tpu.iota {dimensions = array<i32: 1>} : vector<2x512xi32>
    %6 = tpu.iota {dimensions = array<i32: 0>} : vector<2x512xi32>
    %c256_i32 = arith.constant 256 : i32
    %7 = vector.broadcast %c256_i32 : i32 to vector<2x512xi32>
    %8 = arith.muli %6, %7 : vector<2x512xi32>
    %9 = arith.cmpi sge, %5, %8 : vector<2x512xi32>
    %c256_i32_4 = arith.constant 256 : i32
    %10 = vector.broadcast %c256_i32_4 : i32 to vector<2x512xi32>
    %11 = arith.addi %8, %10 : vector<2x512xi32>
    %12 = arith.cmpi slt, %5, %11 : vector<2x512xi32>
    %13 = arith.andi %9, %12 : vector<2x512xi1>
    %cst_5 = arith.constant 3.906250e-03 : f32
    %cst_6 = arith.constant 0.000000e+00 : f32
    %14 = vector.broadcast %cst_5 : f32 to vector<2x512xf32>
    %15 = vector.broadcast %cst_6 : f32 to vector<2x512xf32>
    %16 = arith.select %13, %14, %15 : vector<2x512xi1>, vector<2x512xf32>
    %cst_7 = arith.constant dense<0.000000e+00> : vector<2x16xf32>
    %17 = tpu.matmul %16, %4, %cst_7 {dimension_numbers = #tpu.dot_dimension_numbers<[1], [1], [0], [0], [0, 0, 1, 0], [], []>, precision = #tpu.contract_precision<fp32>} : vector<2x512xf32>, vector<16x512xf32>, vector<2x16xf32> -> vector<2x16xf32>
    %c16 = arith.constant 16 : index
    %c0_8 = arith.constant 0 : index
    %18 = vector.load %arg1[%c16, %c0_8] : memref<200x64xf32, #tpu.memory_space<vmem>>, vector<16x64xf32>
    %cst_9 = arith.constant dense<0.000000e+00> : vector<2x64xf32>
    %19 = tpu.matmul %17, %18, %cst_9 {dimension_numbers = #tpu.dot_dimension_numbers<[1], [0], [0], [1], [0, 0, 1, 1], [], []>, precision = #tpu.contract_precision<fp32>} : vector<2x16xf32>, vector<16x64xf32>, vector<2x64xf32> -> vector<2x64xf32>
    %c32 = arith.constant 32 : index
    %c0_10 = arith.constant 0 : index
    %20 = vector.load %arg1[%c32, %c0_10] : memref<200x64xf32, #tpu.memory_space<vmem>>, vector<1x64xf32>
    %21 = vector.broadcast %20 : vector<1x64xf32> to vector<2x64xf32>
    %22 = arith.addf %19, %21 : vector<2x64xf32>
    %cst_11 = arith.constant 0.000000e+00 : f32
    %23 = vector.broadcast %cst_11 : f32 to vector<2x64xf32>
    %24 = arith.maximumf %22, %23 : vector<2x64xf32>
    %c40 = arith.constant 40 : index
    %c0_12 = arith.constant 0 : index
    %25 = vector.load %arg1[%c40, %c0_12] : memref<200x64xf32, #tpu.memory_space<vmem>>, vector<64x64xf32>
    %cst_13 = arith.constant dense<0.000000e+00> : vector<2x64xf32>
    %26 = tpu.matmul %24, %25, %cst_13 {dimension_numbers = #tpu.dot_dimension_numbers<[1], [0], [0], [1], [0, 0, 1, 1], [], []>, precision = #tpu.contract_precision<fp32>} : vector<2x64xf32>, vector<64x64xf32>, vector<2x64xf32> -> vector<2x64xf32>
    %c104 = arith.constant 104 : index
    %c0_14 = arith.constant 0 : index
    %27 = vector.load %arg1[%c104, %c0_14] : memref<200x64xf32, #tpu.memory_space<vmem>>, vector<1x64xf32>
    %28 = vector.broadcast %27 : vector<1x64xf32> to vector<2x64xf32>
    %29 = arith.addf %26, %28 : vector<2x64xf32>
    %30 = vector.extract_strided_slice %29 {offsets = [0, 0], sizes = [2, 8], strides = [1, 1]} : vector<2x64xf32> to vector<2x8xf32>
    %31 = vector.extract_strided_slice %29 {offsets = [0, 8], sizes = [2, 8], strides = [1, 1]} : vector<2x64xf32> to vector<2x8xf32>
    %32 = vector.extract_strided_slice %29 {offsets = [0, 16], sizes = [2, 8], strides = [1, 1]} : vector<2x64xf32> to vector<2x8xf32>
    %33 = vector.shape_cast %32 : vector<2x8xf32> to vector<2x8x1xf32>
    %34 = vector.shape_cast %31 : vector<2x8xf32> to vector<2x1x8xf32>
    %35 = vector.broadcast %33 : vector<2x8x1xf32> to vector<2x8x8xf32>
    %36 = vector.broadcast %34 : vector<2x1x8xf32> to vector<2x8x8xf32>
    %37 = arith.mulf %35, %36 : vector<2x8x8xf32>
    %cst_15 = arith.constant dense<0xFF800000> : vector<2x8xf32>
    %38 = vector.multi_reduction <maximumf>, %37, %cst_15 [2] : vector<2x8x8xf32> to vector<2x8xf32>
    %39 = vector.shape_cast %38 : vector<2x8xf32> to vector<2x8x1xf32>
    %40 = vector.broadcast %39 : vector<2x8x1xf32> to vector<2x8x8xf32>
    %41 = arith.subf %37, %40 : vector<2x8x8xf32>
    %42 = math.exp %41 : vector<2x8x8xf32>
    %cst_16 = arith.constant dense<0.000000e+00> : vector<2x8xf32>
    %43 = vector.multi_reduction <add>, %42, %cst_16 [2] : vector<2x8x8xf32> to vector<2x8xf32>
    %44 = vector.shape_cast %43 : vector<2x8xf32> to vector<2x8x1xf32>
    %45 = vector.broadcast %44 : vector<2x8x1xf32> to vector<2x8x8xf32>
    %46 = arith.divf %42, %45 : vector<2x8x8xf32>
    %47 = vector.shape_cast %30 : vector<2x8xf32> to vector<2x1x8xf32>
    %48 = vector.broadcast %47 : vector<2x1x8xf32> to vector<2x8x8xf32>
    %49 = arith.mulf %46, %48 : vector<2x8x8xf32>
    %cst_17 = arith.constant dense<0.000000e+00> : vector<2x8xf32>
    %50 = vector.multi_reduction <add>, %49, %cst_17 [2] : vector<2x8x8xf32> to vector<2x8xf32>
    %c112 = arith.constant 112 : index
    %c0_18 = arith.constant 0 : index
    %51 = vector.load %arg1[%c112, %c0_18] : memref<200x64xf32, #tpu.memory_space<vmem>>, vector<8x64xf32>
    %cst_19 = arith.constant dense<0.000000e+00> : vector<2x64xf32>
    %52 = tpu.matmul %50, %51, %cst_19 {dimension_numbers = #tpu.dot_dimension_numbers<[1], [0], [0], [1], [0, 0, 1, 1], [], []>, precision = #tpu.contract_precision<fp32>} : vector<2x8xf32>, vector<8x64xf32>, vector<2x64xf32> -> vector<2x64xf32>
    %c120 = arith.constant 120 : index
    %c0_20 = arith.constant 0 : index
    %53 = vector.load %arg1[%c120, %c0_20] : memref<200x64xf32, #tpu.memory_space<vmem>>, vector<1x64xf32>
    %54 = vector.broadcast %53 : vector<1x64xf32> to vector<2x64xf32>
    %55 = arith.addf %52, %54 : vector<2x64xf32>
    %56 = arith.addf %55, %24 : vector<2x64xf32>
    %c0_21 = arith.constant 0 : index
    %c0_22 = arith.constant 0 : index
    %57 = vector.load %arg2[%c0_21, %c0_22] : memref<2x64xf32, #tpu.memory_space<vmem>>, vector<2x64xf32>
    %58 = arith.mulf %56, %57 : vector<2x64xf32>
    %c128 = arith.constant 128 : index
    %c0_23 = arith.constant 0 : index
    %59 = vector.load %arg1[%c128, %c0_23] : memref<200x64xf32, #tpu.memory_space<vmem>>, vector<64x64xf32>
    %cst_24 = arith.constant dense<0.000000e+00> : vector<2x64xf32>
    %60 = tpu.matmul %58, %59, %cst_24 {dimension_numbers = #tpu.dot_dimension_numbers<[1], [0], [0], [1], [0, 0, 1, 1], [], []>, precision = #tpu.contract_precision<fp32>} : vector<2x64xf32>, vector<64x64xf32>, vector<2x64xf32> -> vector<2x64xf32>
    %c192 = arith.constant 192 : index
    %c0_25 = arith.constant 0 : index
    %61 = vector.load %arg1[%c192, %c0_25] : memref<200x64xf32, #tpu.memory_space<vmem>>, vector<1x64xf32>
    %62 = vector.broadcast %61 : vector<1x64xf32> to vector<2x64xf32>
    %63 = arith.addf %60, %62 : vector<2x64xf32>
    %64 = vector.extract_strided_slice %63 {offsets = [0, 0], sizes = [2, 6], strides = [1, 1]} : vector<2x64xf32> to vector<2x6xf32>
    %c0_26 = arith.constant 0 : index
    %c0_27 = arith.constant 0 : index
    %65 = vector.load %arg3[%c0_26, %c0_27] : memref<2x6xf32, #tpu.memory_space<vmem>>, vector<2x6xf32>
    tpu.vector_store %arg3[%c0_26, %c0_27], %64 {strides = array<i32>} : memref<2x6xf32, #tpu.memory_space<vmem>>, vector<2x6xf32>,
    return
  }
}

</mosaic_0001>

<llo_original>
// kernel: atloc_forward.1
$region0: #{atloc_forward.1}
  #allocation0 [shape = 'u32[]', space=smem, size = 0x4, offset = 0x4, fixed_abs, tag = 'smem constant byte address 0x4 - core index']
  #allocation1 [shape = 'u32[144,128]{1,0:T(1,128)}', space=vmem, size = 0x12000, scoped, tag = 'internal scratch']
  %s0 = inlined_call_operand.vmem [shape: f32[64,512], index: 0, kind: input, shape index: {}]
  %s1 = inlined_call_operand.vmem [shape: f32[200,64], index: 1, kind: input, shape index: {}]
  %s2 = inlined_call_operand.vmem [shape: f32[2,64], index: 2, kind: input, shape index: {}]
  %s3 = inlined_call_operand.hbm [shape: f32[2,6], index: 3, kind: output, shape index: {}]
  %s4 = sld [smem:[#allocation0]]
  $region22: #{atloc_forward.1} parent=0
    _
  %s6 = ssub.s32 1, %s4
  %s7 = scalar_select 0, %s6, %s4
  $region1: #{atloc_forward.1} parent=0
    #allocation2 [shape = 'u8[1024]{0}', space=vmem, size = 0x400, scoped, tag = 'output window, operand 0, single buffered']
    #allocation3 [shape = 's32[1]{0}', space=sflag, size = 0x4, scoped, tag = 'scoped memory for atloc_forward.1']
    %8 = vsyncpa [#allocation3], 0
    // Predicated region
    $region2: #{atloc_forward.1} parent=1 // pred_check
      _
    $region3: #{atloc_forward.1} parent=1 // pred_check_branch
      %10 = sbr.rel (0) target = $region5
    $region4: #{atloc_forward.1} parent=1 // pred_region
      _
    $region5: #{atloc_forward.1} parent=1 // pred_fallthru
      _
    // Predicated region
    $region6: #{atloc_forward.1} parent=1 // pred_check
      _
    $region7: #{atloc_forward.1} parent=1 // pred_check_branch
      %12 = sbr.rel (0) target = $region9
    $region8: #{atloc_forward.1} parent=1 // pred_region
      _
    $region9: #{atloc_forward.1} parent=1 // pred_fallthru
      _
    // Predicated region
    $region10: #{atloc_forward.1} parent=1 // pred_check
      _
    $region11: #{atloc_forward.1} parent=1 // pred_check_branch
      %14 = sbr.rel (0) target = $region13
    $region12: #{atloc_forward.1} parent=1 // pred_region
      _
    $region13: #{atloc_forward.1} parent=1 // pred_fallthru
      _
    %v15 = vld [vmem:[%s1] sm:$0xff]
    %v16 = vld [vmem:[%s1 + $0x8] sm:$0xff]
    %v17 = vld [vmem:[%s0] sm:$0xff]
    %v18 = vld [vmem:[%s0 + $0x8] sm:$0xff]
    %v19 = vld [vmem:[%s0 + $0x10] sm:$0xff]
    %v20 = vld [vmem:[%s0 + $0x18] sm:$0xff]
    %v21 = vld [vmem:[%s0 + $0x20] sm:$0xff]
    %v22 = vld [vmem:[%s0 + $0x28] sm:$0xff]
    %v23 = vld [vmem:[%s0 + $0x30] sm:$0xff]
    %v24 = vld [vmem:[%s0 + $0x38] sm:$0xff]
    %v25 = vld [vmem:[%s0 + $0x40] sm:$0xff]
    %v26 = vld [vmem:[%s0 + $0x48] sm:$0xff]
    %v27 = vld [vmem:[%s0 + $0x50] sm:$0xff]
    %v28 = vld [vmem:[%s0 + $0x58] sm:$0xff]
    %v29 = vld [vmem:[%s0 + $0x60] sm:$0xff]
    %v30 = vld [vmem:[%s0 + $0x68] sm:$0xff]
    %v31 = vld [vmem:[%s0 + $0x70] sm:$0xff]
    %v32 = vld [vmem:[%s0 + $0x78] sm:$0xff]
    %v33 = vld [vmem:[%s0 + $0x80] sm:$0xff]
    %v34 = vld [vmem:[%s0 + $0x88] sm:$0xff]
    %v35 = vld [vmem:[%s0 + $0x90] sm:$0xff]
    %v36 = vld [vmem:[%s0 + $0x98] sm:$0xff]
    %v37 = vld [vmem:[%s0 + $0xa0] sm:$0xff]
    %v38 = vld [vmem:[%s0 + $0xa8] sm:$0xff]
    %v39 = vld [vmem:[%s0 + $0xb0] sm:$0xff]
    %v40 = vld [vmem:[%s0 + $0xb8] sm:$0xff]
    %v41 = vld [vmem:[%s0 + $0xc0] sm:$0xff]
    %v42 = vld [vmem:[%s0 + $0xc8] sm:$0xff]
    %v43 = vld [vmem:[%s0 + $0xd0] sm:$0xff]
    %v44 = vld [vmem:[%s0 + $0xd8] sm:$0xff]
    %v45 = vld [vmem:[%s0 + $0xe0] sm:$0xff]
    %v46 = vld [vmem:[%s0 + $0xe8] sm:$0xff]
    %v47 = vld [vmem:[%s0 + $0xf0] sm:$0xff]
    %v48 = vld [vmem:[%s0 + $0xf8] sm:$0xff]
    %vm49 = vcmask 523264
    %v51 = vsel %vm49, %v15, 0
    %v54 = vsel %vm49, %v16, 0
    %v56 = vand.u32 %v18, 4294901760
    %57 = vmatprep.subr.mxu0 %v56
    %v58 = vand.u32 %v17, 4294901760
    %59 = vmatpush1.msra.mxu0 %v58
    %v60 = vand.u32 %v22, 4294901760
    %61 = vmatprep.subr.mxu0 %v60
    %v62 = vand.u32 %v21, 4294901760
    %63 = vmatpush1.msra.mxu0 %v62
    %v64 = vand.u32 %v26, 4294901760
    %65 = vmatprep.subr.mxu0 %v64
    %v66 = vand.u32 %v25, 4294901760
    %67 = vmatpush1.msra.mxu0 %v66
    %v68 = vand.u32 %v30, 4294901760
    %69 = vmatprep.subr.mxu0 %v68
    %v70 = vand.u32 %v29, 4294901760
    %71 = vmatpush1.msra.mxu0 %v70
    %v72 = vand.u32 %v34, 4294901760
    %73 = vmatprep.subr.mxu0 %v72
    %v74 = vand.u32 %v33, 4294901760
    %75 = vmatpush1.msra.mxu0 %v74
    %v76 = vand.u32 %v38, 4294901760
    %77 = vmatprep.subr.mxu0 %v76
    %v78 = vand.u32 %v37, 4294901760
    %79 = vmatpush1.msra.mxu0 %v78
    %v80 = vand.u32 %v42, 4294901760
    %81 = vmatprep.subr.mxu0 %v80
    %v82 = vand.u32 %v41, 4294901760
    %83 = vmatpush1.msra.mxu0 %v82
    %v84 = vand.u32 %v46, 4294901760
    %85 = vmatprep.subr.mxu0 %v84
    %v86 = vand.u32 %v45, 4294901760
    %87 = vmatpush1.msra.mxu0 %v86
    %88 = vmatprep.subr.mxu0 0.0
    %89 = vmatpush1.msra.mxu0 0.0
    %90 = vmatprep.subr.mxu0 0.0
    %91 = vmatpush1.msra.mxu0 0.0
    %92 = vmatprep.subr.mxu0 0.0
    %93 = vmatpush1.msra.mxu0 0.0
    %94 = vmatprep.subr.mxu0 0.0
    %95 = vmatpush1.msra.mxu0 0.0
    %96 = vmatprep.subr.mxu0 0.0
    %97 = vmatpush1.msra.mxu0 0.0
    %98 = vmatprep.subr.mxu0 0.0
    %99 = vmatpush1.msra.mxu0 0.0
    %100 = vmatprep.subr.mxu0 0.0
    %101 = vmatpush1.msra.mxu0 0.0
    %102 = vmatprep.subr.mxu0 0.0
    %103 = vmatpush1.msra.mxu0 0.0
    %104 = vmatprep.subr.mxu0 0.0
    %105 = vmatpush1.msra.mxu0 0.0
    %106 = vmatprep.subr.mxu0 0.0
    %107 = vmatpush1.msra.mxu0 0.0
    %108 = vmatprep.subr.mxu0 0.0
    %109 = vmatpush1.msra.mxu0 0.0
    %110 = vmatprep.subr.mxu0 0.0
    %111 = vmatpush1.msra.mxu0 0.0
    %112 = vmatprep.subr.mxu0 0.0
    %113 = vmatpush1.msra.mxu0 0.0
    %114 = vmatprep.subr.mxu0 0.0
    %115 = vmatpush1.msra.mxu0 0.0
    %116 = vmatprep.subr.mxu0 0.0
    %117 = vmatpush1.msra.mxu0 0.0
    %118 = vmatprep.subr.mxu0 0.0
    %119 = vmatpush1.msra.mxu0 0.0
    %120 = vmatprep.subr.mxu0 0.0
    %121 = vmatpush1.msra.mxu0 0.0
    %122 = vmatprep.subr.mxu0 0.0
    %123 = vmatpush1.msra.mxu0 0.0
    %124 = vmatprep.subr.mxu0 0.0
    %125 = vmatpush1.msra.mxu0 0.0
    %126 = vmatprep.subr.mxu0 0.0
    %127 = vmatpush1.msra.mxu0 0.0
    %128 = vmatprep.subr.mxu0 0.0
    %129 = vmatpush1.msra.mxu0 0.0
    %130 = vmatprep.subr.mxu0 0.0
    %131 = vmatpush1.msra.mxu0 0.0
    %132 = vmatprep.subr.mxu0 0.0
    %133 = vmatpush1.msra.mxu0 0.0
    %134 = vmatprep.subr.mxu0 0.0
    %135 = vmatpush1.msra.mxu0 0.0
    %136 = vmatprep.mubr.f32.mxu0 0.0
    %v137 = vand.u32 %v51, 4294901760
    %v138 = vsub.f32 %v51, %v137
    %v139 = vand.u32 %v138, 4294901760
    %v140 = vsub.f32 %v138, %v139
    %v141 = vand.u32 %v140, 4294901760
    %142 = vmatmul.mubr.f32.gmra.mrb[0].mxu0 %v141
    %v143 = vpop.f32.mrb[0].mxu0
    %v144 = vadd.f32 0.0, %v143
    %v145 = vpop.f32.mrb[0].mxu0
    %v146 = vadd.f32 0.0, %v145
    %147 = vmatprep.mubr.f32.mxu0 0.0
    %v148 = vand.u32 %v54, 4294901760
    %v149 = vsub.f32 %v54, %v148
    %v150 = vand.u32 %v149, 4294901760
    %v151 = vsub.f32 %v149, %v150
    %v152 = vand.u32 %v151, 4294901760
    %153 = vmatmul.mubr.f32.gmra.mrb[0].mxu0 %v152
    %v154 = vpop.f32.mrb[0].mxu0
    %v155 = vadd.f32 0.0, %v154
    %v156 = vpop.f32.mrb[0].mxu0
    %v157 = vadd.f32 0.0, %v156
    %158 = vdwg.mxu0
    %v159 = vand.u32 %v18, 4294901760
    %v160 = vsub.f32 %v18, %v159
    %v161 = vand.u32 %v160, 4294901760
    %v162 = vsub.f32 %v160, %v161
    %v163 = vand.u32 %v162, 4294901760
    %164 = vmatprep.subr.mxu0 %v163
    %v165 = vand.u32 %v17, 4294901760
    %v166 = vsub.f32 %v17, %v165
    %v167 = vand.u32 %v166, 4294901760
    %v168 = vsub.f32 %v166, %v167
    %v169 = vand.u32 %v168, 4294901760
    %170 = vmatpush1.msra.mxu0 %v169
    %v171 = vand.u32 %v22, 4294901760
    %v172 = vsub.f32 %v22, %v171
    %v173 = vand.u32 %v172, 4294901760
    %v174 = vsub.f32 %v172, %v173
    %v175 = vand.u32 %v174, 4294901760
    %176 = vmatprep.subr.mxu0 %v175
    %v177 = vand.u32 %v21, 4294901760
    %v178 = vsub.f32 %v21, %v177
    %v179 = vand.u32 %v178, 4294901760
    %v180 = vsub.f32 %v178, %v179
    %v181 = vand.u32 %v180, 4294901760
    %182 = vmatpush1.msra.mxu0 %v181
    %v183 = vand.u32 %v26, 4294901760
    %v184 = vsub.f32 %v26, %v183
    %v185 = vand.u32 %v184, 4294901760
    %v186 = vsub.f32 %v184, %v185
    %v187 = vand.u32 %v186, 4294901760
    %188 = vmatprep.subr.mxu0 %v187
    %v189 = vand.u32 %v25, 4294901760
    %v190 = vsub.f32 %v25, %v189
    %v191 = vand.u32 %v190, 4294901760
    %v192 = vsub.f32 %v190, %v191
    %v193 = vand.u32 %v192, 4294901760
    %194 = vmatpush1.msra.mxu0 %v193
    %v195 = vand.u32 %v30, 4294901760
    %v196 = vsub.f32 %v30, %v195
    %v197 = vand.u32 %v196, 4294901760
    %v198 = vsub.f32 %v196, %v197
    %v199 = vand.u32 %v198, 4294901760
    %200 = vmatprep.subr.mxu0 %v199
    %v201 = vand.u32 %v29, 4294901760
    %v202 = vsub.f32 %v29, %v201
    %v203 = vand.u32 %v202, 4294901760
    %v204 = vsub.f32 %v202, %v203
    %v205 = vand.u32 %v204, 4294901760
    %206 = vmatpush1.msra.mxu0 %v205
    %v207 = vand.u32 %v34, 4294901760
    %v208 = vsub.f32 %v34, %v207
    %v209 = vand.u32 %v208, 4294901760
    %v210 = vsub.f32 %v208, %v209
    %v211 = vand.u32 %v210, 4294901760
    %212 = vmatprep.subr.mxu0 %v211
    %v213 = vand.u32 %v33, 4294901760
    %v214 = vsub.f32 %v33, %v213
    %v215 = vand.u32 %v214, 4294901760
    %v216 = vsub.f32 %v214, %v215
    %v217 = vand.u32 %v216, 4294901760
    %218 = vmatpush1.msra.mxu0 %v217
    %v219 = vand.u32 %v38, 4294901760
    %v220 = vsub.f32 %v38, %v219
    %v221 = vand.u32 %v220, 4294901760
    %v222 = vsub.f32 %v220, %v221
    %v223 = vand.u32 %v222, 4294901760
    %224 = vmatprep.subr.mxu0 %v223
    %v225 = vand.u32 %v37, 4294901760
    %v226 = vsub.f32 %v37, %v225
    %v227 = vand.u32 %v226, 4294901760
    %v228 = vsub.f32 %v226, %v227
    %v229 = vand.u32 %v228, 4294901760
    %230 = vmatpush1.msra.mxu0 %v229
    %v231 = vand.u32 %v42, 4294901760
    %v232 = vsub.f32 %v42, %v231
    %v233 = vand.u32 %v232, 4294901760
    %v234 = vsub.f32 %v232, %v233
    %v235 = vand.u32 %v234, 4294901760
    %236 = vmatprep.subr.mxu0 %v235
    %v237 = vand.u32 %v41, 4294901760
    %v238 = vsub.f32 %v41, %v237
    %v239 = vand.u32 %v238, 4294901760
    %v240 = vsub.f32 %v238, %v239
    %v241 = vand.u32 %v240, 4294901760
    %242 = vmatpush1.msra.mxu0 %v241
    %v243 = vand.u32 %v46, 4294901760
    %v244 = vsub.f32 %v46, %v243
    %v245 = vand.u32 %v244, 4294901760
    %v246 = vsub.f32 %v244, %v245
    %v247 = vand.u32 %v246, 4294901760
    %248 = vmatprep.subr.mxu0 %v247
    %v249 = vand.u32 %v45, 4294901760
    %v250 = vsub.f32 %v45, %v249
    %v251 = vand.u32 %v250, 4294901760
    %v252 = vsub.f32 %v250, %v251
    %v253 = vand.u32 %v252, 4294901760
    %254 = vmatpush1.msra.mxu0 %v253
    %255 = vmatprep.subr.mxu0 0.0
    %256 = vmatpush1.msra.mxu0 0.0
    %257 = vmatprep.subr.mxu0 0.0
    %258 = vmatpush1.msra.mxu0 0.0
    %259 = vmatprep.subr.mxu0 0.0
    %260 = vmatpush1.msra.mxu0 0.0
    %261 = vmatprep.subr.mxu0 0.0
    %262 = vmatpush1.msra.mxu0 0.0
    %263 = vmatprep.subr.mxu0 0.0
    %264 = vmatpush1.msra.mxu0 0.0
    %265 = vmatprep.subr.mxu0 0.0
    %266 = vmatpush1.msra.mxu0 0.0
    %267 = vmatprep.subr.mxu0 0.0
    %268 = vmatpush1.msra.mxu0 0.0
    %269 = vmatprep.subr.mxu0 0.0
    %270 = vmatpush1.msra.mxu0 0.0
    %271 = vmatprep.subr.mxu0 0.0
    %272 = vmatpush1.msra.mxu0 0.0
    %273 = vmatprep.subr.mxu0 0.0
    %274 = vmatpush1.msra.mxu0 0.0
    %275 = vmatprep.subr.mxu0 0.0
    %276 = vmatpush1.msra.mxu0 0.0
    %277 = vmatprep.subr.mxu0 0.0
    %278 = vmatpush1.msra.mxu0 0.0
    %279 = vmatprep.subr.mxu0 0.0
    %280 = vmatpush1.msra.mxu0 0.0
    %281 = vmatprep.subr.mxu0 0.0
    %282 = vmatpush1.msra.mxu0 0.0
    %283 = vmatprep.subr.mxu0 0.0
    %284 = vmatpush1.msra.mxu0 0.0
    %285 = vmatprep.subr.mxu0 0.0
    %286 = vmatpush1.msra.mxu0 0.0
    %287 = vmatprep.subr.mxu0 0.0
    %288 = vmatpush1.msra.mxu0 0.0
    %289 = vmatprep.subr.mxu0 0.0
    %290 = vmatpush1.msra.mxu0 0.0
    %291 = vmatprep.subr.mxu0 0.0
    %292 = vmatpush1.msra.mxu0 0.0
    %293 = vmatprep.subr.mxu0 0.0
    %294 = vmatpush1.msra.mxu0 0.0
    %295 = vmatprep.subr.mxu0 0.0
    %296 = vmatpush1.msra.mxu0 0.0
    %297 = vmatprep.subr.mxu0 0.0
    %298 = vmatpush1.msra.mxu0 0.0
    %299 = vmatprep.subr.mxu0 0.0
    %300 = vmatpush1.msra.mxu0 0.0
    %301 = vmatprep.subr.mxu0 0.0
    %302 = vmatpush1.msra.mxu0 0.0
    %303 = vmatprep.mubr.f32.mxu0 0.0
    %v304 = vand.u32 %v51, 4294901760
    %305 = vmatmul.mubr.f32.gmra.mrb[0].mxu0 %v304
    %v306 = vpop.f32.mrb[0].mxu0
    %v307 = vadd.f32 %v144, %v306
    %v308 = vpop.f32.mrb[0].mxu0
    %v309 = vadd.f32 %v146, %v308
    %310 = vmatprep.mubr.f32.mxu0 0.0
    %v311 = vand.u32 %v54, 4294901760
    %312 = vmatmul.mubr.f32.gmra.mrb[0].mxu0 %v311
    %v313 = vpop.f32.mrb[0].mxu0
    %v314 = vadd.f32 %v155, %v313
    %v315 = vpop.f32.mrb[0].mxu0
    %v316 = vadd.f32 %v157, %v315
    %317 = vdwg.mxu0
    %v318 = vand.u32 %v18, 4294901760
    %v319 = vsub.f32 %v18, %v318
    %320 = vmatprep.subr.mxu0 %v319
    %v321 = vand.u32 %v17, 4294901760
    %v322 = vsub.f32 %v17, %v321
    %323 = vmatpush1.msra.mxu0 %v322
    %v324 = vand.u32 %v22, 4294901760
    %v325 = vsub.f32 %v22, %v324
    %326 = vmatprep.subr.mxu0 %v325
    %v327 = vand.u32 %v21, 4294901760
    %v328 = vsub.f32 %v21, %v327
    %329 = vmatpush1.msra.mxu0 %v328
    %v330 = vand.u32 %v26, 4294901760
    %v331 = vsub.f32 %v26, %v330
    %332 = vmatprep.subr.mxu0 %v331
    %v333 = vand.u32 %v25, 4294901760
    %v334 = vsub.f32 %v25, %v333
    %335 = vmatpush1.msra.mxu0 %v334
    %v336 = vand.u32 %v30, 4294901760
    %v337 = vsub.f32 %v30, %v336
    %338 = vmatprep.subr.mxu0 %v337
    %v339 = vand.u32 %v29, 4294901760
    %v340 = vsub.f32 %v29, %v339
    %341 = vmatpush1.msra.mxu0 %v340
    %v342 = vand.u32 %v34, 4294901760
    %v343 = vsub.f32 %v34, %v342
    %344 = vmatprep.subr.mxu0 %v343
    %v345 = vand.u32 %v33, 4294901760
    %v346 = vsub.f32 %v33, %v345
    %347 = vmatpush1.msra.mxu0 %v346
    %v348 = vand.u32 %v38, 4294901760
    %v349 = vsub.f32 %v38, %v348
    %350 = vmatprep.subr.mxu0 %v349
    %v351 = vand.u32 %v37, 4294901760
    %v352 = vsub.f32 %v37, %v351
    %353 = vmatpush1.msra.mxu0 %v352
    %v354 = vand.u32 %v42, 4294901760
    %v355 = vsub.f32 %v42, %v354
    %356 = vmatprep.subr.mxu0 %v355
    %v357 = vand.u32 %v41, 4294901760
    %v358 = vsub.f32 %v41, %v357
    %359 = vmatpush1.msra.mxu0 %v358
    %v360 = vand.u32 %v46, 4294901760
    %v361 = vsub.f32 %v46, %v360
    %362 = vmatprep.subr.mxu0 %v361
    %v363 = vand.u32 %v45, 4294901760
    %v364 = vsub.f32 %v45, %v363
    %365 = vmatpush1.msra.mxu0 %v364
    %366 = vmatprep.subr.mxu0 0.0
    %367 = vmatpush1.msra.mxu0 0.0
    %368 = vmatprep.subr.mxu0 0.0
    %369 = vmatpush1.msra.mxu0 0.0
    %370 = vmatprep.subr.mxu0 0.0
    %371 = vmatpush1.msra.mxu0 0.0
    %372 = vmatprep.subr.mxu0 0.0
    %373 = vmatpush1.msra.mxu0 0.0
    %374 = vmatprep.subr.mxu0 0.0
    %375 = vmatpush1.msra.mxu0 0.0
    %376 = vmatprep.subr.mxu0 0.0
    %377 = vmatpush1.msra.mxu0 0.0
    %378 = vmatprep.subr.mxu0 0.0
    %379 = vmatpush1.msra.mxu0 0.0
    %380 = vmatprep.subr.mxu0 0.0
    %381 = vmatpush1.msra.mxu0 0.0
    %382 = vmatprep.subr.mxu0 0.0
    %383 = vmatpush1.msra.mxu0 0.0
    %384 = vmatprep.subr.mxu0 0.0
    %385 = vmatpush1.msra.mxu0 0.0
    %386 = vmatprep.subr.mxu0 0.0
    %387 = vmatpush1.msra.mxu0 0.0
    %388 = vmatprep.subr.mxu0 0.0
    %389 = vmatpush1.msra.mxu0 0.0
    %390 = vmatprep.subr.mxu0 0.0
    %391 = vmatpush1.msra.mxu0 0.0
    %392 = vmatprep.subr.mxu0 0.0
    %393 = vmatpush1.msra.mxu0 0.0
    %394 = vmatprep.subr.mxu0 0.0
    %395 = vmatpush1.msra.mxu0 0.0
    %396 = vmatprep.subr.mxu0 0.0
    %397 = vmatpush1.msra.mxu0 0.0
    %398 = vmatprep.subr.mxu0 0.0
    %399 = vmatpush1.msra.mxu0 0.0
    %400 = vmatprep.subr.mxu0 0.0
    %401 = vmatpush1.msra.mxu0 0.0
    %402 = vmatprep.subr.mxu0 0.0
    %403 = vmatpush1.msra.mxu0 0.0
    %404 = vmatprep.subr.mxu0 0.0
    %405 = vmatpush1.msra.mxu0 0.0
    %406 = vmatprep.subr.mxu0 0.0
    %407 = vmatpush1.msra.mxu0 0.0
    %408 = vmatprep.subr.mxu0 0.0
    %409 = vmatpush1.msra.mxu0 0.0
    %410 = vmatprep.subr.mxu0 0.0
    %411 = vmatpush1.msra.mxu0 0.0
    %412 = vmatprep.subr.mxu0 0.0
    %413 = vmatpush1.msra.mxu0 0.0
    %414 = vmatprep.mubr.f32.mxu0 0.0
    %v415 = vand.u32 %v51, 4294901760
    %v416 = vsub.f32 %v51, %v415
    %417 = vmatmul.mubr.f32.gmra.mrb[0].mxu0 %v416
    %v418 = vpop.f32.mrb[0].mxu0
    %v419 = vadd.f32 %v307, %v418
    %v420 = vpop.f32.mrb[0].mxu0
    %v421 = vadd.f32 %v309, %v420
    %422 = vmatprep.mubr.f32.mxu0 0.0
    %v423 = vand.u32 %v54, 4294901760
    %v424 = vsub.f32 %v54, %v423
    %425 = vmatmul.mubr.f32.gmra.mrb[0].mxu0 %v424
    %v426 = vpop.f32.mrb[0].mxu0
    %v427 = vadd.f32 %v314, %v426
    %v428 = vpop.f32.mrb[0].mxu0
    %v429 = vadd.f32 %v316, %v428
    %430 = vdwg.mxu0
    %v431 = vand.u32 %v18, 4294901760
    %432 = vmatprep.subr.mxu0 %v431
    %v433 = vand.u32 %v17, 4294901760
    %434 = vmatpush1.msra.mxu0 %v433
    %v435 = vand.u32 %v22, 4294901760
    %436 = vmatprep.subr.mxu0 %v435
    %v437 = vand.u32 %v21, 4294901760
    %438 = vmatpush1.msra.mxu0 %v437
    %v439 = vand.u32 %v26, 4294901760
    %440 = vmatprep.subr.mxu0 %v439
    %v441 = vand.u32 %v25, 4294901760
    %442 = vmatpush1.msra.mxu0 %v441
    %v443 = vand.u32 %v30, 4294901760
    %444 = vmatprep.subr.mxu0 %v443
    %v445 = vand.u32 %v29, 4294901760
    %446 = vmatpush1.msra.mxu0 %v445
    %v447 = vand.u32 %v34, 4294901760
    %448 = vmatprep.subr.mxu0 %v447
    %v449 = vand.u32 %v33, 4294901760
    %450 = vmatpush1.msra.mxu0 %v449
    %v451 = vand.u32 %v38, 4294901760
    %452 = vmatprep.subr.mxu0 %v451
    %v453 = vand.u32 %v37, 4294901760
    %454 = vmatpush1.msra.mxu0 %v453
    %v455 = vand.u32 %v42, 4294901760
    %456 = vmatprep.subr.mxu0 %v455
    %v457 = vand.u32 %v41, 4294901760
    %458 = vmatpush1.msra.mxu0 %v457
    %v459 = vand.u32 %v46, 4294901760
    %460 = vmatprep.subr.mxu0 %v459
    %v461 = vand.u32 %v45, 4294901760
    %462 = vmatpush1.msra.mxu0 %v461
    %463 = vmatprep.subr.mxu0 0.0
    %464 = vmatpush1.msra.mxu0 0.0
    %465 = vmatprep.subr.mxu0 0.0
    %466 = vmatpush1.msra.mxu0 0.0
    %467 = vmatprep.subr.mxu0 0.0
    %468 = vmatpush1.msra.mxu0 0.0
    %469 = vmatprep.subr.mxu0 0.0
    %470 = vmatpush1.msra.mxu0 0.0
    %471 = vmatprep.subr.mxu0 0.0
    %472 = vmatpush1.msra.mxu0 0.0
    %473 = vmatprep.subr.mxu0 0.0
    %474 = vmatpush1.msra.mxu0 0.0
    %475 = vmatprep.subr.mxu0 0.0
    %476 = vmatpush1.msra.mxu0 0.0
    %477 = vmatprep.subr.mxu0 0.0
    %478 = vmatpush1.msra.mxu0 0.0
    %479 = vmatprep.subr.mxu0 0.0
    %480 = vmatpush1.msra.mxu0 0.0
    %481 = vmatprep.subr.mxu0 0.0
    %482 = vmatpush1.msra.mxu0 0.0
    %483 = vmatprep.subr.mxu0 0.0
    %484 = vmatpush1.msra.mxu0 0.0
    %485 = vmatprep.subr.mxu0 0.0
    %486 = vmatpush1.msra.mxu0 0.0
    %487 = vmatprep.subr.mxu0 0.0
    %488 = vmatpush1.msra.mxu0 0.0
    %489 = vmatprep.subr.mxu0 0.0
    %490 = vmatpush1.msra.mxu0 0.0
    %491 = vmatprep.subr.mxu0 0.0
    %492 = vmatpush1.msra.mxu0 0.0
    %493 = vmatprep.subr.mxu0 0.0
    %494 = vmatpush1.msra.mxu0 0.0
    %495 = vmatprep.subr.mxu0 0.0
    %496 = vmatpush1.msra.mxu0 0.0
    %497 = vmatprep.subr.mxu0 0.0
    %498 = vmatpush1.msra.mxu0 0.0
    %499 = vmatprep.subr.mxu0 0.0
    %500 = vmatpush1.msra.mxu0 0.0
    %501 = vmatprep.subr.mxu0 0.0
    %502 = vmatpush1.msra.mxu0 0.0
    %503 = vmatprep.subr.mxu0 0.0
    %504 = vmatpush1.msra.mxu0 0.0
    %505 = vmatprep.subr.mxu0 0.0
    %506 = vmatpush1.msra.mxu0 0.0
    %507 = vmatprep.subr.mxu0 0.0
    %508 = vmatpush1.msra.mxu0 0.0
    %509 = vmatprep.subr.mxu0 0.0
    %510 = vmatpush1.msra.mxu0 0.0
    %511 = vmatprep.mubr.f32.mxu0 0.0
    %v512 = vand.u32 %v51, 4294901760
    %v513 = vsub.f32 %v51, %v512
    %v514 = vand.u32 %v513, 4294901760
    %515 = vmatmul.mubr.f32.gmra.mrb[0].mxu0 %v514
    %v516 = vpop.f32.mrb[0].mxu0
    %v517 = vadd.f32 %v419, %v516
    %v518 = vpop.f32.mrb[0].mxu0
    %v519 = vadd.f32 %v421, %v518
    %520 = vmatprep.mubr.f32.mxu0 0.0
    %v521 = vand.u32 %v54, 4294901760
    %v522 = vsub.f32 %v54, %v521
    %v523 = vand.u32 %v522, 4294901760
    %524 = vmatmul.mubr.f32.gmra.mrb[0].mxu0 %v523
    %v525 = vpop.f32.mrb[0].mxu0
    %v526 = vadd.f32 %v427, %v525
    %v527 = vpop.f32.mrb[0].mxu0
    %v528 = vadd.f32 %v429, %v527
    %529 = vdwg.mxu0
    %v530 = vand.u32 %v18, 4294901760
    %v531 = vsub.f32 %v18, %v530
    %v532 = vand.u32 %v531, 4294901760
    %533 = vmatprep.subr.mxu0 %v532
    %v534 = vand.u32 %v17, 4294901760
    %v535 = vsub.f32 %v17, %v534
    %v536 = vand.u32 %v535, 4294901760
    %537 = vmatpush1.msra.mxu0 %v536
    %v538 = vand.u32 %v22, 4294901760
    %v539 = vsub.f32 %v22, %v538
    %v540 = vand.u32 %v539, 4294901760
    %541 = vmatprep.subr.mxu0 %v540
    %v542 = vand.u32 %v21, 4294901760
    %v543 = vsub.f32 %v21, %v542
    %v544 = vand.u32 %v543, 4294901760
    %545 = vmatpush1.msra.mxu0 %v544
    %v546 = vand.u32 %v26, 4294901760
    %v547 = vsub.f32 %v26, %v546
    %v548 = vand.u32 %v547, 4294901760
    %549 = vmatprep.subr.mxu0 %v548
    %v550 = vand.u32 %v25, 4294901760
    %v551 = vsub.f32 %v25, %v550
    %v552 = vand.u32 %v551, 4294901760
    %553 = vmatpush1.msra.mxu0 %v552
    %v554 = vand.u32 %v30, 4294901760
    %v555 = vsub.f32 %v30, %v554
    %v556 = vand.u32 %v555, 4294901760
    %557 = vmatprep.subr.mxu0 %v556
    %v558 = vand.u32 %v29, 4294901760
    %v559 = vsub.f32 %v29, %v558
    %v560 = vand.u32 %v559, 4294901760
    %561 = vmatpush1.msra.mxu0 %v560
    %v562 = vand.u32 %v34, 4294901760
    %v563 = vsub.f32 %v34, %v562
    %v564 = vand.u32 %v563, 4294901760
    %565 = vmatprep.subr.mxu0 %v564
    %v566 = vand.u32 %v33, 4294901760
    %v567 = vsub.f32 %v33, %v566
    %v568 = vand.u32 %v567, 4294901760
    %569 = vmatpush1.msra.mxu0 %v568
    %v570 = vand.u32 %v38, 4294901760
    %v571 = vsub.f32 %v38, %v570
    %v572 = vand.u32 %v571, 4294901760
    %573 = vmatprep.subr.mxu0 %v572
    %v574 = vand.u32 %v37, 4294901760
    %v575 = vsub.f32 %v37, %v574
    %v576 = vand.u32 %v575, 4294901760
    %577 = vmatpush1.msra.mxu0 %v576
    %v578 = vand.u32 %v42, 4294901760
    %v579 = vsub.f32 %v42, %v578
    %v580 = vand.u32 %v579, 4294901760
    %581 = vmatprep.subr.mxu0 %v580
    %v582 = vand.u32 %v41, 4294901760
    %v583 = vsub.f32 %v41, %v582
    %v584 = vand.u32 %v583, 4294901760
    %585 = vmatpush1.msra.mxu0 %v584
    %v586 = vand.u32 %v46, 4294901760
    %v587 = vsub.f32 %v46, %v586
    %v588 = vand.u32 %v587, 4294901760
    %589 = vmatprep.subr.mxu0 %v588
    %v590 = vand.u32 %v45, 4294901760
    %v591 = vsub.f32 %v45, %v590
    %v592 = vand.u32 %v591, 4294901760
    %593 = vmatpush1.msra.mxu0 %v592
    %594 = vmatprep.subr.mxu0 0.0
    %595 = vmatpush1.msra.mxu0 0.0
    %596 = vmatprep.subr.mxu0 0.0
    %597 = vmatpush1.msra.mxu0 0.0
    %598 = vmatprep.subr.mxu0 0.0
    %599 = vmatpush1.msra.mxu0 0.0
    %600 = vmatprep.subr.mxu0 0.0
    %601 = vmatpush1.msra.mxu0 0.0
    %602 = vmatprep.subr.mxu0 0.0
    %603 = vmatpush1.msra.mxu0 0.0
    %604 = vmatprep.subr.mxu0 0.0
    %605 = vmatpush1.msra.mxu0 0.0
    %606 = vmatprep.subr.mxu0 0.0
    %607 = vmatpush1.msra.mxu0 0.0
    %608 = vmatprep.subr.mxu0 0.0
    %609 = vmatpush1.msra.mxu0 0.0
    %610 = vmatprep.subr.mxu0 0.0
    %611 = vmatpush1.msra.mxu0 0.0
    %612 = vmatprep.subr.mxu0 0.0
    %613 = vmatpush1.msra.mxu0 0.0
    %614 = vmatprep.subr.mxu0 0.0
    %615 = vmatpush1.msra.mxu0 0.0
    %616 = vmatprep.subr.mxu0 0.0
    %617 = vmatpush1.msra.mxu0 0.0
    %618 = vmatprep.subr.mxu0 0.0
    %619 = vmatpush1.msra.mxu0 0.0
    %620 = vmatprep.subr.mxu0 0.0
    %621 = vmatpush1.msra.mxu0 0.0
    %622 = vmatprep.subr.mxu0 0.0
    %623 = vmatpush1.msra.mxu0 0.0
    %624 = vmatprep.subr.mxu0 0.0
    %625 = vmatpush1.msra.mxu0 0.0
    %626 = vmatprep.subr.mxu0 0.0
    %627 = vmatpush1.msra.mxu0 0.0
    %628 = vmatprep.subr.mxu0 0.0
    %629 = vmatpush1.msra.mxu0 0.0
    %630 = vmatprep.subr.mxu0 0.0
    %631 = vmatpush1.msra.mxu0 0.0
    %632 = vmatprep.subr.mxu0 0.0
    %633 = vmatpush1.msra.mxu0 0.0
    %634 = vmatprep.subr.mxu0 0.0
    %635 = vmatpush1.msra.mxu0 0.0
    %636 = vmatprep.subr.mxu0 0.0
    %637 = vmatpush1.msra.mxu0 0.0
    %638 = vmatprep.subr.mxu0 0.0
    %639 = vmatpush1.msra.mxu0 0.0
    %640 = vmatprep.subr.mxu0 0.0
    %641 = vmatpush1.msra.mxu0 0.0
    %642 = vmatprep.mubr.f32.mxu0 0.0
    %v643 = vand.u32 %v51, 4294901760
    %644 = vmatmul.mubr.f32.gmra.mrb[0].mxu0 %v643
    %v645 = vpop.f32.mrb[0].mxu0
    %v646 = vadd.f32 %v517, %v645
    %v647 = vpop.f32.mrb[0].mxu0
    %v648 = vadd.f32 %v519, %v647
    %649 = vmatprep.mubr.f32.mxu0 0.0
    %v650 = vand.u32 %v54, 4294901760
    %651 = vmatmul.mubr.f32.gmra.mrb[0].mxu0 %v650
    %v652 = vpop.f32.mrb[0].mxu0
    %v653 = vadd.f32 %v526, %v652
    %v654 = vpop.f32.mrb[0].mxu0
    %v655 = vadd.f32 %v528, %v654
    %656 = vdwg.mxu0
    %v657 = vand.u32 %v18, 4294901760
    %658 = vmatprep.subr.mxu0 %v657
    %v659 = vand.u32 %v17, 4294901760
    %660 = vmatpush1.msra.mxu0 %v659
    %v661 = vand.u32 %v22, 4294901760
    %662 = vmatprep.subr.mxu0 %v661
    %v663 = vand.u32 %v21, 4294901760
    %664 = vmatpush1.msra.mxu0 %v663
    %v665 = vand.u32 %v26, 4294901760
    %666 = vmatprep.subr.mxu0 %v665
    %v667 = vand.u32 %v25, 4294901760
    %668 = vmatpush1.msra.mxu0 %v667
    %v669 = vand.u32 %v30, 4294901760
    %670 = vmatprep.subr.mxu0 %v669
    %v671 = vand.u32 %v29, 4294901760
    %672 = vmatpush1.msra.mxu0 %v671
    %v673 = vand.u32 %v34, 4294901760
    %674 = vmatprep.subr.mxu0 %v673
    %v675 = vand.u32 %v33, 4294901760
    %676 = vmatpush1.msra.mxu0 %v675
    %v677 = vand.u32 %v38, 4294901760
    %678 = vmatprep.subr.mxu0 %v677
    %v679 = vand.u32 %v37, 4294901760
    %680 = vmatpush1.msra.mxu0 %v679
    %v681 = vand.u32 %v42, 4294901760
    %682 = vmatprep.subr.mxu0 %v681
    %v683 = vand.u32 %v41, 4294901760
    %684 = vmatpush1.msra.mxu0 %v683
    %v685 = vand.u32 %v46, 4294901760
    %686 = vmatprep.subr.mxu0 %v685
    %v687 = vand.u32 %v45, 4294901760
    %688 = vmatpush1.msra.mxu0 %v687
    %689 = vmatprep.subr.mxu0 0.0
    %690 = vmatpush1.msra.mxu0 0.0
    %691 = vmatprep.subr.mxu0 0.0
    %692 = vmatpush1.msra.mxu0 0.0
    %693 = vmatprep.subr.mxu0 0.0
    %694 = vmatpush1.msra.mxu0 0.0
    %695 = vmatprep.subr.mxu0 0.0
    %696 = vmatpush1.msra.mxu0 0.0
    %697 = vmatprep.subr.mxu0 0.0
    %698 = vmatpush1.msra.mxu0 0.0
    %699 = vmatprep.subr.mxu0 0.0
    %700 = vmatpush1.msra.mxu0 0.0
    %701 = vmatprep.subr.mxu0 0.0
    %702 = vmatpush1.msra.mxu0 0.0
    %703 = vmatprep.subr.mxu0 0.0
    %704 = vmatpush1.msra.mxu0 0.0
    %705 = vmatprep.subr.mxu0 0.0
    %706 = vmatpush1.msra.mxu0 0.0
    %707 = vmatprep.subr.mxu0 0.0
    %708 = vmatpush1.msra.mxu0 0.0
    %709 = vmatprep.subr.mxu0 0.0
    %710 = vmatpush1.msra.mxu0 0.0
    %711 = vmatprep.subr.mxu0 0.0
    %712 = vmatpush1.msra.mxu0 0.0
    %713 = vmatprep.subr.mxu0 0.0
    %714 = vmatpush1.msra.mxu0 0.0
    %715 = vmatprep.subr.mxu0 0.0
    %716 = vmatpush1.msra.mxu0 0.0
    %717 = vmatprep.subr.mxu0 0.0
    %718 = vmatpush1.msra.mxu0 0.0
    %719 = vmatprep.subr.mxu0 0.0
    %720 = vmatpush1.msra.mxu0 0.0
    %721 = vmatprep.subr.mxu0 0.0
    %722 = vmatpush1.msra.mxu0 0.0
    %723 = vmatprep.subr.mxu0 0.0
    %724 = vmatpush1.msra.mxu0 0.0
    %725 = vmatprep.subr.mxu0 0.0
    %726 = vmatpush1.msra.mxu0 0.0
    %727 = vmatprep.subr.mxu0 0.0
    %728 = vmatpush1.msra.mxu0 0.0
    %729 = vmatprep.subr.mxu0 0.0
    %730 = vmatpush1.msra.mxu0 0.0
    %731 = vmatprep.subr.mxu0 0.0
    %732 = vmatpush1.msra.mxu0 0.0
    %733 = vmatprep.subr.mxu0 0.0
    %734 = vmatpush1.msra.mxu0 0.0
    %735 = vmatprep.subr.mxu0 0.0
    %736 = vmatpush1.msra.mxu0 0.0
    %737 = vmatprep.mubr.f32.mxu0 0.0
    %v738 = vand.u32 %v51, 4294901760
    %739 = vmatmul.mubr.f32.gmra.mrb[0].mxu0 %v738
    %v740 = vpop.f32.mrb[0].mxu0
    %v741 = vadd.f32 %v646, %v740
    %v742 = vpop.f32.mrb[0].mxu0
    %v743 = vadd.f32 %v648, %v742
    %744 = vmatprep.mubr.f32.mxu0 0.0
    %v745 = vand.u32 %v54, 4294901760
    %746 = vmatmul.mubr.f32.gmra.mrb[0].mxu0 %v745
    %v747 = vpop.f32.mrb[0].mxu0
    %v748 = vadd.f32 %v653, %v747
    %v749 = vpop.f32.mrb[0].mxu0
    %v750 = vadd.f32 %v655, %v749
    %751 = vdwg.mxu0
    %v752 = vand.u32 %v20, 4294901760
    %753 = vmatprep.subr.mxu0 %v752
    %v754 = vand.u32 %v19, 4294901760
    %755 = vmatpush1.msra.mxu0 %v754
    %v756 = vand.u32 %v24, 4294901760
    %757 = vmatprep.subr.mxu0 %v756
    %v758 = vand.u32 %v23, 4294901760
    %759 = vmatpush1.msra.mxu0 %v758
    %v760 = vand.u32 %v28, 4294901760
    %761 = vmatprep.subr.mxu0 %v760
    %v762 = vand.u32 %v27, 4294901760
    %763 = vmatpush1.msra.mxu0 %v762
    %v764 = vand.u32 %v32, 4294901760
    %765 = vmatprep.subr.mxu0 %v764
    %v766 = vand.u32 %v31, 4294901760
    %767 = vmatpush1.msra.mxu0 %v766
    %v768 = vand.u32 %v36, 4294901760
    %769 = vmatprep.subr.mxu0 %v768
    %v770 = vand.u32 %v35, 4294901760
    %771 = vmatpush1.msra.mxu0 %v770
    %v772 = vand.u32 %v40, 4294901760
    %773 = vmatprep.subr.mxu0 %v772
    %v774 = vand.u32 %v39, 4294901760
    %775 = vmatpush1.msra.mxu0 %v774
    %v776 = vand.u32 %v44, 4294901760
    %777 = vmatprep.subr.mxu0 %v776
    %v778 = vand.u32 %v43, 4294901760
    %779 = vmatpush1.msra.mxu0 %v778
    %v780 = vand.u32 %v48, 4294901760
    %781 = vmatprep.subr.mxu0 %v780
    %v782 = vand.u32 %v47, 4294901760
    %783 = vmatpush1.msra.mxu0 %v782
    %784 = vmatprep.subr.mxu0 0.0
    %785 = vmatpush1.msra.mxu0 0.0
    %786 = vmatprep.subr.mxu0 0.0
    %787 = vmatpush1.msra.mxu0 0.0
    %788 = vmatprep.subr.mxu0 0.0
    %789 = vmatpush1.msra.mxu0 0.0
    %790 = vmatprep.subr.mxu0 0.0
    %791 = vmatpush1.msra.mxu0 0.0
    %792 = vmatprep.subr.mxu0 0.0
    %793 = vmatpush1.msra.mxu0 0.0
    %794 = vmatprep.subr.mxu0 0.0
    %795 = vmatpush1.msra.mxu0 0.0
    %796 = vmatprep.subr.mxu0 0.0
    %797 = vmatpush1.msra.mxu0 0.0
    %798 = vmatprep.subr.mxu0 0.0
    %799 = vmatpush1.msra.mxu0 0.0
    %800 = vmatprep.subr.mxu0 0.0
    %801 = vmatpush1.msra.mxu0 0.0
    %802 = vmatprep.subr.mxu0 0.0
    %803 = vmatpush1.msra.mxu0 0.0
    %804 = vmatprep.subr.mxu0 0.0
    %805 = vmatpush1.msra.mxu0 0.0
    %806 = vmatprep.subr.mxu0 0.0
    %807 = vmatpush1.msra.mxu0 0.0
    %808 = vmatprep.subr.mxu0 0.0
    %809 = vmatpush1.msra.mxu0 0.0
    %810 = vmatprep.subr.mxu0 0.0
    %811 = vmatpush1.msra.mxu0 0.0
    %812 = vmatprep.subr.mxu0 0.0
    %813 = vmatpush1.msra.mxu0 0.0
    %814 = vmatprep.subr.mxu0 0.0
    %815 = vmatpush1.msra.mxu0 0.0
    %816 = vmatprep.subr.mxu0 0.0
    %817 = vmatpush1.msra.mxu0 0.0
    %818 = vmatprep.subr.mxu0 0.0
    %819 = vmatpush1.msra.mxu0 0.0
    %820 = vmatprep.subr.mxu0 0.0
    %821 = vmatpush1.msra.mxu0 0.0
    %822 = vmatprep.subr.mxu0 0.0
    %823 = vmatpush1.msra.mxu0 0.0
    %824 = vmatprep.subr.mxu0 0.0
    %825 = vmatpush1.msra.mxu0 0.0
    %826 = vmatprep.subr.mxu0 0.0
    %827 = vmatpush1.msra.mxu0 0.0
    %828 = vmatprep.subr.mxu0 0.0
    %829 = vmatpush1.msra.mxu0 0.0
    %830 = vmatprep.subr.mxu0 0.0
    %831 = vmatpush1.msra.mxu0 0.0
    %832 = vmatprep.mubr.f32.mxu0 0.0
    %v833 = vand.u32 %v51, 4294901760
    %v834 = vsub.f32 %v51, %v833
    %v835 = vand.u32 %v834, 4294901760
    %v836 = vsub.f32 %v834, %v835
    %v837 = vand.u32 %v836, 4294901760
    %838 = vmatmul.mubr.f32.gmra.mrb[0].mxu0 %v837
    %v839 = vpop.f32.mrb[0].mxu0
    %v840 = vadd.f32 0.0, %v839
    %v841 = vpop.f32.mrb[0].mxu0
    %v842 = vadd.f32 0.0, %v841
    %843 = vmatprep.mubr.f32.mxu0 0.0
    %v844 = vand.u32 %v54, 4294901760
    %v845 = vsub.f32 %v54, %v844
    %v846 = vand.u32 %v845, 4294901760
    %v847 = vsub.f32 %v845, %v846
    %v848 = vand.u32 %v847, 4294901760
    %849 = vmatmul.mubr.f32.gmra.mrb[0].mxu0 %v848
    %v850 = vpop.f32.mrb[0].mxu0
    %v851 = vadd.f32 0.0, %v850
    %v852 = vpop.f32.mrb[0].mxu0
    %v853 = vadd.f32 0.0, %v852
    %854 = vdwg.mxu0
    %v855 = vand.u32 %v20, 4294901760
    %v856 = vsub.f32 %v20, %v855
    %v857 = vand.u32 %v856, 4294901760
    %v858 = vsub.f32 %v856, %v857
    %v859 = vand.u32 %v858, 4294901760
    %860 = vmatprep.subr.mxu0 %v859
    %v861 = vand.u32 %v19, 4294901760
    %v862 = vsub.f32 %v19, %v861
    %v863 = vand.u32 %v862, 4294901760
    %v864 = vsub.f32 %v862, %v863
    %v865 = vand.u32 %v864, 4294901760
    %866 = vmatpush1.msra.mxu0 %v865
    %v867 = vand.u32 %v24, 4294901760
    %v868 = vsub.f32 %v24, %v867
    %v869 = vand.u32 %v868, 4294901760
    %v870 = vsub.f32 %v868, %v869
    %v871 = vand.u32 %v870, 4294901760
    %872 = vmatprep.subr.mxu0 %v871
    %v873 = vand.u32 %v23, 4294901760
    %v874 = vsub.f32 %v23, %v873
    %v875 = vand.u32 %v874, 4294901760
    %v876 = vsub.f32 %v874, %v875
    %v877 = vand.u32 %v876, 4294901760
    %878 = vmatpush1.msra.mxu0 %v877
    %v879 = vand.u32 %v28, 4294901760
    %v880 = vsub.f32 %v28, %v879
    %v881 = vand.u32 %v880, 4294901760
    %v882 = vsub.f32 %v880, %v881
    %v883 = vand.u32 %v882, 4294901760
    %884 = vmatprep.subr.mxu0 %v883
    %v885 = vand.u32 %v27, 4294901760
    %v886 = vsub.f32 %v27, %v885
    %v887 = vand.u32 %v886, 4294901760
    %v888 = vsub.f32 %v886, %v887
    %v889 = vand.u32 %v888, 4294901760
    %890 = vmatpush1.msra.mxu0 %v889
    %v891 = vand.u32 %v32, 4294901760
    %v892 = vsub.f32 %v32, %v891
    %v893 = vand.u32 %v892, 4294901760
    %v894 = vsub.f32 %v892, %v893
    %v895 = vand.u32 %v894, 4294901760
    %896 = vmatprep.subr.mxu0 %v895
    %v897 = vand.u32 %v31, 4294901760
    %v898 = vsub.f32 %v31, %v897
    %v899 = vand.u32 %v898, 4294901760
    %v900 = vsub.f32 %v898, %v899
    %v901 = vand.u32 %v900, 4294901760
    %902 = vmatpush1.msra.mxu0 %v901
    %v903 = vand.u32 %v36, 4294901760
    %v904 = vsub.f32 %v36, %v903
    %v905 = vand.u32 %v904, 4294901760
    %v906 = vsub.f32 %v904, %v905
    %v907 = vand.u32 %v906, 4294901760
    %908 = vmatprep.subr.mxu0 %v907
    %v909 = vand.u32 %v35, 4294901760
    %v910 = vsub.f32 %v35, %v909
    %v911 = vand.u32 %v910, 4294901760
    %v912 = vsub.f32 %v910, %v911
    %v913 = vand.u32 %v912, 4294901760
    %914 = vmatpush1.msra.mxu0 %v913
    %v915 = vand.u32 %v40, 4294901760
    %v916 = vsub.f32 %v40, %v915
    %v917 = vand.u32 %v916, 4294901760
    %v918 = vsub.f32 %v916, %v917
    %v919 = vand.u32 %v918, 4294901760
    %920 = vmatprep.subr.mxu0 %v919
    %v921 = vand.u32 %v39, 4294901760
    %v922 = vsub.f32 %v39, %v921
    %v923 = vand.u32 %v922, 4294901760
    %v924 = vsub.f32 %v922, %v923
    %v925 = vand.u32 %v924, 4294901760
    %926 = vmatpush1.msra.mxu0 %v925
    %v927 = vand.u32 %v44, 4294901760
    %v928 = vsub.f32 %v44, %v927
    %v929 = vand.u32 %v928, 4294901760
    %v930 = vsub.f32 %v928, %v929
    %v931 = vand.u32 %v930, 4294901760
    %932 = vmatprep.subr.mxu0 %v931
    %v933 = vand.u32 %v43, 4294901760
    %v934 = vsub.f32 %v43, %v933
    %v935 = vand.u32 %v934, 4294901760
    %v936 = vsub.f32 %v934, %v935
    %v937 = vand.u32 %v936, 4294901760
    %938 = vmatpush1.msra.mxu0 %v937
    %v939 = vand.u32 %v48, 4294901760
    %v940 = vsub.f32 %v48, %v939
    %v941 = vand.u32 %v940, 4294901760
    %v942 = vsub.f32 %v940, %v941
    %v943 = vand.u32 %v942, 4294901760
    %944 = vmatprep.subr.mxu0 %v943
    %v945 = vand.u32 %v47, 4294901760
    %v946 = vsub.f32 %v47, %v945
    %v947 = vand.u32 %v946, 4294901760
    %v948 = vsub.f32 %v946, %v947
    %v949 = vand.u32 %v948, 4294901760
    %950 = vmatpush1.msra.mxu0 %v949
    %951 = vmatprep.subr.mxu0 0.0
    %952 = vmatpush1.msra.mxu0 0.0
    %953 = vmatprep.subr.mxu0 0.0
    %954 = vmatpush1.msra.mxu0 0.0
    %955 = vmatprep.subr.mxu0 0.0
    %956 = vmatpush1.msra.mxu0 0.0
    %957 = vmatprep.subr.mxu0 0.0
    %958 = vmatpush1.msra.mxu0 0.0
    %959 = vmatprep.subr.mxu0 0.0
    %960 = vmatpush1.msra.mxu0 0.0
    %961 = vmatprep.subr.mxu0 0.0
    %962 = vmatpush1.msra.mxu0 0.0
    %963 = vmatprep.subr.mxu0 0.0
    %964 = vmatpush1.msra.mxu0 0.0
    %965 = vmatprep.subr.mxu0 0.0
    %966 = vmatpush1.msra.mxu0 0.0
    %967 = vmatprep.subr.mxu0 0.0
    %968 = vmatpush1.msra.mxu0 0.0
    %969 = vmatprep.subr.mxu0 0.0
    %970 = vmatpush1.msra.mxu0 0.0
    %971 = vmatprep.subr.mxu0 0.0
    %972 = vmatpush1.msra.mxu0 0.0
    %973 = vmatprep.subr.mxu0 0.0
    %974 = vmatpush1.msra.mxu0 0.0
    %975 = vmatprep.subr.mxu0 0.0
    %976 = vmatpush1.msra.mxu0 0.0
    %977 = vmatprep.subr.mxu0 0.0
    %978 = vmatpush1.msra.mxu0 0.0
    %979 = vmatprep.subr.mxu0 0.0
    %980 = vmatpush1.msra.mxu0 0.0
    %981 = vmatprep.subr.mxu0 0.0
    %982 = vmatpush1.msra.mxu0 0.0
    %983 = vmatprep.subr.mxu0 0.0
    %984 = vmatpush1.msra.mxu0 0.0
    %985 = vmatprep.subr.mxu0 0.0
    %986 = vmatpush1.msra.mxu0 0.0
    %987 = vmatprep.subr.mxu0 0.0
    %988 = vmatpush1.msra.mxu0 0.0
    %989 = vmatprep.subr.mxu0 0.0
    %990 = vmatpush1.msra.mxu0 0.0
    %991 = vmatprep.subr.mxu0 0.0
    %992 = vmatpush1.msra.mxu0 0.0
    %993 = vmatprep.subr.mxu0 0.0
    %994 = vmatpush1.msra.mxu0 0.0
    %995 = vmatprep.subr.mxu0 0.0
    %996 = vmatpush1.msra.mxu0 0.0
    %997 = vmatprep.subr.mxu0 0.0
    %998 = vmatpush1.msra.mxu0 0.0
    %999 = vmatprep.mubr.f32.mxu0 0.0
    %v1000 = vand.u32 %v51, 4294901760
    %1001 = vmatmul.mubr.f32.gmra.mrb[0].mxu0 %v1000
    %v1002 = vpop.f32.mrb[0].mxu0
    %v1003 = vadd.f32 %v840, %v1002
    %v1004 = vpop.f32.mrb[0].mxu0
    %v1005 = vadd.f32 %v842, %v1004
    %1006 = vmatprep.mubr.f32.mxu0 0.0
    %v1007 = vand.u32 %v54, 4294901760
    %1008 = vmatmul.mubr.f32.gmra.mrb[0].mxu0 %v1007
    %v1009 = vpop.f32.mrb[0].mxu0
    %v1010 = vadd.f32 %v851, %v1009
    %v1011 = vpop.f32.mrb[0].mxu0
    %v1012 = vadd.f32 %v853, %v1011
    %1013 = vdwg.mxu0
    %v1014 = vand.u32 %v20, 4294901760
    %v1015 = vsub.f32 %v20, %v1014
    %1016 = vmatprep.subr.mxu0 %v1015
    %v1017 = vand.u32 %v19, 4294901760
    %v1018 = vsub.f32 %v19, %v1017
    %1019 = vmatpush1.msra.mxu0 %v1018
    %v1020 = vand.u32 %v24, 4294901760
    %v1021 = vsub.f32 %v24, %v1020
    %1022 = vmatprep.subr.mxu0 %v1021
    %v1023 = vand.u32 %v23, 4294901760
    %v1024 = vsub.f32 %v23, %v1023
    %1025 = vmatpush1.msra.mxu0 %v1024
    %v1026 = vand.u32 %v28, 4294901760
    %v1027 = vsub.f32 %v28, %v1026
    %1028 = vmatprep.subr.mxu0 %v1027
    %v1029 = vand.u32 %v27, 4294901760
    %v1030 = vsub.f32 %v27, %v1029
    %1031 = vmatpush1.msra.mxu0 %v1030
    %v1032 = vand.u32 %v32, 4294901760
    %v1033 = vsub.f32 %v32, %v1032
    %1034 = vmatprep.subr.mxu0 %v1033
    %v1035 = vand.u32 %v31, 4294901760
    %v1036 = vsub.f32 %v31, %v1035
    %1037 = vmatpush1.msra.mxu0 %v1036
    %v1038 = vand.u32 %v36, 4294901760
    %v1039 = vsub.f32 %v36, %v1038
    %1040 = vmatprep.subr.mxu0 %v1039
    %v1041 = vand.u32 %v35, 4294901760
    %v1042 = vsub.f32 %v35, %v1041
    %1043 = vmatpush1.msra.mxu0 %v1042
    %v1044 = vand.u32 %v40, 4294901760
    %v1045 = vsub.f32 %v40, %v1044
    %1046 = vmatprep.subr.mxu0 %v1045
    %v1047 = vand.u32 %v39, 4294901760
    %v1048 = vsub.f32 %v39, %v1047
    %1049 = vmatpush1.msra.mxu0 %v1048
    %v1050 = vand.u32 %v44, 4294901760
    %v1051 = vsub.f32 %v44, %v1050
    %1052 = vmatprep.subr.mxu0 %v1051
    %v1053 = vand.u32 %v43, 4294901760
    %v1054 = vsub.f32 %v43, %v1053
    %1055 = vmatpush1.msra.mxu0 %v1054
    %v1056 = vand.u32 %v48, 4294901760
    %v1057 = vsub.f32 %v48, %v1056
    %1058 = vmatprep.subr.mxu0 %v1057
    %v1059 = vand.u32 %v47, 4294901760
    %v1060 = vsub.f32 %v47, %v1059
    %1061 = vmatpush1.msra.mxu0 %v1060
    %1062 = vmatprep.subr.mxu0 0.0
    %1063 = vmatpush1.msra.mxu0 0.0
    %1064 = vmatprep.subr.mxu0 0.0
    %1065 = vmatpush1.msra.mxu0 0.0
    %1066 = vmatprep.subr.mxu0 0.0
    %1067 = vmatpush1.msra.mxu0 0.0
    %1068 = vmatprep.subr.mxu0 0.0
    %1069 = vmatpush1.msra.mxu0 0.0
    %1070 = vmatprep.subr.mxu0 0.0
    %1071 = vmatpush1.msra.mxu0 0.0
    %1072 = vmatprep.subr.mxu0 0.0
    %1073 = vmatpush1.msra.mxu0 0.0
    %1074 = vmatprep.subr.mxu0 0.0
    %1075 = vmatpush1.msra.mxu0 0.0
    %1076 = vmatprep.subr.mxu0 0.0
    %1077 = vmatpush1.msra.mxu0 0.0
    %1078 = vmatprep.subr.mxu0 0.0
    %1079 = vmatpush1.msra.mxu0 0.0
    %1080 = vmatprep.subr.mxu0 0.0
    %1081 = vmatpush1.msra.mxu0 0.0
    %1082 = vmatprep.subr.mxu0 0.0
    %1083 = vmatpush1.msra.mxu0 0.0
    %1084 = vmatprep.subr.mxu0 0.0
    %1085 = vmatpush1.msra.mxu0 0.0
    %1086 = vmatprep.subr.mxu0 0.0
    %1087 = vmatpush1.msra.mxu0 0.0
    %1088 = vmatprep.subr.mxu0 0.0
    %1089 = vmatpush1.msra.mxu0 0.0
    %1090 = vmatprep.subr.mxu0 0.0
    %1091 = vmatpush1.msra.mxu0 0.0
    %1092 = vmatprep.subr.mxu0 0.0
    %1093 = vmatpush1.msra.mxu0 0.0
    %1094 = vmatprep.subr.mxu0 0.0
    %1095 = vmatpush1.msra.mxu0 0.0
    %1096 = vmatprep.subr.mxu0 0.0
    %1097 = vmatpush1.msra.mxu0 0.0
    %1098 = vmatprep.subr.mxu0 0.0
    %1099 = vmatpush1.msra.mxu0 0.0
    %1100 = vmatprep.subr.mxu0 0.0
    %1101 = vmatpush1.msra.mxu0 0.0
    %1102 = vmatprep.subr.mxu0 0.0
    %1103 = vmatpush1.msra.mxu0 0.0
    %1104 = vmatprep.subr.mxu0 0.0
    %1105 = vmatpush1.msra.mxu0 0.0
    %1106 = vmatprep.subr.mxu0 0.0
    %1107 = vmatpush1.msra.mxu0 0.0
    %1108 = vmatprep.subr.mxu0 0.0
    %1109 = vmatpush1.msra.mxu0 0.0
    %1110 = vmatprep.mubr.f32.mxu0 0.0
    %v1111 = vand.u32 %v51, 4294901760
    %v1112 = vsub.f32 %v51, %v1111
    %1113 = vmatmul.mubr.f32.gmra.mrb[0].mxu0 %v1112
    %v1114 = vpop.f32.mrb[0].mxu0
    %v1115 = vadd.f32 %v1003, %v1114
    %v1116 = vpop.f32.mrb[0].mxu0
    %v1117 = vadd.f32 %v1005, %v1116
    %1118 = vmatprep.mubr.f32.mxu0 0.0
    %v1119 = vand.u32 %v54, 4294901760
    %v1120 = vsub.f32 %v54, %v1119
    %1121 = vmatmul.mubr.f32.gmra.mrb[0].mxu0 %v1120
    %v1122 = vpop.f32.mrb[0].mxu0
    %v1123 = vadd.f32 %v1010, %v1122
    %v1124 = vpop.f32.mrb[0].mxu0
    %v1125 = vadd.f32 %v1012, %v1124
    %1126 = vdwg.mxu0
    %v1127 = vand.u32 %v20, 4294901760
    %1128 = vmatprep.subr.mxu0 %v1127
    %v1129 = vand.u32 %v19, 4294901760
    %1130 = vmatpush1.msra.mxu0 %v1129
    %v1131 = vand.u32 %v24, 4294901760
    %1132 = vmatprep.subr.mxu0 %v1131
    %v1133 = vand.u32 %v23, 4294901760
    %1134 = vmatpush1.msra.mxu0 %v1133
    %v1135 = vand.u32 %v28, 4294901760
    %1136 = vmatprep.subr.mxu0 %v1135
    %v1137 = vand.u32 %v27, 4294901760
    %1138 = vmatpush1.msra.mxu0 %v1137
    %v1139 = vand.u32 %v32, 4294901760
    %1140 = vmatprep.subr.mxu0 %v1139
    %v1141 = vand.u32 %v31, 4294901760
    %1142 = vmatpush1.msra.mxu0 %v1141
    %v1143 = vand.u32 %v36, 4294901760
    %1144 = vmatprep.subr.mxu0 %v1143
    %v1145 = vand.u32 %v35, 4294901760
    %1146 = vmatpush1.msra.mxu0 %v1145
    %v1147 = vand.u32 %v40, 4294901760
    %1148 = vmatprep.subr.mxu0 %v1147
    %v1149 = vand.u32 %v39, 4294901760
    %1150 = vmatpush1.msra.mxu0 %v1149
    %v1151 = vand.u32 %v44, 4294901760
    %1152 = vmatprep.subr.mxu0 %v1151
    %v1153 = vand.u32 %v43, 4294901760
    %1154 = vmatpush1.msra.mxu0 %v1153
    %v1155 = vand.u32 %v48, 4294901760
    %1156 = vmatprep.subr.mxu0 %v1155
    %v1157 = vand.u32 %v47, 4294901760
    %1158 = vmatpush1.msra.mxu0 %v1157
    %1159 = vmatprep.subr.mxu0 0.0
    %1160 = vmatpush1.msra.mxu0 0.0
    %1161 = vmatprep.subr.mxu0 0.0
    %1162 = vmatpush1.msra.mxu0 0.0
    %1163 = vmatprep.subr.mxu0 0.0
    %1164 = vmatpush1.msra.mxu0 0.0
    %1165 = vmatprep.subr.mxu0 0.0
    %1166 = vmatpush1.msra.mxu0 0.0
    %1167 = vmatprep.subr.mxu0 0.0
    %1168 = vmatpush1.msra.mxu0 0.0
    %1169 = vmatprep.subr.mxu0 0.0
    %1170 = vmatpush1.msra.mxu0 0.0
    %1171 = vmatprep.subr.mxu0 0.0
    %1172 = vmatpush1.msra.mxu0 0.0
    %1173 = vmatprep.subr.mxu0 0.0
    %1174 = vmatpush1.msra.mxu0 0.0
    %1175 = vmatprep.subr.mxu0 0.0
    %1176 = vmatpush1.msra.mxu0 0.0
    %1177 = vmatprep.subr.mxu0 0.0
    %1178 = vmatpush1.msra.mxu0 0.0
    %1179 = vmatprep.subr.mxu0 0.0
    %1180 = vmatpush1.msra.mxu0 0.0
    %1181 = vmatprep.subr.mxu0 0.0
    %1182 = vmatpush1.msra.mxu0 0.0
    %1183 = vmatprep.subr.mxu0 0.0
    %1184 = vmatpush1.msra.mxu0 0.0
    %1185 = vmatprep.subr.mxu0 0.0
    %1186 = vmatpush1.msra.mxu0 0.0
    %1187 = vmatprep.subr.mxu0 0.0
    %1188 = vmatpush1.msra.mxu0 0.0
    %1189 = vmatprep.subr.mxu0 0.0
    %1190 = vmatpush1.msra.mxu0 0.0
    %1191 = vmatprep.subr.mxu0 0.0
    %1192 = vmatpush1.msra.mxu0 0.0
    %1193 = vmatprep.subr.mxu0 0.0
    %1194 = vmatpush1.msra.mxu0 0.0
    %1195 = vmatprep.subr.mxu0 0.0
    %1196 = vmatpush1.msra.mxu0 0.0
    %1197 = vmatprep.subr.mxu0 0.0
    %1198 = vmatpush1.msra.mxu0 0.0
    %1199 = vmatprep.subr.mxu0 0.0
    %1200 = vmatpush1.msra.mxu0 0.0
    %1201 = vmatprep.subr.mxu0 0.0
    %1202 = vmatpush1.msra.mxu0 0.0
    %1203 = vmatprep.subr.mxu0 0.0
    %1204 = vmatpush1.msra.mxu0 0.0
    %1205 = vmatprep.subr.mxu0 0.0
    %1206 = vmatpush1.msra.mxu0 0.0
    %1207 = vmatprep.mubr.f32.mxu0 0.0
    %v1208 = vand.u32 %v51, 4294901760
    %v1209 = vsub.f32 %v51, %v1208
    %v1210 = vand.u32 %v1209, 4294901760
    %1211 = vmatmul.mubr.f32.gmra.mrb[0].mxu0 %v1210
    %v1212 = vpop.f32.mrb[0].mxu0
    %v1213 = vadd.f32 %v1115, %v1212
    %v1214 = vpop.f32.mrb[0].mxu0
    %v1215 = vadd.f32 %v1117, %v1214
    %1216 = vmatprep.mubr.f32.mxu0 0.0
    %v1217 = vand.u32 %v54, 4294901760
    %v1218 = vsub.f32 %v54, %v1217
    %v1219 = vand.u32 %v1218, 4294901760
    %1220 = vmatmul.mubr.f32.gmra.mrb[0].mxu0 %v1219
    %v1221 = vpop.f32.mrb[0].mxu0
    %v1222 = vadd.f32 %v1123, %v1221
    %v1223 = vpop.f32.mrb[0].mxu0
    %v1224 = vadd.f32 %v1125, %v1223
    %1225 = vdwg.mxu0
    %v1226 = vand.u32 %v20, 4294901760
    %v1227 = vsub.f32 %v20, %v1226
    %v1228 = vand.u32 %v1227, 4294901760
    %1229 = vmatprep.subr.mxu0 %v1228
    %v1230 = vand.u32 %v19, 4294901760
    %v1231 = vsub.f32 %v19, %v1230
    %v1232 = vand.u32 %v1231, 4294901760
    %1233 = vmatpush1.msra.mxu0 %v1232
    %v1234 = vand.u32 %v24, 4294901760
    %v1235 = vsub.f32 %v24, %v1234
    %v1236 = vand.u32 %v1235, 4294901760
    %1237 = vmatprep.subr.mxu0 %v1236
    %v1238 = vand.u32 %v23, 4294901760
    %v1239 = vsub.f32 %v23, %v1238
    %v1240 = vand.u32 %v1239, 4294901760
    %1241 = vmatpush1.msra.mxu0 %v1240
    %v1242 = vand.u32 %v28, 4294901760
    %v1243 = vsub.f32 %v28, %v1242
    %v1244 = vand.u32 %v1243, 4294901760
    %1245 = vmatprep.subr.mxu0 %v1244
    %v1246 = vand.u32 %v27, 4294901760
    %v1247 = vsub.f32 %v27, %v1246
    %v1248 = vand.u32 %v1247, 4294901760
    %1249 = vmatpush1.msra.mxu0 %v1248
    %v1250 = vand.u32 %v32, 4294901760
    %v1251 = vsub.f32 %v32, %v1250
    %v1252 = vand.u32 %v1251, 4294901760
    %1253 = vmatprep.subr.mxu0 %v1252
    %v1254 = vand.u32 %v31, 4294901760
    %v1255 = vsub.f32 %v31, %v1254
    %v1256 = vand.u32 %v1255, 4294901760
    %1257 = vmatpush1.msra.mxu0 %v1256
    %v1258 = vand.u32 %v36, 4294901760
    %v1259 = vsub.f32 %v36, %v1258
    %v1260 = vand.u32 %v1259, 4294901760
    %1261 = vmatprep.subr.mxu0 %v1260
    %v1262 = vand.u32 %v35, 4294901760
    %v1263 = vsub.f32 %v35, %v1262
    %v1264 = vand.u32 %v1263, 4294901760
    %1265 = vmatpush1.msra.mxu0 %v1264
    %v1266 = vand.u32 %v40, 4294901760
    %v1267 = vsub.f32 %v40, %v1266
    %v1268 = vand.u32 %v1267, 4294901760
    %1269 = vmatprep.subr.mxu0 %v1268
    %v1270 = vand.u32 %v39, 4294901760
    %v1271 = vsub.f32 %v39, %v1270
    %v1272 = vand.u32 %v1271, 4294901760
    %1273 = vmatpush1.msra.mxu0 %v1272
    %v1274 = vand.u32 %v44, 4294901760
    %v1275 = vsub.f32 %v44, %v1274
    %v1276 = vand.u32 %v1275, 4294901760
    %1277 = vmatprep.subr.mxu0 %v1276
    %v1278 = vand.u32 %v43, 4294901760
    %v1279 = vsub.f32 %v43, %v1278
    %v1280 = vand.u32 %v1279, 4294901760
    %1281 = vmatpush1.msra.mxu0 %v1280
    %v1282 = vand.u32 %v48, 4294901760
    %v1283 = vsub.f32 %v48, %v1282
    %v1284 = vand.u32 %v1283, 4294901760
    %1285 = vmatprep.subr.mxu0 %v1284
    %v1286 = vand.u32 %v47, 4294901760
    %v1287 = vsub.f32 %v47, %v1286
    %v1288 = vand.u32 %v1287, 4294901760
    %1289 = vmatpush1.msra.mxu0 %v1288
    %1290 = vmatprep.subr.mxu0 0.0
    %1291 = vmatpush1.msra.mxu0 0.0
    %1292 = vmatprep.subr.mxu0 0.0
    %1293 = vmatpush1.msra.mxu0 0.0
    %1294 = vmatprep.subr.mxu0 0.0
    %1295 = vmatpush1.msra.mxu0 0.0
    %1296 = vmatprep.subr.mxu0 0.0
    %1297 = vmatpush1.msra.mxu0 0.0
    %1298 = vmatprep.subr.mxu0 0.0
    %1299 = vmatpush1.msra.mxu0 0.0
    %1300 = vmatprep.subr.mxu0 0.0
    %1301 = vmatpush1.msra.mxu0 0.0
    %1302 = vmatprep.subr.mxu0 0.0
    %1303 = vmatpush1.msra.mxu0 0.0
    %1304 = vmatprep.subr.mxu0 0.0
    %1305 = vmatpush1.msra.mxu0 0.0
    %1306 = vmatprep.subr.mxu0 0.0
    %1307 = vmatpush1.msra.mxu0 0.0
    %1308 = vmatprep.subr.mxu0 0.0
    %1309 = vmatpush1.msra.mxu0 0.0
    %1310 = vmatprep.subr.mxu0 0.0
    %1311 = vmatpush1.msra.mxu0 0.0
    %1312 = vmatprep.subr.mxu0 0.0
    %1313 = vmatpush1.msra.mxu0 0.0
    %1314 = vmatprep.subr.mxu0 0.0
    %1315 = vmatpush1.msra.mxu0 0.0
    %1316 = vmatprep.subr.mxu0 0.0
    %1317 = vmatpush1.msra.mxu0 0.0
    %1318 = vmatprep.subr.mxu0 0.0
    %1319 = vmatpush1.msra.mxu0 0.0
    %1320 = vmatprep.subr.mxu0 0.0
    %1321 = vmatpush1.msra.mxu0 0.0
    %1322 = vmatprep.subr.mxu0 0.0
    %1323 = vmatpush1.msra.mxu0 0.0
    %1324 = vmatprep.subr.mxu0 0.0
    %1325 = vmatpush1.msra.mxu0 0.0
    %1326 = vmatprep.subr.mxu0 0.0
    %1327 = vmatpush1.msra.mxu0 0.0
    %1328 = vmatprep.subr.mxu0 0.0
    %1329 = vmatpush1.msra.mxu0 0.0
    %1330 = vmatprep.subr.mxu0 0.0
    %1331 = vmatpush1.msra.mxu0 0.0
    %1332 = vmatprep.subr.mxu0 0.0
    %1333 = vmatpush1.msra.mxu0 0.0
    %1334 = vmatprep.subr.mxu0 0.0
    %1335 = vmatpush1.msra.mxu0 0.0
    %1336 = vmatprep.subr.mxu0 0.0
    %1337 = vmatpush1.msra.mxu0 0.0
    %1338 = vmatprep.mubr.f32.mxu0 0.0
    %v1339 = vand.u32 %v51, 4294901760
    %1340 = vmatmul.mubr.f32.gmra.mrb[0].mxu0 %v1339
    %v1341 = vpop.f32.mrb[0].mxu0
    %v1342 = vadd.f32 %v1213, %v1341
    %v1343 = vpop.f32.mrb[0].mxu0
    %v1344 = vadd.f32 %v1215, %v1343
    %1345 = vmatprep.mubr.f32.mxu0 0.0
    %v1346 = vand.u32 %v54, 4294901760
    %1347 = vmatmul.mubr.f32.gmra.mrb[0].mxu0 %v1346
    %v1348 = vpop.f32.mrb[0].mxu0
    %v1349 = vadd.f32 %v1222, %v1348
    %v1350 = vpop.f32.mrb[0].mxu0
    %v1351 = vadd.f32 %v1224, %v1350
    %1352 = vdwg.mxu0
    %v1353 = vand.u32 %v20, 4294901760
    %1354 = vmatprep.subr.mxu0 %v1353
    %v1355 = vand.u32 %v19, 4294901760
    %1356 = vmatpush1.msra.mxu0 %v1355
    %v1357 = vand.u32 %v24, 4294901760
    %1358 = vmatprep.subr.mxu0 %v1357
    %v1359 = vand.u32 %v23, 4294901760
    %1360 = vmatpush1.msra.mxu0 %v1359
    %v1361 = vand.u32 %v28, 4294901760
    %1362 = vmatprep.subr.mxu0 %v1361
    %v1363 = vand.u32 %v27, 4294901760
    %1364 = vmatpush1.msra.mxu0 %v1363
    %v1365 = vand.u32 %v32, 4294901760
    %1366 = vmatprep.subr.mxu0 %v1365
    %v1367 = vand.u32 %v31, 4294901760
    %1368 = vmatpush1.msra.mxu0 %v1367
    %v1369 = vand.u32 %v36, 4294901760
    %1370 = vmatprep.subr.mxu0 %v1369
    %v1371 = vand.u32 %v35, 4294901760
    %1372 = vmatpush1.msra.mxu0 %v1371
    %v1373 = vand.u32 %v40, 4294901760
    %1374 = vmatprep.subr.mxu0 %v1373
    %v1375 = vand.u32 %v39, 4294901760
    %1376 = vmatpush1.msra.mxu0 %v1375
    %v1377 = vand.u32 %v44, 4294901760
    %1378 = vmatprep.subr.mxu0 %v1377
    %v1379 = vand.u32 %v43, 4294901760
    %1380 = vmatpush1.msra.mxu0 %v1379
    %v1381 = vand.u32 %v48, 4294901760
    %1382 = vmatprep.subr.mxu0 %v1381
    %v1383 = vand.u32 %v47, 4294901760
    %1384 = vmatpush1.msra.mxu0 %v1383
    %1385 = vmatprep.subr.mxu0 0.0
    %1386 = vmatpush1.msra.mxu0 0.0
    %1387 = vmatprep.subr.mxu0 0.0
    %1388 = vmatpush1.msra.mxu0 0.0
    %1389 = vmatprep.subr.mxu0 0.0
    %1390 = vmatpush1.msra.mxu0 0.0
    %1391 = vmatprep.subr.mxu0 0.0
    %1392 = vmatpush1.msra.mxu0 0.0
    %1393 = vmatprep.subr.mxu0 0.0
    %1394 = vmatpush1.msra.mxu0 0.0
    %1395 = vmatprep.subr.mxu0 0.0
    %1396 = vmatpush1.msra.mxu0 0.0
    %1397 = vmatprep.subr.mxu0 0.0
    %1398 = vmatpush1.msra.mxu0 0.0
    %1399 = vmatprep.subr.mxu0 0.0
    %1400 = vmatpush1.msra.mxu0 0.0
    %1401 = vmatprep.subr.mxu0 0.0
    %1402 = vmatpush1.msra.mxu0 0.0
    %1403 = vmatprep.subr.mxu0 0.0
    %1404 = vmatpush1.msra.mxu0 0.0
    %1405 = vmatprep.subr.mxu0 0.0
    %1406 = vmatpush1.msra.mxu0 0.0
    %1407 = vmatprep.subr.mxu0 0.0
    %1408 = vmatpush1.msra.mxu0 0.0
    %1409 = vmatprep.subr.mxu0 0.0
    %1410 = vmatpush1.msra.mxu0 0.0
    %1411 = vmatprep.subr.mxu0 0.0
    %1412 = vmatpush1.msra.mxu0 0.0
    %1413 = vmatprep.subr.mxu0 0.0
    %1414 = vmatpush1.msra.mxu0 0.0
    %1415 = vmatprep.subr.mxu0 0.0
    %1416 = vmatpush1.msra.mxu0 0.0
    %1417 = vmatprep.subr.mxu0 0.0
    %1418 = vmatpush1.msra.mxu0 0.0
    %1419 = vmatprep.subr.mxu0 0.0
    %1420 = vmatpush1.msra.mxu0 0.0
    %1421 = vmatprep.subr.mxu0 0.0
    %1422 = vmatpush1.msra.mxu0 0.0
    %1423 = vmatprep.subr.mxu0 0.0
    %1424 = vmatpush1.msra.mxu0 0.0
    %1425 = vmatprep.subr.mxu0 0.0
    %1426 = vmatpush1.msra.mxu0 0.0
    %1427 = vmatprep.subr.mxu0 0.0
    %1428 = vmatpush1.msra.mxu0 0.0
    %1429 = vmatprep.subr.mxu0 0.0
    %1430 = vmatpush1.msra.mxu0 0.0
    %1431 = vmatprep.subr.mxu0 0.0
    %1432 = vmatpush1.msra.mxu0 0.0
    %1433 = vmatprep.mubr.f32.mxu0 0.0
    %v1434 = vand.u32 %v51, 4294901760
    %1435 = vmatmul.mubr.f32.gmra.mrb[0].mxu0 %v1434
    %v1436 = vpop.f32.mrb[0].mxu0
    %v1437 = vadd.f32 %v1342, %v1436
    %v1438 = vpop.f32.mrb[0].mxu0
    %v1439 = vadd.f32 %v1344, %v1438
    %1440 = vmatprep.mubr.f32.mxu0 0.0
    %v1441 = vand.u32 %v54, 4294901760
    %1442 = vmatmul.mubr.f32.gmra.mrb[0].mxu0 %v1441
    %v1443 = vpop.f32.mrb[0].mxu0
    %v1444 = vadd.f32 %v1349, %v1443
    %v1445 = vpop.f32.mrb[0].mxu0
    %v1446 = vadd.f32 %v1351, %v1445
    %1447 = vdwg.mxu0
    %v1448 = vmax.f32 %v741, 0.0
    %v1449 = vmax.f32 %v743, 0.0
    %v1450 = vmax.f32 %v1437, 0.0
    %v1451 = vmax.f32 %v1439, 0.0
    %v1452 = vmax.f32 %v748, 0.0
    %v1453 = vmax.f32 %v750, 0.0
    %v1454 = vmax.f32 %v1444, 0.0
    %v1455 = vmax.f32 %v1446, 0.0
    %v1456 = vlaneseq
    %v1457 = vand.u32 %v1456, 127
    %v1458 = vadd.s32 %v1457, 128
    %v1459 = vadd.s32 %v1457, 256
    %v1460 = vadd.s32 %v1457, 384
    %v1461 = vlaneseq
    %v1462 = vshrl.u32 %v1461, 7
    %v1463 = vmul.u32 %v1462, 256
    %vm1464 = vcmp.ge.s32.totalorder %v1457, %v1463
    %vm1465 = vcmp.ge.s32.totalorder %v1458, %v1463
    %vm1466 = vcmp.ge.s32.totalorder %v1459, %v1463
    %vm1467 = vcmp.ge.s32.totalorder %v1460, %v1463
    %v1468 = vadd.s32 %v1463, 256
    %vm1469 = vcmp.lt.s32.totalorder %v1457, %v1468
    %vm1470 = vcmp.lt.s32.totalorder %v1458, %v1468
    %vm1471 = vcmp.lt.s32.totalorder %v1459, %v1468
    %vm1472 = vcmp.lt.s32.totalorder %v1460, %v1468
    %vm1473 = vmand %vm1464, %vm1469
    %vm1474 = vmand %vm1465, %vm1470
    %vm1475 = vmand %vm1466, %vm1471
    %vm1476 = vmand %vm1467, %vm1472
    %v1477 = vsel %vm1473, 0.00390625, 0.0
    %v1478 = vsel %vm1474, 0.00390625, 0.0
    %v1479 = vsel %vm1475, 0.00390625, 0.0
    %v1480 = vsel %vm1476, 0.00390625, 0.0
    %v1481 = vand.u32 %v1449, 4294901760
    %1482 = vmatprep.subr.mxu0 %v1481
    %v1483 = vand.u32 %v1448, 4294901760
    %1484 = vmatpush1.xpose.msra.mxu0 %v1483
    %v1485 = vand.u32 %v1453, 4294901760
    %1486 = vmatprep.subr.mxu0 %v1485
    %v1487 = vand.u32 %v1452, 4294901760
    %1488 = vmatpush1.xpose.msra.mxu0 %v1487
    %1489 = vmatprep.subr.mxu0 0.0
    %1490 = vmatpush1.xpose.msra.mxu0 0.0
    %1491 = vmatprep.subr.mxu0 0.0
    %1492 = vmatpush1.xpose.msra.mxu0 0.0
    %1493 = vmatprep.subr.mxu0 0.0
    %1494 = vmatpush1.xpose.msra.mxu0 0.0
    %1495 = vmatprep.subr.mxu0 0.0
    %1496 = vmatpush1.xpose.msra.mxu0 0.0
    %1497 = vmatprep.subr.mxu0 0.0
    %1498 = vmatpush1.xpose.msra.mxu0 0.0
    %1499 = vmatprep.subr.mxu0 0.0
    %1500 = vmatpush1.xpose.msra.mxu0 0.0
    %1501 = vmatprep.subr.mxu0 0.0
    %1502 = vmatpush1.xpose.msra.mxu0 0.0
    %1503 = vmatprep.subr.mxu0 0.0
    %1504 = vmatpush1.xpose.msra.mxu0 0.0
    %1505 = vmatprep.subr.mxu0 0.0
    %1506 = vmatpush1.xpose.msra.mxu0 0.0
    %1507 = vmatprep.subr.mxu0 0.0
    %1508 = vmatpush1.xpose.msra.mxu0 0.0
    %1509 = vmatprep.subr.mxu0 0.0
    %1510 = vmatpush1.xpose.msra.mxu0 0.0
    %1511 = vmatprep.subr.mxu0 0.0
    %1512 = vmatpush1.xpose.msra.mxu0 0.0
    %1513 = vmatprep.subr.mxu0 0.0
    %1514 = vmatpush1.xpose.msra.mxu0 0.0
    %1515 = vmatprep.subr.mxu0 0.0
    %1516 = vmatpush1.xpose.msra.mxu0 0.0
    %1517 = vmatprep.subr.mxu0 0.0
    %1518 = vmatpush1.xpose.msra.mxu0 0.0
    %1519 = vmatprep.subr.mxu0 0.0
    %1520 = vmatpush1.xpose.msra.mxu0 0.0
    %1521 = vmatprep.subr.mxu0 0.0
    %1522 = vmatpush1.xpose.msra.mxu0 0.0
    %1523 = vmatprep.subr.mxu0 0.0
    %1524 = vmatpush1.xpose.msra.mxu0 0.0
    %1525 = vmatprep.subr.mxu0 0.0
    %1526 = vmatpush1.xpose.msra.mxu0 0.0
    %1527 = vmatprep.subr.mxu0 0.0
    %1528 = vmatpush1.xpose.msra.mxu0 0.0
    %1529 = vmatprep.subr.mxu0 0.0
    %1530 = vmatpush1.xpose.msra.mxu0 0.0
    %1531 = vmatprep.subr.mxu0 0.0
    %1532 = vmatpush1.xpose.msra.mxu0 0.0
    %1533 = vmatprep.subr.mxu0 0.0
    %1534 = vmatpush1.xpose.msra.mxu0 0.0
    %1535 = vmatprep.subr.mxu0 0.0
    %1536 = vmatpush1.xpose.msra.mxu0 0.0
    %1537 = vmatprep.subr.mxu0 0.0
    %1538 = vmatpush1.xpose.msra.mxu0 0.0
    %1539 = vmatprep.subr.mxu0 0.0
    %1540 = vmatpush1.xpose.msra.mxu0 0.0
    %1541 = vmatprep.subr.mxu0 0.0
    %1542 = vmatpush1.xpose.msra.mxu0 0.0
    %1543 = vmatprep.subr.mxu0 0.0
    %1544 = vmatpush1.xpose.msra.mxu0 0.0
    %1545 = vmatprep.subr.mxu0 0.0
    %1546 = vmatpush1.xpose.msra.mxu0 0.0
    %1547 = vmatprep.subr.mxu0 0.0
    %1548 = vmatpush1.xpose.msra.mxu0 0.0
    %v1549 = vsub.f32 %v1478, %v1478
    %v1550 = vand.u32 %v1549, 4294901760
    %v1551 = vsub.f32 %v1549, %v1550
    %v1552 = vand.u32 %v1551, 4294901760
    %1553 = vmatprep.mubr.f32.mxu0 %v1552
    %v1554 = vsub.f32 %v1477, %v1477
    %v1555 = vand.u32 %v1554, 4294901760
    %v1556 = vsub.f32 %v1554, %v1555
    %v1557 = vand.u32 %v1556, 4294901760
    %1558 = vmatmul.mubr.f32.gmra.mrb[0].mxu0 %v1557
    %v1559 = vpop.f32.mrb[0].mxu0
    %v1560 = vadd.f32 0.0, %v1559
    %v1561 = vpop.f32.mrb[0].mxu0
    %1562 = vdwg.mxu0
    %v1563 = vand.u32 %v1449, 4294901760
    %v1564 = vsub.f32 %v1449, %v1563
    %v1565 = vand.u32 %v1564, 4294901760
    %v1566 = vsub.f32 %v1564, %v1565
    %v1567 = vand.u32 %v1566, 4294901760
    %1568 = vmatprep.subr.mxu0 %v1567
    %v1569 = vand.u32 %v1448, 4294901760
    %v1570 = vsub.f32 %v1448, %v1569
    %v1571 = vand.u32 %v1570, 4294901760
    %v1572 = vsub.f32 %v1570, %v1571
    %v1573 = vand.u32 %v1572, 4294901760
    %1574 = vmatpush1.xpose.msra.mxu0 %v1573
    %v1575 = vand.u32 %v1453, 4294901760
    %v1576 = vsub.f32 %v1453, %v1575
    %v1577 = vand.u32 %v1576, 4294901760
    %v1578 = vsub.f32 %v1576, %v1577
    %v1579 = vand.u32 %v1578, 4294901760
    %1580 = vmatprep.subr.mxu0 %v1579
    %v1581 = vand.u32 %v1452, 4294901760
    %v1582 = vsub.f32 %v1452, %v1581
    %v1583 = vand.u32 %v1582, 4294901760
    %v1584 = vsub.f32 %v1582, %v1583
    %v1585 = vand.u32 %v1584, 4294901760
    %1586 = vmatpush1.xpose.msra.mxu0 %v1585
    %1587 = vmatprep.subr.mxu0 0.0
    %1588 = vmatpush1.xpose.msra.mxu0 0.0
    %1589 = vmatprep.subr.mxu0 0.0
    %1590 = vmatpush1.xpose.msra.mxu0 0.0
    %1591 = vmatprep.subr.mxu0 0.0
    %1592 = vmatpush1.xpose.msra.mxu0 0.0
    %1593 = vmatprep.subr.mxu0 0.0
    %1594 = vmatpush1.xpose.msra.mxu0 0.0
    %1595 = vmatprep.subr.mxu0 0.0
    %1596 = vmatpush1.xpose.msra.mxu0 0.0
    %1597 = vmatprep.subr.mxu0 0.0
    %1598 = vmatpush1.xpose.msra.mxu0 0.0
    %1599 = vmatprep.subr.mxu0 0.0
    %1600 = vmatpush1.xpose.msra.mxu0 0.0
    %1601 = vmatprep.subr.mxu0 0.0
    %1602 = vmatpush1.xpose.msra.mxu0 0.0
    %1603 = vmatprep.subr.mxu0 0.0
    %1604 = vmatpush1.xpose.msra.mxu0 0.0
    %1605 = vmatprep.subr.mxu0 0.0
    %1606 = vmatpush1.xpose.msra.mxu0 0.0
    %1607 = vmatprep.subr.mxu0 0.0
    %1608 = vmatpush1.xpose.msra.mxu0 0.0
    %1609 = vmatprep.subr.mxu0 0.0
    %1610 = vmatpush1.xpose.msra.mxu0 0.0
    %1611 = vmatprep.subr.mxu0 0.0
    %1612 = vmatpush1.xpose.msra.mxu0 0.0
    %1613 = vmatprep.subr.mxu0 0.0
    %1614 = vmatpush1.xpose.msra.mxu0 0.0
    %1615 = vmatprep.subr.mxu0 0.0
    %1616 = vmatpush1.xpose.msra.mxu0 0.0
    %1617 = vmatprep.subr.mxu0 0.0
    %1618 = vmatpush1.xpose.msra.mxu0 0.0
    %1619 = vmatprep.subr.mxu0 0.0
    %1620 = vmatpush1.xpose.msra.mxu0 0.0
    %1621 = vmatprep.subr.mxu0 0.0
    %1622 = vmatpush1.xpose.msra.mxu0 0.0
    %1623 = vmatprep.subr.mxu0 0.0
    %1624 = vmatpush1.xpose.msra.mxu0 0.0
    %1625 = vmatprep.subr.mxu0 0.0
    %1626 = vmatpush1.xpose.msra.mxu0 0.0
    %1627 = vmatprep.subr.mxu0 0.0
    %1628 = vmatpush1.xpose.msra.mxu0 0.0
    %1629 = vmatprep.subr.mxu0 0.0
    %1630 = vmatpush1.xpose.msra.mxu0 0.0
    %1631 = vmatprep.subr.mxu0 0.0
    %1632 = vmatpush1.xpose.msra.mxu0 0.0
    %1633 = vmatprep.subr.mxu0 0.0
    %1634 = vmatpush1.xpose.msra.mxu0 0.0
    %1635 = vmatprep.subr.mxu0 0.0
    %1636 = vmatpush1.xpose.msra.mxu0 0.0
    %1637 = vmatprep.subr.mxu0 0.0
    %1638 = vmatpush1.xpose.msra.mxu0 0.0
    %1639 = vmatprep.subr.mxu0 0.0
    %1640 = vmatpush1.xpose.msra.mxu0 0.0
    %1641 = vmatprep.subr.mxu0 0.0
    %1642 = vmatpush1.xpose.msra.mxu0 0.0
    %1643 = vmatprep.subr.mxu0 0.0
    %1644 = vmatpush1.xpose.msra.mxu0 0.0
    %1645 = vmatprep.subr.mxu0 0.0
    %1646 = vmatpush1.xpose.msra.mxu0 0.0
    %1647 = vmatprep.mubr.f32.mxu0 %v1478
    %1648 = vmatmul.mubr.f32.gmra.mrb[0].mxu0 %v1477
    %v1649 = vpop.f32.mrb[0].mxu0
    %v1650 = vadd.f32 %v1560, %v1649
    %v1651 = vpop.f32.mrb[0].mxu0
    %1652 = vdwg.mxu0
    %v1653 = vand.u32 %v1449, 4294901760
    %v1654 = vsub.f32 %v1449, %v1653
    %1655 = vmatprep.subr.mxu0 %v1654
    %v1656 = vand.u32 %v1448, 4294901760
    %v1657 = vsub.f32 %v1448, %v1656
    %1658 = vmatpush1.xpose.msra.mxu0 %v1657
    %v1659 = vand.u32 %v1453, 4294901760
    %v1660 = vsub.f32 %v1453, %v1659
    %1661 = vmatprep.subr.mxu0 %v1660
    %v1662 = vand.u32 %v1452, 4294901760
    %v1663 = vsub.f32 %v1452, %v1662
    %1664 = vmatpush1.xpose.msra.mxu0 %v1663
    %1665 = vmatprep.subr.mxu0 0.0
    %1666 = vmatpush1.xpose.msra.mxu0 0.0
    %1667 = vmatprep.subr.mxu0 0.0
    %1668 = vmatpush1.xpose.msra.mxu0 0.0
    %1669 = vmatprep.subr.mxu0 0.0
    %1670 = vmatpush1.xpose.msra.mxu0 0.0
    %1671 = vmatprep.subr.mxu0 0.0
    %1672 = vmatpush1.xpose.msra.mxu0 0.0
    %1673 = vmatprep.subr.mxu0 0.0
    %1674 = vmatpush1.xpose.msra.mxu0 0.0
    %1675 = vmatprep.subr.mxu0 0.0
    %1676 = vmatpush1.xpose.msra.mxu0 0.0
    %1677 = vmatprep.subr.mxu0 0.0
    %1678 = vmatpush1.xpose.msra.mxu0 0.0
    %1679 = vmatprep.subr.mxu0 0.0
    %1680 = vmatpush1.xpose.msra.mxu0 0.0
    %1681 = vmatprep.subr.mxu0 0.0
    %1682 = vmatpush1.xpose.msra.mxu0 0.0
    %1683 = vmatprep.subr.mxu0 0.0
    %1684 = vmatpush1.xpose.msra.mxu0 0.0
    %1685 = vmatprep.subr.mxu0 0.0
    %1686 = vmatpush1.xpose.msra.mxu0 0.0
    %1687 = vmatprep.subr.mxu0 0.0
    %1688 = vmatpush1.xpose.msra.mxu0 0.0
    %1689 = vmatprep.subr.mxu0 0.0
    %1690 = vmatpush1.xpose.msra.mxu0 0.0
    %1691 = vmatprep.subr.mxu0 0.0
    %1692 = vmatpush1.xpose.msra.mxu0 0.0
    %1693 = vmatprep.subr.mxu0 0.0
    %1694 = vmatpush1.xpose.msra.mxu0 0.0
    %1695 = vmatprep.subr.mxu0 0.0
    %1696 = vmatpush1.xpose.msra.mxu0 0.0
    %1697 = vmatprep.subr.mxu0 0.0
    %1698 = vmatpush1.xpose.msra.mxu0 0.0
    %1699 = vmatprep.subr.mxu0 0.0
    %1700 = vmatpush1.xpose.msra.mxu0 0.0
    %1701 = vmatprep.subr.mxu0 0.0
    %1702 = vmatpush1.xpose.msra.mxu0 0.0
    %1703 = vmatprep.subr.mxu0 0.0
    %1704 = vmatpush1.xpose.msra.mxu0 0.0
    %1705 = vmatprep.subr.mxu0 0.0
    %1706 = vmatpush1.xpose.msra.mxu0 0.0
    %1707 = vmatprep.subr.mxu0 0.0
    %1708 = vmatpush1.xpose.msra.mxu0 0.0
    %1709 = vmatprep.subr.mxu0 0.0
    %1710 = vmatpush1.xpose.msra.mxu0 0.0
    %1711 = vmatprep.subr.mxu0 0.0
    %1712 = vmatpush1.xpose.msra.mxu0 0.0
    %1713 = vmatprep.subr.mxu0 0.0
    %1714 = vmatpush1.xpose.msra.mxu0 0.0
    %1715 = vmatprep.subr.mxu0 0.0
    %1716 = vmatpush1.xpose.msra.mxu0 0.0
    %1717 = vmatprep.subr.mxu0 0.0
    %1718 = vmatpush1.xpose.msra.mxu0 0.0
    %1719 = vmatprep.subr.mxu0 0.0
    %1720 = vmatpush1.xpose.msra.mxu0 0.0
    %1721 = vmatprep.subr.mxu0 0.0
    %1722 = vmatpush1.xpose.msra.mxu0 0.0
    %1723 = vmatprep.subr.mxu0 0.0
    %1724 = vmatpush1.xpose.msra.mxu0 0.0
    %v1725 = vsub.f32 %v1478, %v1478
    %1726 = vmatprep.mubr.f32.mxu0 %v1725
    %v1727 = vsub.f32 %v1477, %v1477
    %1728 = vmatmul.mubr.f32.gmra.mrb[0].mxu0 %v1727
    %v1729 = vpop.f32.mrb[0].mxu0
    %v1730 = vadd.f32 %v1650, %v1729
    %v1731 = vpop.f32.mrb[0].mxu0
    %1732 = vdwg.mxu0
    %v1733 = vand.u32 %v1449, 4294901760
    %1734 = vmatprep.subr.mxu0 %v1733
    %v1735 = vand.u32 %v1448, 4294901760
    %1736 = vmatpush1.xpose.msra.mxu0 %v1735
    %v1737 = vand.u32 %v1453, 4294901760
    %1738 = vmatprep.subr.mxu0 %v1737
    %v1739 = vand.u32 %v1452, 4294901760
    %1740 = vmatpush1.xpose.msra.mxu0 %v1739
    %1741 = vmatprep.subr.mxu0 0.0
    %1742 = vmatpush1.xpose.msra.mxu0 0.0
    %1743 = vmatprep.subr.mxu0 0.0
    %1744 = vmatpush1.xpose.msra.mxu0 0.0
    %1745 = vmatprep.subr.mxu0 0.0
    %1746 = vmatpush1.xpose.msra.mxu0 0.0
    %1747 = vmatprep.subr.mxu0 0.0
    %1748 = vmatpush1.xpose.msra.mxu0 0.0
    %1749 = vmatprep.subr.mxu0 0.0
    %1750 = vmatpush1.xpose.msra.mxu0 0.0
    %1751 = vmatprep.subr.mxu0 0.0
    %1752 = vmatpush1.xpose.msra.mxu0 0.0
    %1753 = vmatprep.subr.mxu0 0.0
    %1754 = vmatpush1.xpose.msra.mxu0 0.0
    %1755 = vmatprep.subr.mxu0 0.0
    %1756 = vmatpush1.xpose.msra.mxu0 0.0
    %1757 = vmatprep.subr.mxu0 0.0
    %1758 = vmatpush1.xpose.msra.mxu0 0.0
    %1759 = vmatprep.subr.mxu0 0.0
    %1760 = vmatpush1.xpose.msra.mxu0 0.0
    %1761 = vmatprep.subr.mxu0 0.0
    %1762 = vmatpush1.xpose.msra.mxu0 0.0
    %1763 = vmatprep.subr.mxu0 0.0
    %1764 = vmatpush1.xpose.msra.mxu0 0.0
    %1765 = vmatprep.subr.mxu0 0.0
    %1766 = vmatpush1.xpose.msra.mxu0 0.0
    %1767 = vmatprep.subr.mxu0 0.0
    %1768 = vmatpush1.xpose.msra.mxu0 0.0
    %1769 = vmatprep.subr.mxu0 0.0
    %1770 = vmatpush1.xpose.msra.mxu0 0.0
    %1771 = vmatprep.subr.mxu0 0.0
    %1772 = vmatpush1.xpose.msra.mxu0 0.0
    %1773 = vmatprep.subr.mxu0 0.0
    %1774 = vmatpush1.xpose.msra.mxu0 0.0
    %1775 = vmatprep.subr.mxu0 0.0
    %1776 = vmatpush1.xpose.msra.mxu0 0.0
    %1777 = vmatprep.subr.mxu0 0.0
    %1778 = vmatpush1.xpose.msra.mxu0 0.0
    %1779 = vmatprep.subr.mxu0 0.0
    %1780 = vmatpush1.xpose.msra.mxu0 0.0
    %1781 = vmatprep.subr.mxu0 0.0
    %1782 = vmatpush1.xpose.msra.mxu0 0.0
    %1783 = vmatprep.subr.mxu0 0.0
    %1784 = vmatpush1.xpose.msra.mxu0 0.0
    %1785 = vmatprep.subr.mxu0 0.0
    %1786 = vmatpush1.xpose.msra.mxu0 0.0
    %1787 = vmatprep.subr.mxu0 0.0
    %1788 = vmatpush1.xpose.msra.mxu0 0.0
    %1789 = vmatprep.subr.mxu0 0.0
    %1790 = vmatpush1.xpose.msra.mxu0 0.0
    %1791 = vmatprep.subr.mxu0 0.0
    %1792 = vmatpush1.xpose.msra.mxu0 0.0
    %1793 = vmatprep.subr.mxu0 0.0
    %1794 = vmatpush1.xpose.msra.mxu0 0.0
    %1795 = vmatprep.subr.mxu0 0.0
    %1796 = vmatpush1.xpose.msra.mxu0 0.0
    %1797 = vmatprep.subr.mxu0 0.0
    %1798 = vmatpush1.xpose.msra.mxu0 0.0
    %1799 = vmatprep.subr.mxu0 0.0
    %1800 = vmatpush1.xpose.msra.mxu0 0.0
    %v1801 = vsub.f32 %v1478, %v1478
    %v1802 = vand.u32 %v1801, 4294901760
    %1803 = vmatprep.mubr.f32.mxu0 %v1802
    %v1804 = vsub.f32 %v1477, %v1477
    %v1805 = vand.u32 %v1804, 4294901760
    %1806 = vmatmul.mubr.f32.gmra.mrb[0].mxu0 %v1805
    %v1807 = vpop.f32.mrb[0].mxu0
    %v1808 = vadd.f32 %v1730, %v1807
    %v1809 = vpop.f32.mrb[0].mxu0
    %1810 = vdwg.mxu0
    %v1811 = vand.u32 %v1449, 4294901760
    %v1812 = vsub.f32 %v1449, %v1811
    %v1813 = vand.u32 %v1812, 4294901760
    %1814 = vmatprep.subr.mxu0 %v1813
    %v1815 = vand.u32 %v1448, 4294901760
    %v1816 = vsub.f32 %v1448, %v1815
    %v1817 = vand.u32 %v1816, 4294901760
    %1818 = vmatpush1.xpose.msra.mxu0 %v1817
    %v1819 = vand.u32 %v1453, 4294901760
    %v1820 = vsub.f32 %v1453, %v1819
    %v1821 = vand.u32 %v1820, 4294901760
    %1822 = vmatprep.subr.mxu0 %v1821
    %v1823 = vand.u32 %v1452, 4294901760
    %v1824 = vsub.f32 %v1452, %v1823
    %v1825 = vand.u32 %v1824, 4294901760
    %1826 = vmatpush1.xpose.msra.mxu0 %v1825
    %1827 = vmatprep.subr.mxu0 0.0
    %1828 = vmatpush1.xpose.msra.mxu0 0.0
    %1829 = vmatprep.subr.mxu0 0.0
    %1830 = vmatpush1.xpose.msra.mxu0 0.0
    %1831 = vmatprep.subr.mxu0 0.0
    %1832 = vmatpush1.xpose.msra.mxu0 0.0
    %1833 = vmatprep.subr.mxu0 0.0
    %1834 = vmatpush1.xpose.msra.mxu0 0.0
    %1835 = vmatprep.subr.mxu0 0.0
    %1836 = vmatpush1.xpose.msra.mxu0 0.0
    %1837 = vmatprep.subr.mxu0 0.0
    %1838 = vmatpush1.xpose.msra.mxu0 0.0
    %1839 = vmatprep.subr.mxu0 0.0
    %1840 = vmatpush1.xpose.msra.mxu0 0.0
    %1841 = vmatprep.subr.mxu0 0.0
    %1842 = vmatpush1.xpose.msra.mxu0 0.0
    %1843 = vmatprep.subr.mxu0 0.0
    %1844 = vmatpush1.xpose.msra.mxu0 0.0
    %1845 = vmatprep.subr.mxu0 0.0
    %1846 = vmatpush1.xpose.msra.mxu0 0.0
    %1847 = vmatprep.subr.mxu0 0.0
    %1848 = vmatpush1.xpose.msra.mxu0 0.0
    %1849 = vmatprep.subr.mxu0 0.0
    %1850 = vmatpush1.xpose.msra.mxu0 0.0
    %1851 = vmatprep.subr.mxu0 0.0
    %1852 = vmatpush1.xpose.msra.mxu0 0.0
    %1853 = vmatprep.subr.mxu0 0.0
    %1854 = vmatpush1.xpose.msra.mxu0 0.0
    %1855 = vmatprep.subr.mxu0 0.0
    %1856 = vmatpush1.xpose.msra.mxu0 0.0
    %1857 = vmatprep.subr.mxu0 0.0
    %1858 = vmatpush1.xpose.msra.mxu0 0.0
    %1859 = vmatprep.subr.mxu0 0.0
    %1860 = vmatpush1.xpose.msra.mxu0 0.0
    %1861 = vmatprep.subr.mxu0 0.0
    %1862 = vmatpush1.xpose.msra.mxu0 0.0
    %1863 = vmatprep.subr.mxu0 0.0
    %1864 = vmatpush1.xpose.msra.mxu0 0.0
    %1865 = vmatprep.subr.mxu0 0.0
    %1866 = vmatpush1.xpose.msra.mxu0 0.0
    %1867 = vmatprep.subr.mxu0 0.0
    %1868 = vmatpush1.xpose.msra.mxu0 0.0
    %1869 = vmatprep.subr.mxu0 0.0
    %1870 = vmatpush1.xpose.msra.mxu0 0.0
    %1871 = vmatprep.subr.mxu0 0.0
    %1872 = vmatpush1.xpose.msra.mxu0 0.0
    %1873 = vmatprep.subr.mxu0 0.0
    %1874 = vmatpush1.xpose.msra.mxu0 0.0
    %1875 = vmatprep.subr.mxu0 0.0
    %1876 = vmatpush1.xpose.msra.mxu0 0.0
    %1877 = vmatprep.subr.mxu0 0.0
    %1878 = vmatpush1.xpose.msra.mxu0 0.0
    %1879 = vmatprep.subr.mxu0 0.0
    %1880 = vmatpush1.xpose.msra.mxu0 0.0
    %1881 = vmatprep.subr.mxu0 0.0
    %1882 = vmatpush1.xpose.msra.mxu0 0.0
    %1883 = vmatprep.subr.mxu0 0.0
    %1884 = vmatpush1.xpose.msra.mxu0 0.0
    %1885 = vmatprep.subr.mxu0 0.0
    %1886 = vmatpush1.xpose.msra.mxu0 0.0
    %1887 = vmatprep.mubr.f32.mxu0 %v1478
    %1888 = vmatmul.mubr.f32.gmra.mrb[0].mxu0 %v1477
    %v1889 = vpop.f32.mrb[0].mxu0
    %v1890 = vadd.f32 %v1808, %v1889
    %v1891 = vpop.f32.mrb[0].mxu0
    %1892 = vdwg.mxu0
    %v1893 = vand.u32 %v1449, 4294901760
    %1894 = vmatprep.subr.mxu0 %v1893
    %v1895 = vand.u32 %v1448, 4294901760
    %1896 = vmatpush1.xpose.msra.mxu0 %v1895
    %v1897 = vand.u32 %v1453, 4294901760
    %1898 = vmatprep.subr.mxu0 %v1897
    %v1899 = vand.u32 %v1452, 4294901760
    %1900 = vmatpush1.xpose.msra.mxu0 %v1899
    %1901 = vmatprep.subr.mxu0 0.0
    %1902 = vmatpush1.xpose.msra.mxu0 0.0
    %1903 = vmatprep.subr.mxu0 0.0
    %1904 = vmatpush1.xpose.msra.mxu0 0.0
    %1905 = vmatprep.subr.mxu0 0.0
    %1906 = vmatpush1.xpose.msra.mxu0 0.0
    %1907 = vmatprep.subr.mxu0 0.0
    %1908 = vmatpush1.xpose.msra.mxu0 0.0
    %1909 = vmatprep.subr.mxu0 0.0
    %1910 = vmatpush1.xpose.msra.mxu0 0.0
    %1911 = vmatprep.subr.mxu0 0.0
    %1912 = vmatpush1.xpose.msra.mxu0 0.0
    %1913 = vmatprep.subr.mxu0 0.0
    %1914 = vmatpush1.xpose.msra.mxu0 0.0
    %1915 = vmatprep.subr.mxu0 0.0
    %1916 = vmatpush1.xpose.msra.mxu0 0.0
    %1917 = vmatprep.subr.mxu0 0.0
    %1918 = vmatpush1.xpose.msra.mxu0 0.0
    %1919 = vmatprep.subr.mxu0 0.0
    %1920 = vmatpush1.xpose.msra.mxu0 0.0
    %1921 = vmatprep.subr.mxu0 0.0
    %1922 = vmatpush1.xpose.msra.mxu0 0.0
    %1923 = vmatprep.subr.mxu0 0.0
    %1924 = vmatpush1.xpose.msra.mxu0 0.0
    %1925 = vmatprep.subr.mxu0 0.0
    %1926 = vmatpush1.xpose.msra.mxu0 0.0
    %1927 = vmatprep.subr.mxu0 0.0
    %1928 = vmatpush1.xpose.msra.mxu0 0.0
    %1929 = vmatprep.subr.mxu0 0.0
    %1930 = vmatpush1.xpose.msra.mxu0 0.0
    %1931 = vmatprep.subr.mxu0 0.0
    %1932 = vmatpush1.xpose.msra.mxu0 0.0
    %1933 = vmatprep.subr.mxu0 0.0
    %1934 = vmatpush1.xpose.msra.mxu0 0.0
    %1935 = vmatprep.subr.mxu0 0.0
    %1936 = vmatpush1.xpose.msra.mxu0 0.0
    %1937 = vmatprep.subr.mxu0 0.0
    %1938 = vmatpush1.xpose.msra.mxu0 0.0
    %1939 = vmatprep.subr.mxu0 0.0
    %1940 = vmatpush1.xpose.msra.mxu0 0.0
    %1941 = vmatprep.subr.mxu0 0.0
    %1942 = vmatpush1.xpose.msra.mxu0 0.0
    %1943 = vmatprep.subr.mxu0 0.0
    %1944 = vmatpush1.xpose.msra.mxu0 0.0
    %1945 = vmatprep.subr.mxu0 0.0
    %1946 = vmatpush1.xpose.msra.mxu0 0.0
    %1947 = vmatprep.subr.mxu0 0.0
    %1948 = vmatpush1.xpose.msra.mxu0 0.0
    %1949 = vmatprep.subr.mxu0 0.0
    %1950 = vmatpush1.xpose.msra.mxu0 0.0
    %1951 = vmatprep.subr.mxu0 0.0
    %1952 = vmatpush1.xpose.msra.mxu0 0.0
    %1953 = vmatprep.subr.mxu0 0.0
    %1954 = vmatpush1.xpose.msra.mxu0 0.0
    %1955 = vmatprep.subr.mxu0 0.0
    %1956 = vmatpush1.xpose.msra.mxu0 0.0
    %1957 = vmatprep.subr.mxu0 0.0
    %1958 = vmatpush1.xpose.msra.mxu0 0.0
    %1959 = vmatprep.subr.mxu0 0.0
    %1960 = vmatpush1.xpose.msra.mxu0 0.0
    %1961 = vmatprep.mubr.f32.mxu0 %v1478
    %1962 = vmatmul.mubr.f32.gmra.mrb[0].mxu0 %v1477
    %v1963 = vpop.f32.mrb[0].mxu0
    %v1964 = vadd.f32 %v1890, %v1963
    %v1965 = vpop.f32.mrb[0].mxu0
    %1966 = vdwg.mxu0
    %v1967 = vand.u32 %v1451, 4294901760
    %1968 = vmatprep.subr.mxu0 %v1967
    %v1969 = vand.u32 %v1450, 4294901760
    %1970 = vmatpush1.xpose.msra.mxu0 %v1969
    %v1971 = vand.u32 %v1455, 4294901760
    %1972 = vmatprep.subr.mxu0 %v1971
    %v1973 = vand.u32 %v1454, 4294901760
    %1974 = vmatpush1.xpose.msra.mxu0 %v1973
    %1975 = vmatprep.subr.mxu0 0.0
    %1976 = vmatpush1.xpose.msra.mxu0 0.0
    %1977 = vmatprep.subr.mxu0 0.0
    %1978 = vmatpush1.xpose.msra.mxu0 0.0
    %1979 = vmatprep.subr.mxu0 0.0
    %1980 = vmatpush1.xpose.msra.mxu0 0.0
    %1981 = vmatprep.subr.mxu0 0.0
    %1982 = vmatpush1.xpose.msra.mxu0 0.0
    %1983 = vmatprep.subr.mxu0 0.0
    %1984 = vmatpush1.xpose.msra.mxu0 0.0
    %1985 = vmatprep.subr.mxu0 0.0
    %1986 = vmatpush1.xpose.msra.mxu0 0.0
    %1987 = vmatprep.subr.mxu0 0.0
    %1988 = vmatpush1.xpose.msra.mxu0 0.0
    %1989 = vmatprep.subr.mxu0 0.0
    %1990 = vmatpush1.xpose.msra.mxu0 0.0
    %1991 = vmatprep.subr.mxu0 0.0
    %1992 = vmatpush1.xpose.msra.mxu0 0.0
    %1993 = vmatprep.subr.mxu0 0.0
    %1994 = vmatpush1.xpose.msra.mxu0 0.0
    %1995 = vmatprep.subr.mxu0 0.0
    %1996 = vmatpush1.xpose.msra.mxu0 0.0
    %1997 = vmatprep.subr.mxu0 0.0
    %1998 = vmatpush1.xpose.msra.mxu0 0.0
    %1999 = vmatprep.subr.mxu0 0.0
    %2000 = vmatpush1.xpose.msra.mxu0 0.0
    %2001 = vmatprep.subr.mxu0 0.0
    %2002 = vmatpush1.xpose.msra.mxu0 0.0
    %2003 = vmatprep.subr.mxu0 0.0
    %2004 = vmatpush1.xpose.msra.mxu0 0.0
    %2005 = vmatprep.subr.mxu0 0.0
    %2006 = vmatpush1.xpose.msra.mxu0 0.0
    %2007 = vmatprep.subr.mxu0 0.0
    %2008 = vmatpush1.xpose.msra.mxu0 0.0
    %2009 = vmatprep.subr.mxu0 0.0
    %2010 = vmatpush1.xpose.msra.mxu0 0.0
    %2011 = vmatprep.subr.mxu0 0.0
    %2012 = vmatpush1.xpose.msra.mxu0 0.0
    %2013 = vmatprep.subr.mxu0 0.0
    %2014 = vmatpush1.xpose.msra.mxu0 0.0
    %2015 = vmatprep.subr.mxu0 0.0
    %2016 = vmatpush1.xpose.msra.mxu0 0.0
    %2017 = vmatprep.subr.mxu0 0.0
    %2018 = vmatpush1.xpose.msra.mxu0 0.0
    %2019 = vmatprep.subr.mxu0 0.0
    %2020 = vmatpush1.xpose.msra.mxu0 0.0
    %2021 = vmatprep.subr.mxu0 0.0
    %2022 = vmatpush1.xpose.msra.mxu0 0.0
    %2023 = vmatprep.subr.mxu0 0.0
    %2024 = vmatpush1.xpose.msra.mxu0 0.0
    %2025 = vmatprep.subr.mxu0 0.0
    %2026 = vmatpush1.xpose.msra.mxu0 0.0
    %2027 = vmatprep.subr.mxu0 0.0
    %2028 = vmatpush1.xpose.msra.mxu0 0.0
    %2029 = vmatprep.subr.mxu0 0.0
    %2030 = vmatpush1.xpose.msra.mxu0 0.0
    %2031 = vmatprep.subr.mxu0 0.0
    %2032 = vmatpush1.xpose.msra.mxu0 0.0
    %2033 = vmatprep.subr.mxu0 0.0
    %2034 = vmatpush1.xpose.msra.mxu0 0.0
    %v2035 = vsub.f32 %v1480, %v1480
    %v2036 = vand.u32 %v2035, 4294901760
    %v2037 = vsub.f32 %v2035, %v2036
    %v2038 = vand.u32 %v2037, 4294901760
    %2039 = vmatprep.mubr.f32.mxu0 %v2038
    %v2040 = vsub.f32 %v1479, %v1479
    %v2041 = vand.u32 %v2040, 4294901760
    %v2042 = vsub.f32 %v2040, %v2041
    %v2043 = vand.u32 %v2042, 4294901760
    %2044 = vmatmul.mubr.f32.gmra.mrb[0].mxu0 %v2043
    %v2045 = vpop.f32.mrb[0].mxu0
    %v2046 = vadd.f32 %v1964, %v2045
    %v2047 = vpop.f32.mrb[0].mxu0
    %2048 = vdwg.mxu0
    %v2049 = vand.u32 %v1451, 4294901760
    %v2050 = vsub.f32 %v1451, %v2049
    %v2051 = vand.u32 %v2050, 4294901760
    %v2052 = vsub.f32 %v2050, %v2051
    %v2053 = vand.u32 %v2052, 4294901760
    %2054 = vmatprep.subr.mxu0 %v2053
    %v2055 = vand.u32 %v1450, 4294901760
    %v2056 = vsub.f32 %v1450, %v2055
    %v2057 = vand.u32 %v2056, 4294901760
    %v2058 = vsub.f32 %v2056, %v2057
    %v2059 = vand.u32 %v2058, 4294901760
    %2060 = vmatpush1.xpose.msra.mxu0 %v2059
    %v2061 = vand.u32 %v1455, 4294901760
    %v2062 = vsub.f32 %v1455, %v2061
    %v2063 = vand.u32 %v2062, 4294901760
    %v2064 = vsub.f32 %v2062, %v2063
    %v2065 = vand.u32 %v2064, 4294901760
    %2066 = vmatprep.subr.mxu0 %v2065
    %v2067 = vand.u32 %v1454, 4294901760
    %v2068 = vsub.f32 %v1454, %v2067
    %v2069 = vand.u32 %v2068, 4294901760
    %v2070 = vsub.f32 %v2068, %v2069
    %v2071 = vand.u32 %v2070, 4294901760
    %2072 = vmatpush1.xpose.msra.mxu0 %v2071
    %2073 = vmatprep.subr.mxu0 0.0
    %2074 = vmatpush1.xpose.msra.mxu0 0.0
    %2075 = vmatprep.subr.mxu0 0.0
    %2076 = vmatpush1.xpose.msra.mxu0 0.0
    %2077 = vmatprep.subr.mxu0 0.0
    %2078 = vmatpush1.xpose.msra.mxu0 0.0
    %2079 = vmatprep.subr.mxu0 0.0
    %2080 = vmatpush1.xpose.msra.mxu0 0.0
    %2081 = vmatprep.subr.mxu0 0.0
    %2082 = vmatpush1.xpose.msra.mxu0 0.0
    %2083 = vmatprep.subr.mxu0 0.0
    %2084 = vmatpush1.xpose.msra.mxu0 0.0
    %2085 = vmatprep.subr.mxu0 0.0
    %2086 = vmatpush1.xpose.msra.mxu0 0.0
    %2087 = vmatprep.subr.mxu0 0.0
    %2088 = vmatpush1.xpose.msra.mxu0 0.0
    %2089 = vmatprep.subr.mxu0 0.0
    %2090 = vmatpush1.xpose.msra.mxu0 0.0
    %2091 = vmatprep.subr.mxu0 0.0
    %2092 = vmatpush1.xpose.msra.mxu0 0.0
    %2093 = vmatprep.subr.mxu0 0.0
    %2094 = vmatpush1.xpose.msra.mxu0 0.0
    %2095 = vmatprep.subr.mxu0 0.0
    %2096 = vmatpush1.xpose.msra.mxu0 0.0
    %2097 = vmatprep.subr.mxu0 0.0
    %2098 = vmatpush1.xpose.msra.mxu0 0.0
    %2099 = vmatprep.subr.mxu0 0.0
    %2100 = vmatpush1.xpose.msra.mxu0 0.0
    %2101 = vmatprep.subr.mxu0 0.0
    %2102 = vmatpush1.xpose.msra.mxu0 0.0
    %2103 = vmatprep.subr.mxu0 0.0
    %2104 = vmatpush1.xpose.msra.mxu0 0.0
    %2105 = vmatprep.subr.mxu0 0.0
    %2106 = vmatpush1.xpose.msra.mxu0 0.0
    %2107 = vmatprep.subr.mxu0 0.0
    %2108 = vmatpush1.xpose.msra.mxu0 0.0
    %2109 = vmatprep.subr.mxu0 0.0
    %2110 = vmatpush1.xpose.msra.mxu0 0.0
    %2111 = vmatprep.subr.mxu0 0.0
    %2112 = vmatpush1.xpose.msra.mxu0 0.0
    %2113 = vmatprep.subr.mxu0 0.0
    %2114 = vmatpush1.xpose.msra.mxu0 0.0
    %2115 = vmatprep.subr.mxu0 0.0
    %2116 = vmatpush1.xpose.msra.mxu0 0.0
    %2117 = vmatprep.subr.mxu0 0.0
    %2118 = vmatpush1.xpose.msra.mxu0 0.0
    %2119 = vmatprep.subr.mxu0 0.0
    %2120 = vmatpush1.xpose.msra.mxu0 0.0
    %2121 = vmatprep.subr.mxu0 0.0
    %2122 = vmatpush1.xpose.msra.mxu0 0.0
    %2123 = vmatprep.subr.mxu0 0.0
    %2124 = vmatpush1.xpose.msra.mxu0 0.0
    %2125 = vmatprep.subr.mxu0 0.0
    %2126 = vmatpush1.xpose.msra.mxu0 0.0
    %2127 = vmatprep.subr.mxu0 0.0
    %2128 = vmatpush1.xpose.msra.mxu0 0.0
    %2129 = vmatprep.subr.mxu0 0.0
    %2130 = vmatpush1.xpose.msra.mxu0 0.0
    %2131 = vmatprep.subr.mxu0 0.0
    %2132 = vmatpush1.xpose.msra.mxu0 0.0
    %2133 = vmatprep.mubr.f32.mxu0 %v1480
    %2134 = vmatmul.mubr.f32.gmra.mrb[0].mxu0 %v1479
    %v2135 = vpop.f32.mrb[0].mxu0
    %v2136 = vadd.f32 %v2046, %v2135
    %v2137 = vpop.f32.mrb[0].mxu0
    %2138 = vdwg.mxu0
    %v2139 = vand.u32 %v1451, 4294901760
    %v2140 = vsub.f32 %v1451, %v2139
    %2141 = vmatprep.subr.mxu0 %v2140
    %v2142 = vand.u32 %v1450, 4294901760
    %v2143 = vsub.f32 %v1450, %v2142
    %2144 = vmatpush1.xpose.msra.mxu0 %v2143
    %v2145 = vand.u32 %v1455, 4294901760
    %v2146 = vsub.f32 %v1455, %v2145
    %2147 = vmatprep.subr.mxu0 %v2146
    %v2148 = vand.u32 %v1454, 4294901760
    %v2149 = vsub.f32 %v1454, %v2148
    %2150 = vmatpush1.xpose.msra.mxu0 %v2149
    %2151 = vmatprep.subr.mxu0 0.0
    %2152 = vmatpush1.xpose.msra.mxu0 0.0
    %2153 = vmatprep.subr.mxu0 0.0
    %2154 = vmatpush1.xpose.msra.mxu0 0.0
    %2155 = vmatprep.subr.mxu0 0.0
    %2156 = vmatpush1.xpose.msra.mxu0 0.0
    %2157 = vmatprep.subr.mxu0 0.0
    %2158 = vmatpush1.xpose.msra.mxu0 0.0
    %2159 = vmatprep.subr.mxu0 0.0
    %2160 = vmatpush1.xpose.msra.mxu0 0.0
    %2161 = vmatprep.subr.mxu0 0.0
    %2162 = vmatpush1.xpose.msra.mxu0 0.0
    %2163 = vmatprep.subr.mxu0 0.0
    %2164 = vmatpush1.xpose.msra.mxu0 0.0
    %2165 = vmatprep.subr.mxu0 0.0
    %2166 = vmatpush1.xpose.msra.mxu0 0.0
    %2167 = vmatprep.subr.mxu0 0.0
    %2168 = vmatpush1.xpose.msra.mxu0 0.0
    %2169 = vmatprep.subr.mxu0 0.0
    %2170 = vmatpush1.xpose.msra.mxu0 0.0
    %2171 = vmatprep.subr.mxu0 0.0
    %2172 = vmatpush1.xpose.msra.mxu0 0.0
    %2173 = vmatprep.subr.mxu0 0.0
    %2174 = vmatpush1.xpose.msra.mxu0 0.0
    %2175 = vmatprep.subr.mxu0 0.0
    %2176 = vmatpush1.xpose.msra.mxu0 0.0
    %2177 = vmatprep.subr.mxu0 0.0
    %2178 = vmatpush1.xpose.msra.mxu0 0.0
    %2179 = vmatprep.subr.mxu0 0.0
    %2180 = vmatpush1.xpose.msra.mxu0 0.0
    %2181 = vmatprep.subr.mxu0 0.0
    %2182 = vmatpush1.xpose.msra.mxu0 0.0
    %2183 = vmatprep.subr.mxu0 0.0
    %2184 = vmatpush1.xpose.msra.mxu0 0.0
    %2185 = vmatprep.subr.mxu0 0.0
    %2186 = vmatpush1.xpose.msra.mxu0 0.0
    %2187 = vmatprep.subr.mxu0 0.0
    %2188 = vmatpush1.xpose.msra.mxu0 0.0
    %2189 = vmatprep.subr.mxu0 0.0
    %2190 = vmatpush1.xpose.msra.mxu0 0.0
    %2191 = vmatprep.subr.mxu0 0.0
    %2192 = vmatpush1.xpose.msra.mxu0 0.0
    %2193 = vmatprep.subr.mxu0 0.0
    %2194 = vmatpush1.xpose.msra.mxu0 0.0
    %2195 = vmatprep.subr.mxu0 0.0
    %2196 = vmatpush1.xpose.msra.mxu0 0.0
    %2197 = vmatprep.subr.mxu0 0.0
    %2198 = vmatpush1.xpose.msra.mxu0 0.0
    %2199 = vmatprep.subr.mxu0 0.0
    %2200 = vmatpush1.xpose.msra.mxu0 0.0
    %2201 = vmatprep.subr.mxu0 0.0
    %2202 = vmatpush1.xpose.msra.mxu0 0.0
    %2203 = vmatprep.subr.mxu0 0.0
    %2204 = vmatpush1.xpose.msra.mxu0 0.0
    %2205 = vmatprep.subr.mxu0 0.0
    %2206 = vmatpush1.xpose.msra.mxu0 0.0
    %2207 = vmatprep.subr.mxu0 0.0
    %2208 = vmatpush1.xpose.msra.mxu0 0.0
    %2209 = vmatprep.subr.mxu0 0.0
    %2210 = vmatpush1.xpose.msra.mxu0 0.0
    %v2211 = vsub.f32 %v1480, %v1480
    %2212 = vmatprep.mubr.f32.mxu0 %v2211
    %v2213 = vsub.f32 %v1479, %v1479
    %2214 = vmatmul.mubr.f32.gmra.mrb[0].mxu0 %v2213
    %v2215 = vpop.f32.mrb[0].mxu0
    %v2216 = vadd.f32 %v2136, %v2215
    %v2217 = vpop.f32.mrb[0].mxu0
    %2218 = vdwg.mxu0
    %v2219 = vand.u32 %v1451, 4294901760
    %2220 = vmatprep.subr.mxu0 %v2219
    %v2221 = vand.u32 %v1450, 4294901760
    %2222 = vmatpush1.xpose.msra.mxu0 %v2221
    %v2223 = vand.u32 %v1455, 4294901760
    %2224 = vmatprep.subr.mxu0 %v2223
    %v2225 = vand.u32 %v1454, 4294901760
    %2226 = vmatpush1.xpose.msra.mxu0 %v2225
    %2227 = vmatprep.subr.mxu0 0.0
    %2228 = vmatpush1.xpose.msra.mxu0 0.0
    %2229 = vmatprep.subr.mxu0 0.0
    %2230 = vmatpush1.xpose.msra.mxu0 0.0
    %2231 = vmatprep.subr.mxu0 0.0
    %2232 = vmatpush1.xpose.msra.mxu0 0.0
    %2233 = vmatprep.subr.mxu0 0.0
    %2234 = vmatpush1.xpose.msra.mxu0 0.0
    %2235 = vmatprep.subr.mxu0 0.0
    %2236 = vmatpush1.xpose.msra.mxu0 0.0
    %2237 = vmatprep.subr.mxu0 0.0
    %2238 = vmatpush1.xpose.msra.mxu0 0.0
    %2239 = vmatprep.subr.mxu0 0.0
    %2240 = vmatpush1.xpose.msra.mxu0 0.0
    %2241 = vmatprep.subr.mxu0 0.0
    %2242 = vmatpush1.xpose.msra.mxu0 0.0
    %2243 = vmatprep.subr.mxu0 0.0
    %2244 = vmatpush1.xpose.msra.mxu0 0.0
    %2245 = vmatprep.subr.mxu0 0.0
    %2246 = vmatpush1.xpose.msra.mxu0 0.0
    %2247 = vmatprep.subr.mxu0 0.0
    %2248 = vmatpush1.xpose.msra.mxu0 0.0
    %2249 = vmatprep.subr.mxu0 0.0
    %2250 = vmatpush1.xpose.msra.mxu0 0.0
    %2251 = vmatprep.subr.mxu0 0.0
    %2252 = vmatpush1.xpose.msra.mxu0 0.0
    %2253 = vmatprep.subr.mxu0 0.0
    %2254 = vmatpush1.xpose.msra.mxu0 0.0
    %2255 = vmatprep.subr.mxu0 0.0
    %2256 = vmatpush1.xpose.msra.mxu0 0.0
    %2257 = vmatprep.subr.mxu0 0.0
    %2258 = vmatpush1.xpose.msra.mxu0 0.0
    %2259 = vmatprep.subr.mxu0 0.0
    %2260 = vmatpush1.xpose.msra.mxu0 0.0
    %2261 = vmatprep.subr.mxu0 0.0
    %2262 = vmatpush1.xpose.msra.mxu0 0.0
    %2263 = vmatprep.subr.mxu0 0.0
    %2264 = vmatpush1.xpose.msra.mxu0 0.0
    %2265 = vmatprep.subr.mxu0 0.0
    %2266 = vmatpush1.xpose.msra.mxu0 0.0
    %2267 = vmatprep.subr.mxu0 0.0
    %2268 = vmatpush1.xpose.msra.mxu0 0.0
    %2269 = vmatprep.subr.mxu0 0.0
    %2270 = vmatpush1.xpose.msra.mxu0 0.0
    %2271 = vmatprep.subr.mxu0 0.0
    %2272 = vmatpush1.xpose.msra.mxu0 0.0
    %2273 = vmatprep.subr.mxu0 0.0
    %2274 = vmatpush1.xpose.msra.mxu0 0.0
    %2275 = vmatprep.subr.mxu0 0.0
    %2276 = vmatpush1.xpose.msra.mxu0 0.0
    %2277 = vmatprep.subr.mxu0 0.0
    %2278 = vmatpush1.xpose.msra.mxu0 0.0
    %2279 = vmatprep.subr.mxu0 0.0
    %2280 = vmatpush1.xpose.msra.mxu0 0.0
    %2281 = vmatprep.subr.mxu0 0.0
    %2282 = vmatpush1.xpose.msra.mxu0 0.0
    %2283 = vmatprep.subr.mxu0 0.0
    %2284 = vmatpush1.xpose.msra.mxu0 0.0
    %2285 = vmatprep.subr.mxu0 0.0
    %2286 = vmatpush1.xpose.msra.mxu0 0.0
    %v2287 = vsub.f32 %v1480, %v1480
    %v2288 = vand.u32 %v2287, 4294901760
    %2289 = vmatprep.mubr.f32.mxu0 %v2288
    %v2290 = vsub.f32 %v1479, %v1479
    %v2291 = vand.u32 %v2290, 4294901760
    %2292 = vmatmul.mubr.f32.gmra.mrb[0].mxu0 %v2291
    %v2293 = vpop.f32.mrb[0].mxu0
    %v2294 = vadd.f32 %v2216, %v2293
    %v2295 = vpop.f32.mrb[0].mxu0
    %2296 = vdwg.mxu0
    %v2297 = vand.u32 %v1451, 4294901760
    %v2298 = vsub.f32 %v1451, %v2297
    %v2299 = vand.u32 %v2298, 4294901760
    %2300 = vmatprep.subr.mxu0 %v2299
    %v2301 = vand.u32 %v1450, 4294901760
    %v2302 = vsub.f32 %v1450, %v2301
    %v2303 = vand.u32 %v2302, 4294901760
    %2304 = vmatpush1.xpose.msra.mxu0 %v2303
    %v2305 = vand.u32 %v1455, 4294901760
    %v2306 = vsub.f32 %v1455, %v2305
    %v2307 = vand.u32 %v2306, 4294901760
    %2308 = vmatprep.subr.mxu0 %v2307
    %v2309 = vand.u32 %v1454, 4294901760
    %v2310 = vsub.f32 %v1454, %v2309
    %v2311 = vand.u32 %v2310, 4294901760
    %2312 = vmatpush1.xpose.msra.mxu0 %v2311
    %2313 = vmatprep.subr.mxu0 0.0
    %2314 = vmatpush1.xpose.msra.mxu0 0.0
    %2315 = vmatprep.subr.mxu0 0.0
    %2316 = vmatpush1.xpose.msra.mxu0 0.0
    %2317 = vmatprep.subr.mxu0 0.0
    %2318 = vmatpush1.xpose.msra.mxu0 0.0
    %2319 = vmatprep.subr.mxu0 0.0
    %2320 = vmatpush1.xpose.msra.mxu0 0.0
    %2321 = vmatprep.subr.mxu0 0.0
    %2322 = vmatpush1.xpose.msra.mxu0 0.0
    %2323 = vmatprep.subr.mxu0 0.0
    %2324 = vmatpush1.xpose.msra.mxu0 0.0
    %2325 = vmatprep.subr.mxu0 0.0
    %2326 = vmatpush1.xpose.msra.mxu0 0.0
    %2327 = vmatprep.subr.mxu0 0.0
    %2328 = vmatpush1.xpose.msra.mxu0 0.0
    %2329 = vmatprep.subr.mxu0 0.0
    %2330 = vmatpush1.xpose.msra.mxu0 0.0
    %2331 = vmatprep.subr.mxu0 0.0
    %2332 = vmatpush1.xpose.msra.mxu0 0.0
    %2333 = vmatprep.subr.mxu0 0.0
    %2334 = vmatpush1.xpose.msra.mxu0 0.0
    %2335 = vmatprep.subr.mxu0 0.0
    %2336 = vmatpush1.xpose.msra.mxu0 0.0
    %2337 = vmatprep.subr.mxu0 0.0
    %2338 = vmatpush1.xpose.msra.mxu0 0.0
    %2339 = vmatprep.subr.mxu0 0.0
    %2340 = vmatpush1.xpose.msra.mxu0 0.0
    %2341 = vmatprep.subr.mxu0 0.0
    %2342 = vmatpush1.xpose.msra.mxu0 0.0
    %2343 = vmatprep.subr.mxu0 0.0
    %2344 = vmatpush1.xpose.msra.mxu0 0.0
    %2345 = vmatprep.subr.mxu0 0.0
    %2346 = vmatpush1.xpose.msra.mxu0 0.0
    %2347 = vmatprep.subr.mxu0 0.0
    %2348 = vmatpush1.xpose.msra.mxu0 0.0
    %2349 = vmatprep.subr.mxu0 0.0
    %2350 = vmatpush1.xpose.msra.mxu0 0.0
    %2351 = vmatprep.subr.mxu0 0.0
    %2352 = vmatpush1.xpose.msra.mxu0 0.0
    %2353 = vmatprep.subr.mxu0 0.0
    %2354 = vmatpush1.xpose.msra.mxu0 0.0
    %2355 = vmatprep.subr.mxu0 0.0
    %2356 = vmatpush1.xpose.msra.mxu0 0.0
    %2357 = vmatprep.subr.mxu0 0.0
    %2358 = vmatpush1.xpose.msra.mxu0 0.0
    %2359 = vmatprep.subr.mxu0 0.0
    %2360 = vmatpush1.xpose.msra.mxu0 0.0
    %2361 = vmatprep.subr.mxu0 0.0
    %2362 = vmatpush1.xpose.msra.mxu0 0.0
    %2363 = vmatprep.subr.mxu0 0.0
    %2364 = vmatpush1.xpose.msra.mxu0 0.0
    %2365 = vmatprep.subr.mxu0 0.0
    %2366 = vmatpush1.xpose.msra.mxu0 0.0
    %2367 = vmatprep.subr.mxu0 0.0
    %2368 = vmatpush1.xpose.msra.mxu0 0.0
    %2369 = vmatprep.subr.mxu0 0.0
    %2370 = vmatpush1.xpose.msra.mxu0 0.0
    %2371 = vmatprep.subr.mxu0 0.0
    %2372 = vmatpush1.xpose.msra.mxu0 0.0
    %2373 = vmatprep.mubr.f32.mxu0 %v1480
    %2374 = vmatmul.mubr.f32.gmra.mrb[0].mxu0 %v1479
    %v2375 = vpop.f32.mrb[0].mxu0
    %v2376 = vadd.f32 %v2294, %v2375
    %v2377 = vpop.f32.mrb[0].mxu0
    %2378 = vdwg.mxu0
    %v2379 = vand.u32 %v1451, 4294901760
    %2380 = vmatprep.subr.mxu0 %v2379
    %v2381 = vand.u32 %v1450, 4294901760
    %2382 = vmatpush1.xpose.msra.mxu0 %v2381
    %v2383 = vand.u32 %v1455, 4294901760
    %2384 = vmatprep.subr.mxu0 %v2383
    %v2385 = vand.u32 %v1454, 4294901760
    %2386 = vmatpush1.xpose.msra.mxu0 %v2385
    %2387 = vmatprep.subr.mxu0 0.0
    %2388 = vmatpush1.xpose.msra.mxu0 0.0
    %2389 = vmatprep.subr.mxu0 0.0
    %2390 = vmatpush1.xpose.msra.mxu0 0.0
    %2391 = vmatprep.subr.mxu0 0.0
    %2392 = vmatpush1.xpose.msra.mxu0 0.0
    %2393 = vmatprep.subr.mxu0 0.0
    %2394 = vmatpush1.xpose.msra.mxu0 0.0
    %2395 = vmatprep.subr.mxu0 0.0
    %2396 = vmatpush1.xpose.msra.mxu0 0.0
    %2397 = vmatprep.subr.mxu0 0.0
    %2398 = vmatpush1.xpose.msra.mxu0 0.0
    %2399 = vmatprep.subr.mxu0 0.0
    %2400 = vmatpush1.xpose.msra.mxu0 0.0
    %2401 = vmatprep.subr.mxu0 0.0
    %2402 = vmatpush1.xpose.msra.mxu0 0.0
    %2403 = vmatprep.subr.mxu0 0.0
    %2404 = vmatpush1.xpose.msra.mxu0 0.0
    %2405 = vmatprep.subr.mxu0 0.0
    %2406 = vmatpush1.xpose.msra.mxu0 0.0
    %2407 = vmatprep.subr.mxu0 0.0
    %2408 = vmatpush1.xpose.msra.mxu0 0.0
    %2409 = vmatprep.subr.mxu0 0.0
    %2410 = vmatpush1.xpose.msra.mxu0 0.0
    %2411 = vmatprep.subr.mxu0 0.0
    %2412 = vmatpush1.xpose.msra.mxu0 0.0
    %2413 = vmatprep.subr.mxu0 0.0
    %2414 = vmatpush1.xpose.msra.mxu0 0.0
    %2415 = vmatprep.subr.mxu0 0.0
    %2416 = vmatpush1.xpose.msra.mxu0 0.0
    %2417 = vmatprep.subr.mxu0 0.0
    %2418 = vmatpush1.xpose.msra.mxu0 0.0
    %2419 = vmatprep.subr.mxu0 0.0
    %2420 = vmatpush1.xpose.msra.mxu0 0.0
    %2421 = vmatprep.subr.mxu0 0.0
    %2422 = vmatpush1.xpose.msra.mxu0 0.0
    %2423 = vmatprep.subr.mxu0 0.0
    %2424 = vmatpush1.xpose.msra.mxu0 0.0
    %2425 = vmatprep.subr.mxu0 0.0
    %2426 = vmatpush1.xpose.msra.mxu0 0.0
    %2427 = vmatprep.subr.mxu0 0.0
    %2428 = vmatpush1.xpose.msra.mxu0 0.0
    %2429 = vmatprep.subr.mxu0 0.0
    %2430 = vmatpush1.xpose.msra.mxu0 0.0
    %2431 = vmatprep.subr.mxu0 0.0
    %2432 = vmatpush1.xpose.msra.mxu0 0.0
    %2433 = vmatprep.subr.mxu0 0.0
    %2434 = vmatpush1.xpose.msra.mxu0 0.0
    %2435 = vmatprep.subr.mxu0 0.0
    %2436 = vmatpush1.xpose.msra.mxu0 0.0
    %2437 = vmatprep.subr.mxu0 0.0
    %2438 = vmatpush1.xpose.msra.mxu0 0.0
    %2439 = vmatprep.subr.mxu0 0.0
    %2440 = vmatpush1.xpose.msra.mxu0 0.0
    %2441 = vmatprep.subr.mxu0 0.0
    %2442 = vmatpush1.xpose.msra.mxu0 0.0
    %2443 = vmatprep.subr.mxu0 0.0
    %2444 = vmatpush1.xpose.msra.mxu0 0.0
    %2445 = vmatprep.subr.mxu0 0.0
    %2446 = vmatpush1.xpose.msra.mxu0 0.0
    %2447 = vmatprep.mubr.f32.mxu0 %v1480
    %2448 = vmatmul.mubr.f32.gmra.mrb[0].mxu0 %v1479
    %v2449 = vpop.f32.mrb[0].mxu0
    %v2450 = vadd.f32 %v2376, %v2449
    %v2451 = vpop.f32.mrb[0].mxu0
    %2452 = vdwg.mxu0
    %v2453 = vld [vmem:[%s1 + $0x10] sm:$0xff]
    %v2454 = vld [vmem:[%s1 + $0x18] sm:$0xff]
    %v2455 = vld [vmem:[%s1 + $0x20] sm:$0x1]
    %v2456 = vlaneseq
    %v2457 = vshrl.u32 %v2456, 7
    %v2458 = vsub.s32 0, %v2457
    %v2459 = vrot.slane %v2455, %v2458
    %vm2460 = vcmask 130048
    %v2462 = vsel %vm2460, %v2450, 0
    %2464 = vmatprep.subr.mxu0 0.0
    %v2465 = vand.u32 %v2453, 4294901760
    %2466 = vmatpush1.msra.mxu0 %v2465
    %2467 = vmatprep.subr.mxu0 0.0
    %v2468 = vand.u32 %v2454, 4294901760
    %2469 = vmatpush1.msra.mxu0 %v2468
    %2470 = vmatprep.subr.mxu0 0.0
    %2471 = vmatpush1.msra.mxu0 0.0
    %2472 = vmatprep.subr.mxu0 0.0
    %2473 = vmatpush1.msra.mxu0 0.0
    %2474 = vmatprep.subr.mxu0 0.0
    %2475 = vmatpush1.msra.mxu0 0.0
    %2476 = vmatprep.subr.mxu0 0.0
    %2477 = vmatpush1.msra.mxu0 0.0
    %2478 = vmatprep.subr.mxu0 0.0
    %2479 = vmatpush1.msra.mxu0 0.0
    %2480 = vmatprep.subr.mxu0 0.0
    %2481 = vmatpush1.msra.mxu0 0.0
    %2482 = vmatprep.subr.mxu0 0.0
    %2483 = vmatpush1.msra.mxu0 0.0
    %2484 = vmatprep.subr.mxu0 0.0
    %2485 = vmatpush1.msra.mxu0 0.0
    %2486 = vmatprep.subr.mxu0 0.0
    %2487 = vmatpush1.msra.mxu0 0.0
    %2488 = vmatprep.subr.mxu0 0.0
    %2489 = vmatpush1.msra.mxu0 0.0
    %2490 = vmatprep.subr.mxu0 0.0
    %2491 = vmatpush1.msra.mxu0 0.0
    %2492 = vmatprep.subr.mxu0 0.0
    %2493 = vmatpush1.msra.mxu0 0.0
    %2494 = vmatprep.subr.mxu0 0.0
    %2495 = vmatpush1.msra.mxu0 0.0
    %2496 = vmatprep.subr.mxu0 0.0
    %2497 = vmatpush1.msra.mxu0 0.0
    %2498 = vmatprep.subr.mxu0 0.0
    %2499 = vmatpush1.msra.mxu0 0.0
    %2500 = vmatprep.subr.mxu0 0.0
    %2501 = vmatpush1.msra.mxu0 0.0
    %2502 = vmatprep.subr.mxu0 0.0
    %2503 = vmatpush1.msra.mxu0 0.0
    %2504 = vmatprep.subr.mxu0 0.0
    %2505 = vmatpush1.msra.mxu0 0.0
    %2506 = vmatprep.subr.mxu0 0.0
    %2507 = vmatpush1.msra.mxu0 0.0
    %2508 = vmatprep.subr.mxu0 0.0
    %2509 = vmatpush1.msra.mxu0 0.0
    %2510 = vmatprep.subr.mxu0 0.0
    %2511 = vmatpush1.msra.mxu0 0.0
    %2512 = vmatprep.subr.mxu0 0.0
    %2513 = vmatpush1.msra.mxu0 0.0
    %2514 = vmatprep.subr.mxu0 0.0
    %2515 = vmatpush1.msra.mxu0 0.0
    %2516 = vmatprep.subr.mxu0 0.0
    %2517 = vmatpush1.msra.mxu0 0.0
    %2518 = vmatprep.subr.mxu0 0.0
    %2519 = vmatpush1.msra.mxu0 0.0
    %2520 = vmatprep.subr.mxu0 0.0
    %2521 = vmatpush1.msra.mxu0 0.0
    %2522 = vmatprep.subr.mxu0 0.0
    %2523 = vmatpush1.msra.mxu0 0.0
    %2524 = vmatprep.subr.mxu0 0.0
    %2525 = vmatpush1.msra.mxu0 0.0
    %2526 = vmatprep.subr.mxu0 0.0
    %2527 = vmatpush1.msra.mxu0 0.0
    %2528 = vmatprep.subr.mxu0 0.0
    %2529 = vmatpush1.msra.mxu0 0.0
    %2530 = vmatprep.mubr.f32.mxu0 0.0
    %v2531 = vand.u32 %v2462, 4294901760
    %v2532 = vsub.f32 %v2462, %v2531
    %v2533 = vand.u32 %v2532, 4294901760
    %v2534 = vsub.f32 %v2532, %v2533
    %v2535 = vand.u32 %v2534, 4294901760
    %2536 = vmatmul.mubr.f32.gmra.mrb[0].mxu0 %v2535
    %v2537 = vpop.f32.mrb[0].mxu0
    %v2538 = vadd.f32 %v2459, %v2537
    %v2539 = vpop.f32.mrb[0].mxu0
    %2540 = vdwg.mxu0
    %2541 = vmatprep.subr.mxu0 0.0
    %v2542 = vand.u32 %v2453, 4294901760
    %v2543 = vsub.f32 %v2453, %v2542
    %v2544 = vand.u32 %v2543, 4294901760
    %v2545 = vsub.f32 %v2543, %v2544
    %v2546 = vand.u32 %v2545, 4294901760
    %2547 = vmatpush1.msra.mxu0 %v2546
    %2548 = vmatprep.subr.mxu0 0.0
    %v2549 = vand.u32 %v2454, 4294901760
    %v2550 = vsub.f32 %v2454, %v2549
    %v2551 = vand.u32 %v2550, 4294901760
    %v2552 = vsub.f32 %v2550, %v2551
    %v2553 = vand.u32 %v2552, 4294901760
    %2554 = vmatpush1.msra.mxu0 %v2553
    %2555 = vmatprep.subr.mxu0 0.0
    %2556 = vmatpush1.msra.mxu0 0.0
    %2557 = vmatprep.subr.mxu0 0.0
    %2558 = vmatpush1.msra.mxu0 0.0
    %2559 = vmatprep.subr.mxu0 0.0
    %2560 = vmatpush1.msra.mxu0 0.0
    %2561 = vmatprep.subr.mxu0 0.0
    %2562 = vmatpush1.msra.mxu0 0.0
    %2563 = vmatprep.subr.mxu0 0.0
    %2564 = vmatpush1.msra.mxu0 0.0
    %2565 = vmatprep.subr.mxu0 0.0
    %2566 = vmatpush1.msra.mxu0 0.0
    %2567 = vmatprep.subr.mxu0 0.0
    %2568 = vmatpush1.msra.mxu0 0.0
    %2569 = vmatprep.subr.mxu0 0.0
    %2570 = vmatpush1.msra.mxu0 0.0
    %2571 = vmatprep.subr.mxu0 0.0
    %2572 = vmatpush1.msra.mxu0 0.0
    %2573 = vmatprep.subr.mxu0 0.0
    %2574 = vmatpush1.msra.mxu0 0.0
    %2575 = vmatprep.subr.mxu0 0.0
    %2576 = vmatpush1.msra.mxu0 0.0
    %2577 = vmatprep.subr.mxu0 0.0
    %2578 = vmatpush1.msra.mxu0 0.0
    %2579 = vmatprep.subr.mxu0 0.0
    %2580 = vmatpush1.msra.mxu0 0.0
    %2581 = vmatprep.subr.mxu0 0.0
    %2582 = vmatpush1.msra.mxu0 0.0
    %2583 = vmatprep.subr.mxu0 0.0
    %2584 = vmatpush1.msra.mxu0 0.0
    %2585 = vmatprep.subr.mxu0 0.0
    %2586 = vmatpush1.msra.mxu0 0.0
    %2587 = vmatprep.subr.mxu0 0.0
    %2588 = vmatpush1.msra.mxu0 0.0
    %2589 = vmatprep.subr.mxu0 0.0
    %2590 = vmatpush1.msra.mxu0 0.0
    %2591 = vmatprep.subr.mxu0 0.0
    %2592 = vmatpush1.msra.mxu0 0.0
    %2593 = vmatprep.subr.mxu0 0.0
    %2594 = vmatpush1.msra.mxu0 0.0
    %2595 = vmatprep.subr.mxu0 0.0
    %2596 = vmatpush1.msra.mxu0 0.0
    %2597 = vmatprep.subr.mxu0 0.0
    %2598 = vmatpush1.msra.mxu0 0.0
    %2599 = vmatprep.subr.mxu0 0.0
    %2600 = vmatpush1.msra.mxu0 0.0
    %2601 = vmatprep.subr.mxu0 0.0
    %2602 = vmatpush1.msra.mxu0 0.0
    %2603 = vmatprep.subr.mxu0 0.0
    %2604 = vmatpush1.msra.mxu0 0.0
    %2605 = vmatprep.subr.mxu0 0.0
    %2606 = vmatpush1.msra.mxu0 0.0
    %2607 = vmatprep.subr.mxu0 0.0
    %2608 = vmatpush1.msra.mxu0 0.0
    %2609 = vmatprep.subr.mxu0 0.0
    %2610 = vmatpush1.msra.mxu0 0.0
    %2611 = vmatprep.subr.mxu0 0.0
    %2612 = vmatpush1.msra.mxu0 0.0
    %2613 = vmatprep.subr.mxu0 0.0
    %2614 = vmatpush1.msra.mxu0 0.0
    %2615 = vmatprep.mubr.f32.mxu0 0.0
    %v2616 = vand.u32 %v2462, 4294901760
    %2617 = vmatmul.mubr.f32.gmra.mrb[0].mxu0 %v2616
    %v2618 = vpop.f32.mrb[0].mxu0
    %v2619 = vadd.f32 %v2538, %v2618
    %v2620 = vpop.f32.mrb[0].mxu0
    %2621 = vdwg.mxu0
    %2622 = vmatprep.subr.mxu0 0.0
    %v2623 = vand.u32 %v2453, 4294901760
    %v2624 = vsub.f32 %v2453, %v2623
    %2625 = vmatpush1.msra.mxu0 %v2624
    %2626 = vmatprep.subr.mxu0 0.0
    %v2627 = vand.u32 %v2454, 4294901760
    %v2628 = vsub.f32 %v2454, %v2627
    %2629 = vmatpush1.msra.mxu0 %v2628
    %2630 = vmatprep.subr.mxu0 0.0
    %2631 = vmatpush1.msra.mxu0 0.0
    %2632 = vmatprep.subr.mxu0 0.0
    %2633 = vmatpush1.msra.mxu0 0.0
    %2634 = vmatprep.subr.mxu0 0.0
    %2635 = vmatpush1.msra.mxu0 0.0
    %2636 = vmatprep.subr.mxu0 0.0
    %2637 = vmatpush1.msra.mxu0 0.0
    %2638 = vmatprep.subr.mxu0 0.0
    %2639 = vmatpush1.msra.mxu0 0.0
    %2640 = vmatprep.subr.mxu0 0.0
    %2641 = vmatpush1.msra.mxu0 0.0
    %2642 = vmatprep.subr.mxu0 0.0
    %2643 = vmatpush1.msra.mxu0 0.0
    %2644 = vmatprep.subr.mxu0 0.0
    %2645 = vmatpush1.msra.mxu0 0.0
    %2646 = vmatprep.subr.mxu0 0.0
    %2647 = vmatpush1.msra.mxu0 0.0
    %2648 = vmatprep.subr.mxu0 0.0
    %2649 = vmatpush1.msra.mxu0 0.0
    %2650 = vmatprep.subr.mxu0 0.0
    %2651 = vmatpush1.msra.mxu0 0.0
    %2652 = vmatprep.subr.mxu0 0.0
    %2653 = vmatpush1.msra.mxu0 0.0
    %2654 = vmatprep.subr.mxu0 0.0
    %2655 = vmatpush1.msra.mxu0 0.0
    %2656 = vmatprep.subr.mxu0 0.0
    %2657 = vmatpush1.msra.mxu0 0.0
    %2658 = vmatprep.subr.mxu0 0.0
    %2659 = vmatpush1.msra.mxu0 0.0
    %2660 = vmatprep.subr.mxu0 0.0
    %2661 = vmatpush1.msra.mxu0 0.0
    %2662 = vmatprep.subr.mxu0 0.0
    %2663 = vmatpush1.msra.mxu0 0.0
    %2664 = vmatprep.subr.mxu0 0.0
    %2665 = vmatpush1.msra.mxu0 0.0
    %2666 = vmatprep.subr.mxu0 0.0
    %2667 = vmatpush1.msra.mxu0 0.0
    %2668 = vmatprep.subr.mxu0 0.0
    %2669 = vmatpush1.msra.mxu0 0.0
    %2670 = vmatprep.subr.mxu0 0.0
    %2671 = vmatpush1.msra.mxu0 0.0
    %2672 = vmatprep.subr.mxu0 0.0
    %2673 = vmatpush1.msra.mxu0 0.0
    %2674 = vmatprep.subr.mxu0 0.0
    %2675 = vmatpush1.msra.mxu0 0.0
    %2676 = vmatprep.subr.mxu0 0.0
    %2677 = vmatpush1.msra.mxu0 0.0
    %2678 = vmatprep.subr.mxu0 0.0
    %2679 = vmatpush1.msra.mxu0 0.0
    %2680 = vmatprep.subr.mxu0 0.0
    %2681 = vmatpush1.msra.mxu0 0.0
    %2682 = vmatprep.subr.mxu0 0.0
    %2683 = vmatpush1.msra.mxu0 0.0
    %2684 = vmatprep.subr.mxu0 0.0
    %2685 = vmatpush1.msra.mxu0 0.0
    %2686 = vmatprep.subr.mxu0 0.0
    %2687 = vmatpush1.msra.mxu0 0.0
    %2688 = vmatprep.subr.mxu0 0.0
    %2689 = vmatpush1.msra.mxu0 0.0
    %2690 = vmatprep.mubr.f32.mxu0 0.0
    %v2691 = vand.u32 %v2462, 4294901760
    %v2692 = vsub.f32 %v2462, %v2691
    %2693 = vmatmul.mubr.f32.gmra.mrb[0].mxu0 %v2692
    %v2694 = vpop.f32.mrb[0].mxu0
    %v2695 = vadd.f32 %v2619, %v2694
    %v2696 = vpop.f32.mrb[0].mxu0
    %2697 = vdwg.mxu0
    %2698 = vmatprep.subr.mxu0 0.0
    %v2699 = vand.u32 %v2453, 4294901760
    %2700 = vmatpush1.msra.mxu0 %v2699
    %2701 = vmatprep.subr.mxu0 0.0
    %v2702 = vand.u32 %v2454, 4294901760
    %2703 = vmatpush1.msra.mxu0 %v2702
    %2704 = vmatprep.subr.mxu0 0.0
    %2705 = vmatpush1.msra.mxu0 0.0
    %2706 = vmatprep.subr.mxu0 0.0
    %2707 = vmatpush1.msra.mxu0 0.0
    %2708 = vmatprep.subr.mxu0 0.0
    %2709 = vmatpush1.msra.mxu0 0.0
    %2710 = vmatprep.subr.mxu0 0.0
    %2711 = vmatpush1.msra.mxu0 0.0
    %2712 = vmatprep.subr.mxu0 0.0
    %2713 = vmatpush1.msra.mxu0 0.0
    %2714 = vmatprep.subr.mxu0 0.0
    %2715 = vmatpush1.msra.mxu0 0.0
    %2716 = vmatprep.subr.mxu0 0.0
    %2717 = vmatpush1.msra.mxu0 0.0
    %2718 = vmatprep.subr.mxu0 0.0
    %2719 = vmatpush1.msra.mxu0 0.0
    %2720 = vmatprep.subr.mxu0 0.0
    %2721 = vmatpush1.msra.mxu0 0.0
    %2722 = vmatprep.subr.mxu0 0.0
    %2723 = vmatpush1.msra.mxu0 0.0
    %2724 = vmatprep.subr.mxu0 0.0
    %2725 = vmatpush1.msra.mxu0 0.0
    %2726 = vmatprep.subr.mxu0 0.0
    %2727 = vmatpush1.msra.mxu0 0.0
    %2728 = vmatprep.subr.mxu0 0.0
    %2729 = vmatpush1.msra.mxu0 0.0
    %2730 = vmatprep.subr.mxu0 0.0
    %2731 = vmatpush1.msra.mxu0 0.0
    %2732 = vmatprep.subr.mxu0 0.0
    %2733 = vmatpush1.msra.mxu0 0.0
    %2734 = vmatprep.subr.mxu0 0.0
    %2735 = vmatpush1.msra.mxu0 0.0
    %2736 = vmatprep.subr.mxu0 0.0
    %2737 = vmatpush1.msra.mxu0 0.0
    %2738 = vmatprep.subr.mxu0 0.0
    %2739 = vmatpush1.msra.mxu0 0.0
    %2740 = vmatprep.subr.mxu0 0.0
    %2741 = vmatpush1.msra.mxu0 0.0
    %2742 = vmatprep.subr.mxu0 0.0
    %2743 = vmatpush1.msra.mxu0 0.0
    %2744 = vmatprep.subr.mxu0 0.0
    %2745 = vmatpush1.msra.mxu0 0.0
    %2746 = vmatprep.subr.mxu0 0.0
    %2747 = vmatpush1.msra.mxu0 0.0
    %2748 = vmatprep.subr.mxu0 0.0
    %2749 = vmatpush1.msra.mxu0 0.0
    %2750 = vmatprep.subr.mxu0 0.0
    %2751 = vmatpush1.msra.mxu0 0.0
    %2752 = vmatprep.subr.mxu0 0.0
    %2753 = vmatpush1.msra.mxu0 0.0
    %2754 = vmatprep.subr.mxu0 0.0
    %2755 = vmatpush1.msra.mxu0 0.0
    %2756 = vmatprep.subr.mxu0 0.0
    %2757 = vmatpush1.msra.mxu0 0.0
    %2758 = vmatprep.subr.mxu0 0.0
    %2759 = vmatpush1.msra.mxu0 0.0
    %2760 = vmatprep.subr.mxu0 0.0
    %2761 = vmatpush1.msra.mxu0 0.0
    %2762 = vmatprep.subr.mxu0 0.0
    %2763 = vmatpush1.msra.mxu0 0.0
    %2764 = vmatprep.mubr.f32.mxu0 0.0
    %v2765 = vand.u32 %v2462, 4294901760
    %v2766 = vsub.f32 %v2462, %v2765
    %v2767 = vand.u32 %v2766, 4294901760
    %2768 = vmatmul.mubr.f32.gmra.mrb[0].mxu0 %v2767
    %v2769 = vpop.f32.mrb[0].mxu0
    %v2770 = vadd.f32 %v2695, %v2769
    %v2771 = vpop.f32.mrb[0].mxu0
    %2772 = vdwg.mxu0
    %2773 = vmatprep.subr.mxu0 0.0
    %v2774 = vand.u32 %v2453, 4294901760
    %v2775 = vsub.f32 %v2453, %v2774
    %v2776 = vand.u32 %v2775, 4294901760
    %2777 = vmatpush1.msra.mxu0 %v2776
    %2778 = vmatprep.subr.mxu0 0.0
    %v2779 = vand.u32 %v2454, 4294901760
    %v2780 = vsub.f32 %v2454, %v2779
    %v2781 = vand.u32 %v2780, 4294901760
    %2782 = vmatpush1.msra.mxu0 %v2781
    %2783 = vmatprep.subr.mxu0 0.0
    %2784 = vmatpush1.msra.mxu0 0.0
    %2785 = vmatprep.subr.mxu0 0.0
    %2786 = vmatpush1.msra.mxu0 0.0
    %2787 = vmatprep.subr.mxu0 0.0
    %2788 = vmatpush1.msra.mxu0 0.0
    %2789 = vmatprep.subr.mxu0 0.0
    %2790 = vmatpush1.msra.mxu0 0.0
    %2791 = vmatprep.subr.mxu0 0.0
    %2792 = vmatpush1.msra.mxu0 0.0
    %2793 = vmatprep.subr.mxu0 0.0
    %2794 = vmatpush1.msra.mxu0 0.0
    %2795 = vmatprep.subr.mxu0 0.0
    %2796 = vmatpush1.msra.mxu0 0.0
    %2797 = vmatprep.subr.mxu0 0.0
    %2798 = vmatpush1.msra.mxu0 0.0
    %2799 = vmatprep.subr.mxu0 0.0
    %2800 = vmatpush1.msra.mxu0 0.0
    %2801 = vmatprep.subr.mxu0 0.0
    %2802 = vmatpush1.msra.mxu0 0.0
    %2803 = vmatprep.subr.mxu0 0.0
    %2804 = vmatpush1.msra.mxu0 0.0
    %2805 = vmatprep.subr.mxu0 0.0
    %2806 = vmatpush1.msra.mxu0 0.0
    %2807 = vmatprep.subr.mxu0 0.0
    %2808 = vmatpush1.msra.mxu0 0.0
    %2809 = vmatprep.subr.mxu0 0.0
    %2810 = vmatpush1.msra.mxu0 0.0
    %2811 = vmatprep.subr.mxu0 0.0
    %2812 = vmatpush1.msra.mxu0 0.0
    %2813 = vmatprep.subr.mxu0 0.0
    %2814 = vmatpush1.msra.mxu0 0.0
    %2815 = vmatprep.subr.mxu0 0.0
    %2816 = vmatpush1.msra.mxu0 0.0
    %2817 = vmatprep.subr.mxu0 0.0
    %2818 = vmatpush1.msra.mxu0 0.0
    %2819 = vmatprep.subr.mxu0 0.0
    %2820 = vmatpush1.msra.mxu0 0.0
    %2821 = vmatprep.subr.mxu0 0.0
    %2822 = vmatpush1.msra.mxu0 0.0
    %2823 = vmatprep.subr.mxu0 0.0
    %2824 = vmatpush1.msra.mxu0 0.0
    %2825 = vmatprep.subr.mxu0 0.0
    %2826 = vmatpush1.msra.mxu0 0.0
    %2827 = vmatprep.subr.mxu0 0.0
    %2828 = vmatpush1.msra.mxu0 0.0
    %2829 = vmatprep.subr.mxu0 0.0
    %2830 = vmatpush1.msra.mxu0 0.0
    %2831 = vmatprep.subr.mxu0 0.0
    %2832 = vmatpush1.msra.mxu0 0.0
    %2833 = vmatprep.subr.mxu0 0.0
    %2834 = vmatpush1.msra.mxu0 0.0
    %2835 = vmatprep.subr.mxu0 0.0
    %2836 = vmatpush1.msra.mxu0 0.0
    %2837 = vmatprep.subr.mxu0 0.0
    %2838 = vmatpush1.msra.mxu0 0.0
    %2839 = vmatprep.subr.mxu0 0.0
    %2840 = vmatpush1.msra.mxu0 0.0
    %2841 = vmatprep.subr.mxu0 0.0
    %2842 = vmatpush1.msra.mxu0 0.0
    %2843 = vmatprep.mubr.f32.mxu0 0.0
    %v2844 = vand.u32 %v2462, 4294901760
    %2845 = vmatmul.mubr.f32.gmra.mrb[0].mxu0 %v2844
    %v2846 = vpop.f32.mrb[0].mxu0
    %v2847 = vadd.f32 %v2770, %v2846
    %v2848 = vpop.f32.mrb[0].mxu0
    %2849 = vdwg.mxu0
    %2850 = vmatprep.subr.mxu0 0.0
    %v2851 = vand.u32 %v2453, 4294901760
    %2852 = vmatpush1.msra.mxu0 %v2851
    %2853 = vmatprep.subr.mxu0 0.0
    %v2854 = vand.u32 %v2454, 4294901760
    %2855 = vmatpush1.msra.mxu0 %v2854
    %2856 = vmatprep.subr.mxu0 0.0
    %2857 = vmatpush1.msra.mxu0 0.0
    %2858 = vmatprep.subr.mxu0 0.0
    %2859 = vmatpush1.msra.mxu0 0.0
    %2860 = vmatprep.subr.mxu0 0.0
    %2861 = vmatpush1.msra.mxu0 0.0
    %2862 = vmatprep.subr.mxu0 0.0
    %2863 = vmatpush1.msra.mxu0 0.0
    %2864 = vmatprep.subr.mxu0 0.0
    %2865 = vmatpush1.msra.mxu0 0.0
    %2866 = vmatprep.subr.mxu0 0.0
    %2867 = vmatpush1.msra.mxu0 0.0
    %2868 = vmatprep.subr.mxu0 0.0
    %2869 = vmatpush1.msra.mxu0 0.0
    %2870 = vmatprep.subr.mxu0 0.0
    %2871 = vmatpush1.msra.mxu0 0.0
    %2872 = vmatprep.subr.mxu0 0.0
    %2873 = vmatpush1.msra.mxu0 0.0
    %2874 = vmatprep.subr.mxu0 0.0
    %2875 = vmatpush1.msra.mxu0 0.0
    %2876 = vmatprep.subr.mxu0 0.0
    %2877 = vmatpush1.msra.mxu0 0.0
    %2878 = vmatprep.subr.mxu0 0.0
    %2879 = vmatpush1.msra.mxu0 0.0
    %2880 = vmatprep.subr.mxu0 0.0
    %2881 = vmatpush1.msra.mxu0 0.0
    %2882 = vmatprep.subr.mxu0 0.0
    %2883 = vmatpush1.msra.mxu0 0.0
    %2884 = vmatprep.subr.mxu0 0.0
    %2885 = vmatpush1.msra.mxu0 0.0
    %2886 = vmatprep.subr.mxu0 0.0
    %2887 = vmatpush1.msra.mxu0 0.0
    %2888 = vmatprep.subr.mxu0 0.0
    %2889 = vmatpush1.msra.mxu0 0.0
    %2890 = vmatprep.subr.mxu0 0.0
    %2891 = vmatpush1.msra.mxu0 0.0
    %2892 = vmatprep.subr.mxu0 0.0
    %2893 = vmatpush1.msra.mxu0 0.0
    %2894 = vmatprep.subr.mxu0 0.0
    %2895 = vmatpush1.msra.mxu0 0.0
    %2896 = vmatprep.subr.mxu0 0.0
    %2897 = vmatpush1.msra.mxu0 0.0
    %2898 = vmatprep.subr.mxu0 0.0
    %2899 = vmatpush1.msra.mxu0 0.0
    %2900 = vmatprep.subr.mxu0 0.0
    %2901 = vmatpush1.msra.mxu0 0.0
    %2902 = vmatprep.subr.mxu0 0.0
    %2903 = vmatpush1.msra.mxu0 0.0
    %2904 = vmatprep.subr.mxu0 0.0
    %2905 = vmatpush1.msra.mxu0 0.0
    %2906 = vmatprep.subr.mxu0 0.0
    %2907 = vmatpush1.msra.mxu0 0.0
    %2908 = vmatprep.subr.mxu0 0.0
    %2909 = vmatpush1.msra.mxu0 0.0
    %2910 = vmatprep.subr.mxu0 0.0
    %2911 = vmatpush1.msra.mxu0 0.0
    %2912 = vmatprep.subr.mxu0 0.0
    %2913 = vmatpush1.msra.mxu0 0.0
    %2914 = vmatprep.subr.mxu0 0.0
    %2915 = vmatpush1.msra.mxu0 0.0
    %2916 = vmatprep.mubr.f32.mxu0 0.0
    %v2917 = vand.u32 %v2462, 4294901760
    %2918 = vmatmul.mubr.f32.gmra.mrb[0].mxu0 %v2917
    %v2919 = vpop.f32.mrb[0].mxu0
    %v2920 = vadd.f32 %v2847, %v2919
    %v2921 = vpop.f32.mrb[0].mxu0
    %2922 = vdwg.mxu0
    %v2923 = vmax.f32 %v2920, 0.0
    %v2924 = vld [vmem:[%s1 + $0x28] sm:$0xff]
    %v2925 = vld [vmem:[%s1 + $0x30] sm:$0xff]
    %v2926 = vld [vmem:[%s1 + $0x38] sm:$0xff]
    %v2927 = vld [vmem:[%s1 + $0x40] sm:$0xff]
    %v2928 = vld [vmem:[%s1 + $0x48] sm:$0xff]
    %v2929 = vld [vmem:[%s1 + $0x50] sm:$0xff]
    %v2930 = vld [vmem:[%s1 + $0x58] sm:$0xff]
    %v2931 = vld [vmem:[%s1 + $0x60] sm:$0xff]
    %v2932 = vld [vmem:[%s1 + $0x68] sm:$0x1]
    %v2933 = vlaneseq
    %v2934 = vshrl.u32 %v2933, 7
    %v2935 = vsub.s32 0, %v2934
    %v2936 = vrot.slane %v2932, %v2935
    %v2938 = vsel %vm49, %v2923, 0
    %2940 = vmatprep.subr.mxu0 0.0
    %v2941 = vand.u32 %v2924, 4294901760
    %2942 = vmatpush1.msra.mxu0 %v2941
    %2943 = vmatprep.subr.mxu0 0.0
    %v2944 = vand.u32 %v2925, 4294901760
    %2945 = vmatpush1.msra.mxu0 %v2944
    %2946 = vmatprep.subr.mxu0 0.0
    %v2947 = vand.u32 %v2926, 4294901760
    %2948 = vmatpush1.msra.mxu0 %v2947
    %2949 = vmatprep.subr.mxu0 0.0
    %v2950 = vand.u32 %v2927, 4294901760
    %2951 = vmatpush1.msra.mxu0 %v2950
    %2952 = vmatprep.subr.mxu0 0.0
    %v2953 = vand.u32 %v2928, 4294901760
    %2954 = vmatpush1.msra.mxu0 %v2953
    %2955 = vmatprep.subr.mxu0 0.0
    %v2956 = vand.u32 %v2929, 4294901760
    %2957 = vmatpush1.msra.mxu0 %v2956
    %2958 = vmatprep.subr.mxu0 0.0
    %v2959 = vand.u32 %v2930, 4294901760
    %2960 = vmatpush1.msra.mxu0 %v2959
    %2961 = vmatprep.subr.mxu0 0.0
    %v2962 = vand.u32 %v2931, 4294901760
    %2963 = vmatpush1.msra.mxu0 %v2962
    %2964 = vmatprep.subr.mxu0 0.0
    %2965 = vmatpush1.msra.mxu0 0.0
    %2966 = vmatprep.subr.mxu0 0.0
    %2967 = vmatpush1.msra.mxu0 0.0
    %2968 = vmatprep.subr.mxu0 0.0
    %2969 = vmatpush1.msra.mxu0 0.0
    %2970 = vmatprep.subr.mxu0 0.0
    %2971 = vmatpush1.msra.mxu0 0.0
    %2972 = vmatprep.subr.mxu0 0.0
    %2973 = vmatpush1.msra.mxu0 0.0
    %2974 = vmatprep.subr.mxu0 0.0
    %2975 = vmatpush1.msra.mxu0 0.0
    %2976 = vmatprep.subr.mxu0 0.0
    %2977 = vmatpush1.msra.mxu0 0.0
    %2978 = vmatprep.subr.mxu0 0.0
    %2979 = vmatpush1.msra.mxu0 0.0
    %2980 = vmatprep.subr.mxu0 0.0
    %2981 = vmatpush1.msra.mxu0 0.0
    %2982 = vmatprep.subr.mxu0 0.0
    %2983 = vmatpush1.msra.mxu0 0.0
    %2984 = vmatprep.subr.mxu0 0.0
    %2985 = vmatpush1.msra.mxu0 0.0
    %2986 = vmatprep.subr.mxu0 0.0
    %2987 = vmatpush1.msra.mxu0 0.0
    %2988 = vmatprep.subr.mxu0 0.0
    %2989 = vmatpush1.msra.mxu0 0.0
    %2990 = vmatprep.subr.mxu0 0.0
    %2991 = vmatpush1.msra.mxu0 0.0
    %2992 = vmatprep.subr.mxu0 0.0
    %2993 = vmatpush1.msra.mxu0 0.0
    %2994 = vmatprep.subr.mxu0 0.0
    %2995 = vmatpush1.msra.mxu0 0.0
    %2996 = vmatprep.subr.mxu0 0.0
    %2997 = vmatpush1.msra.mxu0 0.0
    %2998 = vmatprep.subr.mxu0 0.0
    %2999 = vmatpush1.msra.mxu0 0.0
    %3000 = vmatprep.subr.mxu0 0.0
    %3001 = vmatpush1.msra.mxu0 0.0
    %3002 = vmatprep.subr.mxu0 0.0
    %3003 = vmatpush1.msra.mxu0 0.0
    %3004 = vmatprep.subr.mxu0 0.0
    %3005 = vmatpush1.msra.mxu0 0.0
    %3006 = vmatprep.subr.mxu0 0.0
    %3007 = vmatpush1.msra.mxu0 0.0
    %3008 = vmatprep.subr.mxu0 0.0
    %3009 = vmatpush1.msra.mxu0 0.0
    %3010 = vmatprep.subr.mxu0 0.0
    %3011 = vmatpush1.msra.mxu0 0.0
    %3012 = vmatprep.mubr.f32.mxu0 0.0
    %v3013 = vand.u32 %v2938, 4294901760
    %v3014 = vsub.f32 %v2938, %v3013
    %v3015 = vand.u32 %v3014, 4294901760
    %v3016 = vsub.f32 %v3014, %v3015
    %v3017 = vand.u32 %v3016, 4294901760
    %3018 = vmatmul.mubr.f32.gmra.mrb[0].mxu0 %v3017
    %v3019 = vpop.f32.mrb[0].mxu0
    %v3020 = vadd.f32 %v2936, %v3019
    %v3021 = vpop.f32.mrb[0].mxu0
    %3022 = vdwg.mxu0
    %3023 = vmatprep.subr.mxu0 0.0
    %v3024 = vand.u32 %v2924, 4294901760
    %v3025 = vsub.f32 %v2924, %v3024
    %v3026 = vand.u32 %v3025, 4294901760
    %v3027 = vsub.f32 %v3025, %v3026
    %v3028 = vand.u32 %v3027, 4294901760
    %3029 = vmatpush1.msra.mxu0 %v3028
    %3030 = vmatprep.subr.mxu0 0.0
    %v3031 = vand.u32 %v2925, 4294901760
    %v3032 = vsub.f32 %v2925, %v3031
    %v3033 = vand.u32 %v3032, 4294901760
    %v3034 = vsub.f32 %v3032, %v3033
    %v3035 = vand.u32 %v3034, 4294901760
    %3036 = vmatpush1.msra.mxu0 %v3035
    %3037 = vmatprep.subr.mxu0 0.0
    %v3038 = vand.u32 %v2926, 4294901760
    %v3039 = vsub.f32 %v2926, %v3038
    %v3040 = vand.u32 %v3039, 4294901760
    %v3041 = vsub.f32 %v3039, %v3040
    %v3042 = vand.u32 %v3041, 4294901760
    %3043 = vmatpush1.msra.mxu0 %v3042
    %3044 = vmatprep.subr.mxu0 0.0
    %v3045 = vand.u32 %v2927, 4294901760
    %v3046 = vsub.f32 %v2927, %v3045
    %v3047 = vand.u32 %v3046, 4294901760
    %v3048 = vsub.f32 %v3046, %v3047
    %v3049 = vand.u32 %v3048, 4294901760
    %3050 = vmatpush1.msra.mxu0 %v3049
    %3051 = vmatprep.subr.mxu0 0.0
    %v3052 = vand.u32 %v2928, 4294901760
    %v3053 = vsub.f32 %v2928, %v3052
    %v3054 = vand.u32 %v3053, 4294901760
    %v3055 = vsub.f32 %v3053, %v3054
    %v3056 = vand.u32 %v3055, 4294901760
    %3057 = vmatpush1.msra.mxu0 %v3056
    %3058 = vmatprep.subr.mxu0 0.0
    %v3059 = vand.u32 %v2929, 4294901760
    %v3060 = vsub.f32 %v2929, %v3059
    %v3061 = vand.u32 %v3060, 4294901760
    %v3062 = vsub.f32 %v3060, %v3061
    %v3063 = vand.u32 %v3062, 4294901760
    %3064 = vmatpush1.msra.mxu0 %v3063
    %3065 = vmatprep.subr.mxu0 0.0
    %v3066 = vand.u32 %v2930, 4294901760
    %v3067 = vsub.f32 %v2930, %v3066
    %v3068 = vand.u32 %v3067, 4294901760
    %v3069 = vsub.f32 %v3067, %v3068
    %v3070 = vand.u32 %v3069, 4294901760
    %3071 = vmatpush1.msra.mxu0 %v3070
    %3072 = vmatprep.subr.mxu0 0.0
    %v3073 = vand.u32 %v2931, 4294901760
    %v3074 = vsub.f32 %v2931, %v3073
    %v3075 = vand.u32 %v3074, 4294901760
    %v3076 = vsub.f32 %v3074, %v3075
    %v3077 = vand.u32 %v3076, 4294901760
    %3078 = vmatpush1.msra.mxu0 %v3077
    %3079 = vmatprep.subr.mxu0 0.0
    %3080 = vmatpush1.msra.mxu0 0.0
    %3081 = vmatprep.subr.mxu0 0.0
    %3082 = vmatpush1.msra.mxu0 0.0
    %3083 = vmatprep.subr.mxu0 0.0
    %3084 = vmatpush1.msra.mxu0 0.0
    %3085 = vmatprep.subr.mxu0 0.0
    %3086 = vmatpush1.msra.mxu0 0.0
    %3087 = vmatprep.subr.mxu0 0.0
    %3088 = vmatpush1.msra.mxu0 0.0
    %3089 = vmatprep.subr.mxu0 0.0
    %3090 = vmatpush1.msra.mxu0 0.0
    %3091 = vmatprep.subr.mxu0 0.0
    %3092 = vmatpush1.msra.mxu0 0.0
    %3093 = vmatprep.subr.mxu0 0.0
    %3094 = vmatpush1.msra.mxu0 0.0
    %3095 = vmatprep.subr.mxu0 0.0
    %3096 = vmatpush1.msra.mxu0 0.0
    %3097 = vmatprep.subr.mxu0 0.0
    %3098 = vmatpush1.msra.mxu0 0.0
    %3099 = vmatprep.subr.mxu0 0.0
    %3100 = vmatpush1.msra.mxu0 0.0
    %3101 = vmatprep.subr.mxu0 0.0
    %3102 = vmatpush1.msra.mxu0 0.0
    %3103 = vmatprep.subr.mxu0 0.0
    %3104 = vmatpush1.msra.mxu0 0.0
    %3105 = vmatprep.subr.mxu0 0.0
    %3106 = vmatpush1.msra.mxu0 0.0
    %3107 = vmatprep.subr.mxu0 0.0
    %3108 = vmatpush1.msra.mxu0 0.0
    %3109 = vmatprep.subr.mxu0 0.0
    %3110 = vmatpush1.msra.mxu0 0.0
    %3111 = vmatprep.subr.mxu0 0.0
    %3112 = vmatpush1.msra.mxu0 0.0
    %3113 = vmatprep.subr.mxu0 0.0
    %3114 = vmatpush1.msra.mxu0 0.0
    %3115 = vmatprep.subr.mxu0 0.0
    %3116 = vmatpush1.msra.mxu0 0.0
    %3117 = vmatprep.subr.mxu0 0.0
    %3118 = vmatpush1.msra.mxu0 0.0
    %3119 = vmatprep.subr.mxu0 0.0
    %3120 = vmatpush1.msra.mxu0 0.0
    %3121 = vmatprep.subr.mxu0 0.0
    %3122 = vmatpush1.msra.mxu0 0.0
    %3123 = vmatprep.subr.mxu0 0.0
    %3124 = vmatpush1.msra.mxu0 0.0
    %3125 = vmatprep.subr.mxu0 0.0
    %3126 = vmatpush1.msra.mxu0 0.0
    %3127 = vmatprep.mubr.f32.mxu0 0.0
    %v3128 = vand.u32 %v2938, 4294901760
    %3129 = vmatmul.mubr.f32.gmra.mrb[0].mxu0 %v3128
    %v3130 = vpop.f32.mrb[0].mxu0
    %v3131 = vadd.f32 %v3020, %v3130
    %v3132 = vpop.f32.mrb[0].mxu0
    %3133 = vdwg.mxu0
    %3134 = vmatprep.subr.mxu0 0.0
    %v3135 = vand.u32 %v2924, 4294901760
    %v3136 = vsub.f32 %v2924, %v3135
    %3137 = vmatpush1.msra.mxu0 %v3136
    %3138 = vmatprep.subr.mxu0 0.0
    %v3139 = vand.u32 %v2925, 4294901760
    %v3140 = vsub.f32 %v2925, %v3139
    %3141 = vmatpush1.msra.mxu0 %v3140
    %3142 = vmatprep.subr.mxu0 0.0
    %v3143 = vand.u32 %v2926, 4294901760
    %v3144 = vsub.f32 %v2926, %v3143
    %3145 = vmatpush1.msra.mxu0 %v3144
    %3146 = vmatprep.subr.mxu0 0.0
    %v3147 = vand.u32 %v2927, 4294901760
    %v3148 = vsub.f32 %v2927, %v3147
    %3149 = vmatpush1.msra.mxu0 %v3148
    %3150 = vmatprep.subr.mxu0 0.0
    %v3151 = vand.u32 %v2928, 4294901760
    %v3152 = vsub.f32 %v2928, %v3151
    %3153 = vmatpush1.msra.mxu0 %v3152
    %3154 = vmatprep.subr.mxu0 0.0
    %v3155 = vand.u32 %v2929, 4294901760
    %v3156 = vsub.f32 %v2929, %v3155
    %3157 = vmatpush1.msra.mxu0 %v3156
    %3158 = vmatprep.subr.mxu0 0.0
    %v3159 = vand.u32 %v2930, 4294901760
    %v3160 = vsub.f32 %v2930, %v3159
    %3161 = vmatpush1.msra.mxu0 %v3160
    %3162 = vmatprep.subr.mxu0 0.0
    %v3163 = vand.u32 %v2931, 4294901760
    %v3164 = vsub.f32 %v2931, %v3163
    %3165 = vmatpush1.msra.mxu0 %v3164
    %3166 = vmatprep.subr.mxu0 0.0
    %3167 = vmatpush1.msra.mxu0 0.0
    %3168 = vmatprep.subr.mxu0 0.0
    %3169 = vmatpush1.msra.mxu0 0.0
    %3170 = vmatprep.subr.mxu0 0.0
    %3171 = vmatpush1.msra.mxu0 0.0
    %3172 = vmatprep.subr.mxu0 0.0
    %3173 = vmatpush1.msra.mxu0 0.0
    %3174 = vmatprep.subr.mxu0 0.0
    %3175 = vmatpush1.msra.mxu0 0.0
    %3176 = vmatprep.subr.mxu0 0.0
    %3177 = vmatpush1.msra.mxu0 0.0
    %3178 = vmatprep.subr.mxu0 0.0
    %3179 = vmatpush1.msra.mxu0 0.0
    %3180 = vmatprep.subr.mxu0 0.0
    %3181 = vmatpush1.msra.mxu0 0.0
    %3182 = vmatprep.subr.mxu0 0.0
    %3183 = vmatpush1.msra.mxu0 0.0
    %3184 = vmatprep.subr.mxu0 0.0
    %3185 = vmatpush1.msra.mxu0 0.0
    %3186 = vmatprep.subr.mxu0 0.0
    %3187 = vmatpush1.msra.mxu0 0.0
    %3188 = vmatprep.subr.mxu0 0.0
    %3189 = vmatpush1.msra.mxu0 0.0
    %3190 = vmatprep.subr.mxu0 0.0
    %3191 = vmatpush1.msra.mxu0 0.0
    %3192 = vmatprep.subr.mxu0 0.0
    %3193 = vmatpush1.msra.mxu0 0.0
    %3194 = vmatprep.subr.mxu0 0.0
    %3195 = vmatpush1.msra.mxu0 0.0
    %3196 = vmatprep.subr.mxu0 0.0
    %3197 = vmatpush1.msra.mxu0 0.0
    %3198 = vmatprep.subr.mxu0 0.0
    %3199 = vmatpush1.msra.mxu0 0.0
    %3200 = vmatprep.subr.mxu0 0.0
    %3201 = vmatpush1.msra.mxu0 0.0
    %3202 = vmatprep.subr.mxu0 0.0
    %3203 = vmatpush1.msra.mxu0 0.0
    %3204 = vmatprep.subr.mxu0 0.0
    %3205 = vmatpush1.msra.mxu0 0.0
    %3206 = vmatprep.subr.mxu0 0.0
    %3207 = vmatpush1.msra.mxu0 0.0
    %3208 = vmatprep.subr.mxu0 0.0
    %3209 = vmatpush1.msra.mxu0 0.0
    %3210 = vmatprep.subr.mxu0 0.0
    %3211 = vmatpush1.msra.mxu0 0.0
    %3212 = vmatprep.subr.mxu0 0.0
    %3213 = vmatpush1.msra.mxu0 0.0
    %3214 = vmatprep.mubr.f32.mxu0 0.0
    %v3215 = vand.u32 %v2938, 4294901760
    %v3216 = vsub.f32 %v2938, %v3215
    %3217 = vmatmul.mubr.f32.gmra.mrb[0].mxu0 %v3216
    %v3218 = vpop.f32.mrb[0].mxu0
    %v3219 = vadd.f32 %v3131, %v3218
    %v3220 = vpop.f32.mrb[0].mxu0
    %3221 = vdwg.mxu0
    %3222 = vmatprep.subr.mxu0 0.0
    %v3223 = vand.u32 %v2924, 4294901760
    %3224 = vmatpush1.msra.mxu0 %v3223
    %3225 = vmatprep.subr.mxu0 0.0
    %v3226 = vand.u32 %v2925, 4294901760
    %3227 = vmatpush1.msra.mxu0 %v3226
    %3228 = vmatprep.subr.mxu0 0.0
    %v3229 = vand.u32 %v2926, 4294901760
    %3230 = vmatpush1.msra.mxu0 %v3229
    %3231 = vmatprep.subr.mxu0 0.0
    %v3232 = vand.u32 %v2927, 4294901760
    %3233 = vmatpush1.msra.mxu0 %v3232
    %3234 = vmatprep.subr.mxu0 0.0
    %v3235 = vand.u32 %v2928, 4294901760
    %3236 = vmatpush1.msra.mxu0 %v3235
    %3237 = vmatprep.subr.mxu0 0.0
    %v3238 = vand.u32 %v2929, 4294901760
    %3239 = vmatpush1.msra.mxu0 %v3238
    %3240 = vmatprep.subr.mxu0 0.0
    %v3241 = vand.u32 %v2930, 4294901760
    %3242 = vmatpush1.msra.mxu0 %v3241
    %3243 = vmatprep.subr.mxu0 0.0
    %v3244 = vand.u32 %v2931, 4294901760
    %3245 = vmatpush1.msra.mxu0 %v3244
    %3246 = vmatprep.subr.mxu0 0.0
    %3247 = vmatpush1.msra.mxu0 0.0
    %3248 = vmatprep.subr.mxu0 0.0
    %3249 = vmatpush1.msra.mxu0 0.0
    %3250 = vmatprep.subr.mxu0 0.0
    %3251 = vmatpush1.msra.mxu0 0.0
    %3252 = vmatprep.subr.mxu0 0.0
    %3253 = vmatpush1.msra.mxu0 0.0
    %3254 = vmatprep.subr.mxu0 0.0
    %3255 = vmatpush1.msra.mxu0 0.0
    %3256 = vmatprep.subr.mxu0 0.0
    %3257 = vmatpush1.msra.mxu0 0.0
    %3258 = vmatprep.subr.mxu0 0.0
    %3259 = vmatpush1.msra.mxu0 0.0
    %3260 = vmatprep.subr.mxu0 0.0
    %3261 = vmatpush1.msra.mxu0 0.0
    %3262 = vmatprep.subr.mxu0 0.0
    %3263 = vmatpush1.msra.mxu0 0.0
    %3264 = vmatprep.subr.mxu0 0.0
    %3265 = vmatpush1.msra.mxu0 0.0
    %3266 = vmatprep.subr.mxu0 0.0
    %3267 = vmatpush1.msra.mxu0 0.0
    %3268 = vmatprep.subr.mxu0 0.0
    %3269 = vmatpush1.msra.mxu0 0.0
    %3270 = vmatprep.subr.mxu0 0.0
    %3271 = vmatpush1.msra.mxu0 0.0
    %3272 = vmatprep.subr.mxu0 0.0
    %3273 = vmatpush1.msra.mxu0 0.0
    %3274 = vmatprep.subr.mxu0 0.0
    %3275 = vmatpush1.msra.mxu0 0.0
    %3276 = vmatprep.subr.mxu0 0.0
    %3277 = vmatpush1.msra.mxu0 0.0
    %3278 = vmatprep.subr.mxu0 0.0
    %3279 = vmatpush1.msra.mxu0 0.0
    %3280 = vmatprep.subr.mxu0 0.0
    %3281 = vmatpush1.msra.mxu0 0.0
    %3282 = vmatprep.subr.mxu0 0.0
    %3283 = vmatpush1.msra.mxu0 0.0
    %3284 = vmatprep.subr.mxu0 0.0
    %3285 = vmatpush1.msra.mxu0 0.0
    %3286 = vmatprep.subr.mxu0 0.0
    %3287 = vmatpush1.msra.mxu0 0.0
    %3288 = vmatprep.subr.mxu0 0.0
    %3289 = vmatpush1.msra.mxu0 0.0
    %3290 = vmatprep.subr.mxu0 0.0
    %3291 = vmatpush1.msra.mxu0 0.0
    %3292 = vmatprep.subr.mxu0 0.0
    %3293 = vmatpush1.msra.mxu0 0.0
    %3294 = vmatprep.mubr.f32.mxu0 0.0
    %v3295 = vand.u32 %v2938, 4294901760
    %v3296 = vsub.f32 %v2938, %v3295
    %v3297 = vand.u32 %v3296, 4294901760
    %3298 = vmatmul.mubr.f32.gmra.mrb[0].mxu0 %v3297
    %v3299 = vpop.f32.mrb[0].mxu0
    %v3300 = vadd.f32 %v3219, %v3299
    %v3301 = vpop.f32.mrb[0].mxu0
    %3302 = vdwg.mxu0
    %3303 = vmatprep.subr.mxu0 0.0
    %v3304 = vand.u32 %v2924, 4294901760
    %v3305 = vsub.f32 %v2924, %v3304
    %v3306 = vand.u32 %v3305, 4294901760
    %3307 = vmatpush1.msra.mxu0 %v3306
    %3308 = vmatprep.subr.mxu0 0.0
    %v3309 = vand.u32 %v2925, 4294901760
    %v3310 = vsub.f32 %v2925, %v3309
    %v3311 = vand.u32 %v3310, 4294901760
    %3312 = vmatpush1.msra.mxu0 %v3311
    %3313 = vmatprep.subr.mxu0 0.0
    %v3314 = vand.u32 %v2926, 4294901760
    %v3315 = vsub.f32 %v2926, %v3314
    %v3316 = vand.u32 %v3315, 4294901760
    %3317 = vmatpush1.msra.mxu0 %v3316
    %3318 = vmatprep.subr.mxu0 0.0
    %v3319 = vand.u32 %v2927, 4294901760
    %v3320 = vsub.f32 %v2927, %v3319
    %v3321 = vand.u32 %v3320, 4294901760
    %3322 = vmatpush1.msra.mxu0 %v3321
    %3323 = vmatprep.subr.mxu0 0.0
    %v3324 = vand.u32 %v2928, 4294901760
    %v3325 = vsub.f32 %v2928, %v3324
    %v3326 = vand.u32 %v3325, 4294901760
    %3327 = vmatpush1.msra.mxu0 %v3326
    %3328 = vmatprep.subr.mxu0 0.0
    %v3329 = vand.u32 %v2929, 4294901760
    %v3330 = vsub.f32 %v2929, %v3329
    %v3331 = vand.u32 %v3330, 4294901760
    %3332 = vmatpush1.msra.mxu0 %v3331
    %3333 = vmatprep.subr.mxu0 0.0
    %v3334 = vand.u32 %v2930, 4294901760
    %v3335 = vsub.f32 %v2930, %v3334
    %v3336 = vand.u32 %v3335, 4294901760
    %3337 = vmatpush1.msra.mxu0 %v3336
    %3338 = vmatprep.subr.mxu0 0.0
    %v3339 = vand.u32 %v2931, 4294901760
    %v3340 = vsub.f32 %v2931, %v3339
    %v3341 = vand.u32 %v3340, 4294901760
    %3342 = vmatpush1.msra.mxu0 %v3341
    %3343 = vmatprep.subr.mxu0 0.0
    %3344 = vmatpush1.msra.mxu0 0.0
    %3345 = vmatprep.subr.mxu0 0.0
    %3346 = vmatpush1.msra.mxu0 0.0
    %3347 = vmatprep.subr.mxu0 0.0
    %3348 = vmatpush1.msra.mxu0 0.0
    %3349 = vmatprep.subr.mxu0 0.0
    %3350 = vmatpush1.msra.mxu0 0.0
    %3351 = vmatprep.subr.mxu0 0.0
    %3352 = vmatpush1.msra.mxu0 0.0
    %3353 = vmatprep.subr.mxu0 0.0
    %3354 = vmatpush1.msra.mxu0 0.0
    %3355 = vmatprep.subr.mxu0 0.0
    %3356 = vmatpush1.msra.mxu0 0.0
    %3357 = vmatprep.subr.mxu0 0.0
    %3358 = vmatpush1.msra.mxu0 0.0
    %3359 = vmatprep.subr.mxu0 0.0
    %3360 = vmatpush1.msra.mxu0 0.0
    %3361 = vmatprep.subr.mxu0 0.0
    %3362 = vmatpush1.msra.mxu0 0.0
    %3363 = vmatprep.subr.mxu0 0.0
    %3364 = vmatpush1.msra.mxu0 0.0
    %3365 = vmatprep.subr.mxu0 0.0
    %3366 = vmatpush1.msra.mxu0 0.0
    %3367 = vmatprep.subr.mxu0 0.0
    %3368 = vmatpush1.msra.mxu0 0.0
    %3369 = vmatprep.subr.mxu0 0.0
    %3370 = vmatpush1.msra.mxu0 0.0
    %3371 = vmatprep.subr.mxu0 0.0
    %3372 = vmatpush1.msra.mxu0 0.0
    %3373 = vmatprep.subr.mxu0 0.0
    %3374 = vmatpush1.msra.mxu0 0.0
    %3375 = vmatprep.subr.mxu0 0.0
    %3376 = vmatpush1.msra.mxu0 0.0
    %3377 = vmatprep.subr.mxu0 0.0
    %3378 = vmatpush1.msra.mxu0 0.0
    %3379 = vmatprep.subr.mxu0 0.0
    %3380 = vmatpush1.msra.mxu0 0.0
    %3381 = vmatprep.subr.mxu0 0.0
    %3382 = vmatpush1.msra.mxu0 0.0
    %3383 = vmatprep.subr.mxu0 0.0
    %3384 = vmatpush1.msra.mxu0 0.0
    %3385 = vmatprep.subr.mxu0 0.0
    %3386 = vmatpush1.msra.mxu0 0.0
    %3387 = vmatprep.subr.mxu0 0.0
    %3388 = vmatpush1.msra.mxu0 0.0
    %3389 = vmatprep.subr.mxu0 0.0
    %3390 = vmatpush1.msra.mxu0 0.0
    %3391 = vmatprep.mubr.f32.mxu0 0.0
    %v3392 = vand.u32 %v2938, 4294901760
    %3393 = vmatmul.mubr.f32.gmra.mrb[0].mxu0 %v3392
    %v3394 = vpop.f32.mrb[0].mxu0
    %v3395 = vadd.f32 %v3300, %v3394
    %v3396 = vpop.f32.mrb[0].mxu0
    %3397 = vdwg.mxu0
    %3398 = vmatprep.subr.mxu0 0.0
    %v3399 = vand.u32 %v2924, 4294901760
    %3400 = vmatpush1.msra.mxu0 %v3399
    %3401 = vmatprep.subr.mxu0 0.0
    %v3402 = vand.u32 %v2925, 4294901760
    %3403 = vmatpush1.msra.mxu0 %v3402
    %3404 = vmatprep.subr.mxu0 0.0
    %v3405 = vand.u32 %v2926, 4294901760
    %3406 = vmatpush1.msra.mxu0 %v3405
    %3407 = vmatprep.subr.mxu0 0.0
    %v3408 = vand.u32 %v2927, 4294901760
    %3409 = vmatpush1.msra.mxu0 %v3408
    %3410 = vmatprep.subr.mxu0 0.0
    %v3411 = vand.u32 %v2928, 4294901760
    %3412 = vmatpush1.msra.mxu0 %v3411
    %3413 = vmatprep.subr.mxu0 0.0
    %v3414 = vand.u32 %v2929, 4294901760
    %3415 = vmatpush1.msra.mxu0 %v3414
    %3416 = vmatprep.subr.mxu0 0.0
    %v3417 = vand.u32 %v2930, 4294901760
    %3418 = vmatpush1.msra.mxu0 %v3417
    %3419 = vmatprep.subr.mxu0 0.0
    %v3420 = vand.u32 %v2931, 4294901760
    %3421 = vmatpush1.msra.mxu0 %v3420
    %3422 = vmatprep.subr.mxu0 0.0
    %3423 = vmatpush1.msra.mxu0 0.0
    %3424 = vmatprep.subr.mxu0 0.0
    %3425 = vmatpush1.msra.mxu0 0.0
    %3426 = vmatprep.subr.mxu0 0.0
    %3427 = vmatpush1.msra.mxu0 0.0
    %3428 = vmatprep.subr.mxu0 0.0
    %3429 = vmatpush1.msra.mxu0 0.0
    %3430 = vmatprep.subr.mxu0 0.0
    %3431 = vmatpush1.msra.mxu0 0.0
    %3432 = vmatprep.subr.mxu0 0.0
    %3433 = vmatpush1.msra.mxu0 0.0
    %3434 = vmatprep.subr.mxu0 0.0
    %3435 = vmatpush1.msra.mxu0 0.0
    %3436 = vmatprep.subr.mxu0 0.0
    %3437 = vmatpush1.msra.mxu0 0.0
    %3438 = vmatprep.subr.mxu0 0.0
    %3439 = vmatpush1.msra.mxu0 0.0
    %3440 = vmatprep.subr.mxu0 0.0
    %3441 = vmatpush1.msra.mxu0 0.0
    %3442 = vmatprep.subr.mxu0 0.0
    %3443 = vmatpush1.msra.mxu0 0.0
    %3444 = vmatprep.subr.mxu0 0.0
    %3445 = vmatpush1.msra.mxu0 0.0
    %3446 = vmatprep.subr.mxu0 0.0
    %3447 = vmatpush1.msra.mxu0 0.0
    %3448 = vmatprep.subr.mxu0 0.0
    %3449 = vmatpush1.msra.mxu0 0.0
    %3450 = vmatprep.subr.mxu0 0.0
    %3451 = vmatpush1.msra.mxu0 0.0
    %3452 = vmatprep.subr.mxu0 0.0
    %3453 = vmatpush1.msra.mxu0 0.0
    %3454 = vmatprep.subr.mxu0 0.0
    %3455 = vmatpush1.msra.mxu0 0.0
    %3456 = vmatprep.subr.mxu0 0.0
    %3457 = vmatpush1.msra.mxu0 0.0
    %3458 = vmatprep.subr.mxu0 0.0
    %3459 = vmatpush1.msra.mxu0 0.0
    %3460 = vmatprep.subr.mxu0 0.0
    %3461 = vmatpush1.msra.mxu0 0.0
    %3462 = vmatprep.subr.mxu0 0.0
    %3463 = vmatpush1.msra.mxu0 0.0
    %3464 = vmatprep.subr.mxu0 0.0
    %3465 = vmatpush1.msra.mxu0 0.0
    %3466 = vmatprep.subr.mxu0 0.0
    %3467 = vmatpush1.msra.mxu0 0.0
    %3468 = vmatprep.subr.mxu0 0.0
    %3469 = vmatpush1.msra.mxu0 0.0
    %3470 = vmatprep.mubr.f32.mxu0 0.0
    %v3471 = vand.u32 %v2938, 4294901760
    %3472 = vmatmul.mubr.f32.gmra.mrb[0].mxu0 %v3471
    %v3473 = vpop.f32.mrb[0].mxu0
    %v3474 = vadd.f32 %v3395, %v3473
    %v3475 = vpop.f32.mrb[0].mxu0
    %3476 = vdwg.mxu0
    %v3477 = vlaneseq
    %v3478 = vshrl.u32 %v3477, 7
    %v3479 = vsub.s32 0, %v3478
    %v3480 = vrot.slane %v3474, %v3479
    %s3482 = sor.u32 256, 16
    %3483 = vbcast.lane.b32.xlu0 %v3480, %s3482
    %v3484 = vpop.permute.xlu0 %3483
    %v3485 = vlaneseq
    %v3486 = vshrl.u32 %v3485, 7
    %v3487 = vsub.s32 1, %v3486
    %v3488 = vrot.slane %v3474, %v3487
    %s3490 = sor.u32 256, 16
    %3491 = vbcast.lane.b32.xlu0 %v3488, %s3490
    %v3492 = vpop.permute.xlu0 %3491
    %v3495 = vunpack.c.l.s4 1966171168
    %v3496 = vunpack.c.0.s8 %v3495
    %v3497 = vlaneseq
    %v3498 = vshrl.u32 %v3497, 7
    %v3499 = vsub.s32 %v3496, %v3498
    %v3500 = vrot.slane %v3474, %v3499
    %v3501 = vcombine.high %v3500, %v3500
    %v3503 = vunpack.c.l.s4 1966171168
    %v3504 = vunpack.c.0.s8 %v3503
    %v3505 = vlaneseq
    %v3506 = vshrl.u32 %v3505, 7
    %v3507 = vsub.s32 %v3504, %v3506
    %v3508 = vrot.slane %v3500, %v3507
    %v3510 = vunpack.c.l.s4 1966171168
    %v3511 = vunpack.c.0.s8 %v3510
    %v3512 = vlaneseq
    %v3513 = vshrl.u32 %v3512, 7
    %v3514 = vsub.s32 %v3511, %v3513
    %v3515 = vrot.slane %v3501, %v3514
    %v3516 = vlaneseq
    %v3517 = vshrl.u32 %v3516, 7
    %v3518 = vsub.s32 0, %v3517
    %v3519 = vrot.slane %v3508, %v3518
    %v3520 = vlaneseq
    %v3521 = vshrl.u32 %v3520, 7
    %v3522 = vsub.s32 0, %v3521
    %v3523 = vrot.slane %v3515, %v3522
    %v3526 = vmul.f32 %v3484, %v3519
    %v3527 = vmul.f32 %v3492, %v3523
    %vm3528 = vcmask 130112
    %v3529 = vsel %vm3528, %v3526, -inf
    %3530 = vmax.xlane.f32.xlu0 %v3529
    %v3531 = vpop.xlane.xlu0 %3530
    %v3532 = vsel %vm3528, %v3527, -inf
    %3533 = vmax.xlane.f32.xlu0 %v3532
    %v3534 = vpop.xlane.xlu0 %3533
    %v3535 = vsub.f32 %v3526, %v3531
    %v3536 = vsub.f32 %v3527, %v3534
    %v3537 = vmul.f32 %v3535, 1.442695
    %v3538 = vpow.pop %v3537
    %v3539 = vmul.f32 %v3536, 1.442695
    %v3540 = vpow.pop %v3539
    %3543 = vrot.lane.b32.xlu0 %v3538, 120
    %v3544 = vpop.permute.xlu0 %3543
    %3545 = vrot.lane.b32.xlu0 %v3540, 120
    %v3546 = vpop.permute.xlu0 %3545
    %vm3549 = vcmask 64512
    %v3550 = vsel %vm3549, %v3544, 0.0
    %3551 = vadd.xlane.f32.xlu0 %v3550
    %v3552 = vpop.xlane.xlu0 %3551
    %v3553 = vsel %vm3549, %v3546, 0.0
    %3554 = vadd.xlane.f32.xlu0 %v3553
    %v3555 = vpop.xlane.xlu0 %3554
    %v3556 = vrcp.pop %v3552
    %v3557 = vmul.f32 %v3538, %v3556
    %v3558 = vrcp.pop %v3555
    %v3559 = vmul.f32 %v3540, %v3558
    %3560 = vrot.lane.b32.xlu0 %v3519, 8
    %v3561 = vpop.permute.xlu0 %3560
    %3562 = vrot.lane.b32.xlu0 %v3523, 8
    %v3563 = vpop.permute.xlu0 %3562
    %v3566 = vmul.f32 %v3557, %v3561
    %v3567 = vmul.f32 %v3559, %v3563
    %3570 = vrot.lane.b32.xlu0 %v3566, 120
    %v3571 = vpop.permute.xlu0 %3570
    %3572 = vrot.lane.b32.xlu0 %v3567, 120
    %v3573 = vpop.permute.xlu0 %3572
    %v3576 = vsel %vm3549, %v3571, 0.0
    %3577 = vadd.xlane.f32.xlu0 %v3576
    %v3578 = vpop.xlane.xlu0 %3577
    %v3579 = vsel %vm3549, %v3573, 0.0
    %3580 = vadd.xlane.f32.xlu0 %v3579
    %v3581 = vpop.xlane.xlu0 %3580
    %v3582 = vld [vmem:[%s1 + $0x70] sm:$0xff]
    %v3583 = vld [vmem:[%s1 + $0x78] sm:$0x1]
    %v3584 = vlaneseq
    %v3585 = vshrl.u32 %v3584, 7
    %v3586 = vsub.s32 0, %v3585
    %v3587 = vrot.slane %v3583, %v3586
    %v3590 = vlaneseq
    %v3591 = vshrl.u32 %v3590, 7
    %v3592 = vsub.s32 %v1457, %v3591
    %v3593 = vrot.slane %v3578, %v3592
    %v3594 = vlaneseq
    %v3595 = vshrl.u32 %v3594, 7
    %v3596 = vsub.s32 %v1457, %v3595
    %v3597 = vrot.slane %v3581, %v3596
    %vm3598 = vcmask 1041409
    %v3599 = vsel %vm3598, %v3597, %v3593
    %v3600 = vsel %vm3549, %v3599, 0
    %3602 = vmatprep.subr.mxu0 0.0
    %v3603 = vand.u32 %v3582, 4294901760
    %3604 = vmatpush1.msra.mxu0 %v3603
    %3605 = vmatprep.subr.mxu0 0.0
    %3606 = vmatpush1.msra.mxu0 0.0
    %3607 = vmatprep.subr.mxu0 0.0
    %3608 = vmatpush1.msra.mxu0 0.0
    %3609 = vmatprep.subr.mxu0 0.0
    %3610 = vmatpush1.msra.mxu0 0.0
    %3611 = vmatprep.subr.mxu0 0.0
    %3612 = vmatpush1.msra.mxu0 0.0
    %3613 = vmatprep.subr.mxu0 0.0
    %3614 = vmatpush1.msra.mxu0 0.0
    %3615 = vmatprep.subr.mxu0 0.0
    %3616 = vmatpush1.msra.mxu0 0.0
    %3617 = vmatprep.subr.mxu0 0.0
    %3618 = vmatpush1.msra.mxu0 0.0
    %3619 = vmatprep.subr.mxu0 0.0
    %3620 = vmatpush1.msra.mxu0 0.0
    %3621 = vmatprep.subr.mxu0 0.0
    %3622 = vmatpush1.msra.mxu0 0.0
    %3623 = vmatprep.subr.mxu0 0.0
    %3624 = vmatpush1.msra.mxu0 0.0
    %3625 = vmatprep.subr.mxu0 0.0
    %3626 = vmatpush1.msra.mxu0 0.0
    %3627 = vmatprep.subr.mxu0 0.0
    %3628 = vmatpush1.msra.mxu0 0.0
    %3629 = vmatprep.subr.mxu0 0.0
    %3630 = vmatpush1.msra.mxu0 0.0
    %3631 = vmatprep.subr.mxu0 0.0
    %3632 = vmatpush1.msra.mxu0 0.0
    %3633 = vmatprep.subr.mxu0 0.0
    %3634 = vmatpush1.msra.mxu0 0.0
    %3635 = vmatprep.subr.mxu0 0.0
    %3636 = vmatpush1.msra.mxu0 0.0
    %3637 = vmatprep.subr.mxu0 0.0
    %3638 = vmatpush1.msra.mxu0 0.0
    %3639 = vmatprep.subr.mxu0 0.0
    %3640 = vmatpush1.msra.mxu0 0.0
    %3641 = vmatprep.subr.mxu0 0.0
    %3642 = vmatpush1.msra.mxu0 0.0
    %3643 = vmatprep.subr.mxu0 0.0
    %3644 = vmatpush1.msra.mxu0 0.0
    %3645 = vmatprep.subr.mxu0 0.0
    %3646 = vmatpush1.msra.mxu0 0.0
    %3647 = vmatprep.subr.mxu0 0.0
    %3648 = vmatpush1.msra.mxu0 0.0
    %3649 = vmatprep.subr.mxu0 0.0
    %3650 = vmatpush1.msra.mxu0 0.0
    %3651 = vmatprep.subr.mxu0 0.0
    %3652 = vmatpush1.msra.mxu0 0.0
    %3653 = vmatprep.subr.mxu0 0.0
    %3654 = vmatpush1.msra.mxu0 0.0
    %3655 = vmatprep.subr.mxu0 0.0
    %3656 = vmatpush1.msra.mxu0 0.0
    %3657 = vmatprep.subr.mxu0 0.0
    %3658 = vmatpush1.msra.mxu0 0.0
    %3659 = vmatprep.subr.mxu0 0.0
    %3660 = vmatpush1.msra.mxu0 0.0
    %3661 = vmatprep.subr.mxu0 0.0
    %3662 = vmatpush1.msra.mxu0 0.0
    %3663 = vmatprep.subr.mxu0 0.0
    %3664 = vmatpush1.msra.mxu0 0.0
    %3665 = vmatprep.subr.mxu0 0.0
    %3666 = vmatpush1.msra.mxu0 0.0
    %3667 = vmatprep.mubr.f32.mxu0 0.0
    %v3668 = vand.u32 %v3600, 4294901760
    %v3669 = vsub.f32 %v3600, %v3668
    %v3670 = vand.u32 %v3669, 4294901760
    %v3671 = vsub.f32 %v3669, %v3670
    %v3672 = vand.u32 %v3671, 4294901760
    %3673 = vmatmul.mubr.f32.gmra.mrb[0].mxu0 %v3672
    %v3674 = vpop.f32.mrb[0].mxu0
    %v3675 = vadd.f32 %v3587, %v3674
    %v3676 = vpop.f32.mrb[0].mxu0
    %3677 = vdwg.mxu0
    %3678 = vmatprep.subr.mxu0 0.0
    %v3679 = vand.u32 %v3582, 4294901760
    %v3680 = vsub.f32 %v3582, %v3679
    %v3681 = vand.u32 %v3680, 4294901760
    %v3682 = vsub.f32 %v3680, %v3681
    %v3683 = vand.u32 %v3682, 4294901760
    %3684 = vmatpush1.msra.mxu0 %v3683
    %3685 = vmatprep.subr.mxu0 0.0
    %3686 = vmatpush1.msra.mxu0 0.0
    %3687 = vmatprep.subr.mxu0 0.0
    %3688 = vmatpush1.msra.mxu0 0.0
    %3689 = vmatprep.subr.mxu0 0.0
    %3690 = vmatpush1.msra.mxu0 0.0
    %3691 = vmatprep.subr.mxu0 0.0
    %3692 = vmatpush1.msra.mxu0 0.0
    %3693 = vmatprep.subr.mxu0 0.0
    %3694 = vmatpush1.msra.mxu0 0.0
    %3695 = vmatprep.subr.mxu0 0.0
    %3696 = vmatpush1.msra.mxu0 0.0
    %3697 = vmatprep.subr.mxu0 0.0
    %3698 = vmatpush1.msra.mxu0 0.0
    %3699 = vmatprep.subr.mxu0 0.0
    %3700 = vmatpush1.msra.mxu0 0.0
    %3701 = vmatprep.subr.mxu0 0.0
    %3702 = vmatpush1.msra.mxu0 0.0
    %3703 = vmatprep.subr.mxu0 0.0
    %3704 = vmatpush1.msra.mxu0 0.0
    %3705 = vmatprep.subr.mxu0 0.0
    %3706 = vmatpush1.msra.mxu0 0.0
    %3707 = vmatprep.subr.mxu0 0.0
    %3708 = vmatpush1.msra.mxu0 0.0
    %3709 = vmatprep.subr.mxu0 0.0
    %3710 = vmatpush1.msra.mxu0 0.0
    %3711 = vmatprep.subr.mxu0 0.0
    %3712 = vmatpush1.msra.mxu0 0.0
    %3713 = vmatprep.subr.mxu0 0.0
    %3714 = vmatpush1.msra.mxu0 0.0
    %3715 = vmatprep.subr.mxu0 0.0
    %3716 = vmatpush1.msra.mxu0 0.0
    %3717 = vmatprep.subr.mxu0 0.0
    %3718 = vmatpush1.msra.mxu0 0.0
    %3719 = vmatprep.subr.mxu0 0.0
    %3720 = vmatpush1.msra.mxu0 0.0
    %3721 = vmatprep.subr.mxu0 0.0
    %3722 = vmatpush1.msra.mxu0 0.0
    %3723 = vmatprep.subr.mxu0 0.0
    %3724 = vmatpush1.msra.mxu0 0.0
    %3725 = vmatprep.subr.mxu0 0.0
    %3726 = vmatpush1.msra.mxu0 0.0
    %3727 = vmatprep.subr.mxu0 0.0
    %3728 = vmatpush1.msra.mxu0 0.0
    %3729 = vmatprep.subr.mxu0 0.0
    %3730 = vmatpush1.msra.mxu0 0.0
    %3731 = vmatprep.subr.mxu0 0.0
    %3732 = vmatpush1.msra.mxu0 0.0
    %3733 = vmatprep.subr.mxu0 0.0
    %3734 = vmatpush1.msra.mxu0 0.0
    %3735 = vmatprep.subr.mxu0 0.0
    %3736 = vmatpush1.msra.mxu0 0.0
    %3737 = vmatprep.subr.mxu0 0.0
    %3738 = vmatpush1.msra.mxu0 0.0
    %3739 = vmatprep.subr.mxu0 0.0
    %3740 = vmatpush1.msra.mxu0 0.0
    %3741 = vmatprep.subr.mxu0 0.0
    %3742 = vmatpush1.msra.mxu0 0.0
    %3743 = vmatprep.subr.mxu0 0.0
    %3744 = vmatpush1.msra.mxu0 0.0
    %3745 = vmatprep.subr.mxu0 0.0
    %3746 = vmatpush1.msra.mxu0 0.0
    %3747 = vmatprep.mubr.f32.mxu0 0.0
    %v3748 = vand.u32 %v3600, 4294901760
    %3749 = vmatmul.mubr.f32.gmra.mrb[0].mxu0 %v3748
    %v3750 = vpop.f32.mrb[0].mxu0
    %v3751 = vadd.f32 %v3675, %v3750
    %v3752 = vpop.f32.mrb[0].mxu0
    %3753 = vdwg.mxu0
    %3754 = vmatprep.subr.mxu0 0.0
    %v3755 = vand.u32 %v3582, 4294901760
    %v3756 = vsub.f32 %v3582, %v3755
    %3757 = vmatpush1.msra.mxu0 %v3756
    %3758 = vmatprep.subr.mxu0 0.0
    %3759 = vmatpush1.msra.mxu0 0.0
    %3760 = vmatprep.subr.mxu0 0.0
    %3761 = vmatpush1.msra.mxu0 0.0
    %3762 = vmatprep.subr.mxu0 0.0
    %3763 = vmatpush1.msra.mxu0 0.0
    %3764 = vmatprep.subr.mxu0 0.0
    %3765 = vmatpush1.msra.mxu0 0.0
    %3766 = vmatprep.subr.mxu0 0.0
    %3767 = vmatpush1.msra.mxu0 0.0
    %3768 = vmatprep.subr.mxu0 0.0
    %3769 = vmatpush1.msra.mxu0 0.0
    %3770 = vmatprep.subr.mxu0 0.0
    %3771 = vmatpush1.msra.mxu0 0.0
    %3772 = vmatprep.subr.mxu0 0.0
    %3773 = vmatpush1.msra.mxu0 0.0
    %3774 = vmatprep.subr.mxu0 0.0
    %3775 = vmatpush1.msra.mxu0 0.0
    %3776 = vmatprep.subr.mxu0 0.0
    %3777 = vmatpush1.msra.mxu0 0.0
    %3778 = vmatprep.subr.mxu0 0.0
    %3779 = vmatpush1.msra.mxu0 0.0
    %3780 = vmatprep.subr.mxu0 0.0
    %3781 = vmatpush1.msra.mxu0 0.0
    %3782 = vmatprep.subr.mxu0 0.0
    %3783 = vmatpush1.msra.mxu0 0.0
    %3784 = vmatprep.subr.mxu0 0.0
    %3785 = vmatpush1.msra.mxu0 0.0
    %3786 = vmatprep.subr.mxu0 0.0
    %3787 = vmatpush1.msra.mxu0 0.0
    %3788 = vmatprep.subr.mxu0 0.0
    %3789 = vmatpush1.msra.mxu0 0.0
    %3790 = vmatprep.subr.mxu0 0.0
    %3791 = vmatpush1.msra.mxu0 0.0
    %3792 = vmatprep.subr.mxu0 0.0
    %3793 = vmatpush1.msra.mxu0 0.0
    %3794 = vmatprep.subr.mxu0 0.0
    %3795 = vmatpush1.msra.mxu0 0.0
    %3796 = vmatprep.subr.mxu0 0.0
    %3797 = vmatpush1.msra.mxu0 0.0
    %3798 = vmatprep.subr.mxu0 0.0
    %3799 = vmatpush1.msra.mxu0 0.0
    %3800 = vmatprep.subr.mxu0 0.0
    %3801 = vmatpush1.msra.mxu0 0.0
    %3802 = vmatprep.subr.mxu0 0.0
    %3803 = vmatpush1.msra.mxu0 0.0
    %3804 = vmatprep.subr.mxu0 0.0
    %3805 = vmatpush1.msra.mxu0 0.0
    %3806 = vmatprep.subr.mxu0 0.0
    %3807 = vmatpush1.msra.mxu0 0.0
    %3808 = vmatprep.subr.mxu0 0.0
    %3809 = vmatpush1.msra.mxu0 0.0
    %3810 = vmatprep.subr.mxu0 0.0
    %3811 = vmatpush1.msra.mxu0 0.0
    %3812 = vmatprep.subr.mxu0 0.0
    %3813 = vmatpush1.msra.mxu0 0.0
    %3814 = vmatprep.subr.mxu0 0.0
    %3815 = vmatpush1.msra.mxu0 0.0
    %3816 = vmatprep.subr.mxu0 0.0
    %3817 = vmatpush1.msra.mxu0 0.0
    %3818 = vmatprep.subr.mxu0 0.0
    %3819 = vmatpush1.msra.mxu0 0.0
    %3820 = vmatprep.mubr.f32.mxu0 0.0
    %v3821 = vand.u32 %v3600, 4294901760
    %v3822 = vsub.f32 %v3600, %v3821
    %3823 = vmatmul.mubr.f32.gmra.mrb[0].mxu0 %v3822
    %v3824 = vpop.f32.mrb[0].mxu0
    %v3825 = vadd.f32 %v3751, %v3824
    %v3826 = vpop.f32.mrb[0].mxu0
    %3827 = vdwg.mxu0
    %3828 = vmatprep.subr.mxu0 0.0
    %v3829 = vand.u32 %v3582, 4294901760
    %3830 = vmatpush1.msra.mxu0 %v3829
    %3831 = vmatprep.subr.mxu0 0.0
    %3832 = vmatpush1.msra.mxu0 0.0
    %3833 = vmatprep.subr.mxu0 0.0
    %3834 = vmatpush1.msra.mxu0 0.0
    %3835 = vmatprep.subr.mxu0 0.0
    %3836 = vmatpush1.msra.mxu0 0.0
    %3837 = vmatprep.subr.mxu0 0.0
    %3838 = vmatpush1.msra.mxu0 0.0
    %3839 = vmatprep.subr.mxu0 0.0
    %3840 = vmatpush1.msra.mxu0 0.0
    %3841 = vmatprep.subr.mxu0 0.0
    %3842 = vmatpush1.msra.mxu0 0.0
    %3843 = vmatprep.subr.mxu0 0.0
    %3844 = vmatpush1.msra.mxu0 0.0
    %3845 = vmatprep.subr.mxu0 0.0
    %3846 = vmatpush1.msra.mxu0 0.0
    %3847 = vmatprep.subr.mxu0 0.0
    %3848 = vmatpush1.msra.mxu0 0.0
    %3849 = vmatprep.subr.mxu0 0.0
    %3850 = vmatpush1.msra.mxu0 0.0
    %3851 = vmatprep.subr.mxu0 0.0
    %3852 = vmatpush1.msra.mxu0 0.0
    %3853 = vmatprep.subr.mxu0 0.0
    %3854 = vmatpush1.msra.mxu0 0.0
    %3855 = vmatprep.subr.mxu0 0.0
    %3856 = vmatpush1.msra.mxu0 0.0
    %3857 = vmatprep.subr.mxu0 0.0
    %3858 = vmatpush1.msra.mxu0 0.0
    %3859 = vmatprep.subr.mxu0 0.0
    %3860 = vmatpush1.msra.mxu0 0.0
    %3861 = vmatprep.subr.mxu0 0.0
    %3862 = vmatpush1.msra.mxu0 0.0
    %3863 = vmatprep.subr.mxu0 0.0
    %3864 = vmatpush1.msra.mxu0 0.0
    %3865 = vmatprep.subr.mxu0 0.0
    %3866 = vmatpush1.msra.mxu0 0.0
    %3867 = vmatprep.subr.mxu0 0.0
    %3868 = vmatpush1.msra.mxu0 0.0
    %3869 = vmatprep.subr.mxu0 0.0
    %3870 = vmatpush1.msra.mxu0 0.0
    %3871 = vmatprep.subr.mxu0 0.0
    %3872 = vmatpush1.msra.mxu0 0.0
    %3873 = vmatprep.subr.mxu0 0.0
    %3874 = vmatpush1.msra.mxu0 0.0
    %3875 = vmatprep.subr.mxu0 0.0
    %3876 = vmatpush1.msra.mxu0 0.0
    %3877 = vmatprep.subr.mxu0 0.0
    %3878 = vmatpush1.msra.mxu0 0.0
    %3879 = vmatprep.subr.mxu0 0.0
    %3880 = vmatpush1.msra.mxu0 0.0
    %3881 = vmatprep.subr.mxu0 0.0
    %3882 = vmatpush1.msra.mxu0 0.0
    %3883 = vmatprep.subr.mxu0 0.0
    %3884 = vmatpush1.msra.mxu0 0.0
    %3885 = vmatprep.subr.mxu0 0.0
    %3886 = vmatpush1.msra.mxu0 0.0
    %3887 = vmatprep.subr.mxu0 0.0
    %3888 = vmatpush1.msra.mxu0 0.0
    %3889 = vmatprep.subr.mxu0 0.0
    %3890 = vmatpush1.msra.mxu0 0.0
    %3891 = vmatprep.subr.mxu0 0.0
    %3892 = vmatpush1.msra.mxu0 0.0
    %3893 = vmatprep.mubr.f32.mxu0 0.0
    %v3894 = vand.u32 %v3600, 4294901760
    %v3895 = vsub.f32 %v3600, %v3894
    %v3896 = vand.u32 %v3895, 4294901760
    %3897 = vmatmul.mubr.f32.gmra.mrb[0].mxu0 %v3896
    %v3898 = vpop.f32.mrb[0].mxu0
    %v3899 = vadd.f32 %v3825, %v3898
    %v3900 = vpop.f32.mrb[0].mxu0
    %3901 = vdwg.mxu0
    %3902 = vmatprep.subr.mxu0 0.0
    %v3903 = vand.u32 %v3582, 4294901760
    %v3904 = vsub.f32 %v3582, %v3903
    %v3905 = vand.u32 %v3904, 4294901760
    %3906 = vmatpush1.msra.mxu0 %v3905
    %3907 = vmatprep.subr.mxu0 0.0
    %3908 = vmatpush1.msra.mxu0 0.0
    %3909 = vmatprep.subr.mxu0 0.0
    %3910 = vmatpush1.msra.mxu0 0.0
    %3911 = vmatprep.subr.mxu0 0.0
    %3912 = vmatpush1.msra.mxu0 0.0
    %3913 = vmatprep.subr.mxu0 0.0
    %3914 = vmatpush1.msra.mxu0 0.0
    %3915 = vmatprep.subr.mxu0 0.0
    %3916 = vmatpush1.msra.mxu0 0.0
    %3917 = vmatprep.subr.mxu0 0.0
    %3918 = vmatpush1.msra.mxu0 0.0
    %3919 = vmatprep.subr.mxu0 0.0
    %3920 = vmatpush1.msra.mxu0 0.0
    %3921 = vmatprep.subr.mxu0 0.0
    %3922 = vmatpush1.msra.mxu0 0.0
    %3923 = vmatprep.subr.mxu0 0.0
    %3924 = vmatpush1.msra.mxu0 0.0
    %3925 = vmatprep.subr.mxu0 0.0
    %3926 = vmatpush1.msra.mxu0 0.0
    %3927 = vmatprep.subr.mxu0 0.0
    %3928 = vmatpush1.msra.mxu0 0.0
    %3929 = vmatprep.subr.mxu0 0.0
    %3930 = vmatpush1.msra.mxu0 0.0
    %3931 = vmatprep.subr.mxu0 0.0
    %3932 = vmatpush1.msra.mxu0 0.0
    %3933 = vmatprep.subr.mxu0 0.0
    %3934 = vmatpush1.msra.mxu0 0.0
    %3935 = vmatprep.subr.mxu0 0.0
    %3936 = vmatpush1.msra.mxu0 0.0
    %3937 = vmatprep.subr.mxu0 0.0
    %3938 = vmatpush1.msra.mxu0 0.0
    %3939 = vmatprep.subr.mxu0 0.0
    %3940 = vmatpush1.msra.mxu0 0.0
    %3941 = vmatprep.subr.mxu0 0.0
    %3942 = vmatpush1.msra.mxu0 0.0
    %3943 = vmatprep.subr.mxu0 0.0
    %3944 = vmatpush1.msra.mxu0 0.0
    %3945 = vmatprep.subr.mxu0 0.0
    %3946 = vmatpush1.msra.mxu0 0.0
    %3947 = vmatprep.subr.mxu0 0.0
    %3948 = vmatpush1.msra.mxu0 0.0
    %3949 = vmatprep.subr.mxu0 0.0
    %3950 = vmatpush1.msra.mxu0 0.0
    %3951 = vmatprep.subr.mxu0 0.0
    %3952 = vmatpush1.msra.mxu0 0.0
    %3953 = vmatprep.subr.mxu0 0.0
    %3954 = vmatpush1.msra.mxu0 0.0
    %3955 = vmatprep.subr.mxu0 0.0
    %3956 = vmatpush1.msra.mxu0 0.0
    %3957 = vmatprep.subr.mxu0 0.0
    %3958 = vmatpush1.msra.mxu0 0.0
    %3959 = vmatprep.subr.mxu0 0.0
    %3960 = vmatpush1.msra.mxu0 0.0
    %3961 = vmatprep.subr.mxu0 0.0
    %3962 = vmatpush1.msra.mxu0 0.0
    %3963 = vmatprep.subr.mxu0 0.0
    %3964 = vmatpush1.msra.mxu0 0.0
    %3965 = vmatprep.subr.mxu0 0.0
    %3966 = vmatpush1.msra.mxu0 0.0
    %3967 = vmatprep.subr.mxu0 0.0
    %3968 = vmatpush1.msra.mxu0 0.0
    %3969 = vmatprep.mubr.f32.mxu0 0.0
    %v3970 = vand.u32 %v3600, 4294901760
    %3971 = vmatmul.mubr.f32.gmra.mrb[0].mxu0 %v3970
    %v3972 = vpop.f32.mrb[0].mxu0
    %v3973 = vadd.f32 %v3899, %v3972
    %v3974 = vpop.f32.mrb[0].mxu0
    %3975 = vdwg.mxu0
    %3976 = vmatprep.subr.mxu0 0.0
    %v3977 = vand.u32 %v3582, 4294901760
    %3978 = vmatpush1.msra.mxu0 %v3977
    %3979 = vmatprep.subr.mxu0 0.0
    %3980 = vmatpush1.msra.mxu0 0.0
    %3981 = vmatprep.subr.mxu0 0.0
    %3982 = vmatpush1.msra.mxu0 0.0
    %3983 = vmatprep.subr.mxu0 0.0
    %3984 = vmatpush1.msra.mxu0 0.0
    %3985 = vmatprep.subr.mxu0 0.0
    %3986 = vmatpush1.msra.mxu0 0.0
    %3987 = vmatprep.subr.mxu0 0.0
    %3988 = vmatpush1.msra.mxu0 0.0
    %3989 = vmatprep.subr.mxu0 0.0
    %3990 = vmatpush1.msra.mxu0 0.0
    %3991 = vmatprep.subr.mxu0 0.0
    %3992 = vmatpush1.msra.mxu0 0.0
    %3993 = vmatprep.subr.mxu0 0.0
    %3994 = vmatpush1.msra.mxu0 0.0
    %3995 = vmatprep.subr.mxu0 0.0
    %3996 = vmatpush1.msra.mxu0 0.0
    %3997 = vmatprep.subr.mxu0 0.0
    %3998 = vmatpush1.msra.mxu0 0.0
    %3999 = vmatprep.subr.mxu0 0.0
    %4000 = vmatpush1.msra.mxu0 0.0
    %4001 = vmatprep.subr.mxu0 0.0
    %4002 = vmatpush1.msra.mxu0 0.0
    %4003 = vmatprep.subr.mxu0 0.0
    %4004 = vmatpush1.msra.mxu0 0.0
    %4005 = vmatprep.subr.mxu0 0.0
    %4006 = vmatpush1.msra.mxu0 0.0
    %4007 = vmatprep.subr.mxu0 0.0
    %4008 = vmatpush1.msra.mxu0 0.0
    %4009 = vmatprep.subr.mxu0 0.0
    %4010 = vmatpush1.msra.mxu0 0.0
    %4011 = vmatprep.subr.mxu0 0.0
    %4012 = vmatpush1.msra.mxu0 0.0
    %4013 = vmatprep.subr.mxu0 0.0
    %4014 = vmatpush1.msra.mxu0 0.0
    %4015 = vmatprep.subr.mxu0 0.0
    %4016 = vmatpush1.msra.mxu0 0.0
    %4017 = vmatprep.subr.mxu0 0.0
    %4018 = vmatpush1.msra.mxu0 0.0
    %4019 = vmatprep.subr.mxu0 0.0
    %4020 = vmatpush1.msra.mxu0 0.0
    %4021 = vmatprep.subr.mxu0 0.0
    %4022 = vmatpush1.msra.mxu0 0.0
    %4023 = vmatprep.subr.mxu0 0.0
    %4024 = vmatpush1.msra.mxu0 0.0
    %4025 = vmatprep.subr.mxu0 0.0
    %4026 = vmatpush1.msra.mxu0 0.0
    %4027 = vmatprep.subr.mxu0 0.0
    %4028 = vmatpush1.msra.mxu0 0.0
    %4029 = vmatprep.subr.mxu0 0.0
    %4030 = vmatpush1.msra.mxu0 0.0
    %4031 = vmatprep.subr.mxu0 0.0
    %4032 = vmatpush1.msra.mxu0 0.0
    %4033 = vmatprep.subr.mxu0 0.0
    %4034 = vmatpush1.msra.mxu0 0.0
    %4035 = vmatprep.subr.mxu0 0.0
    %4036 = vmatpush1.msra.mxu0 0.0
    %4037 = vmatprep.subr.mxu0 0.0
    %4038 = vmatpush1.msra.mxu0 0.0
    %4039 = vmatprep.subr.mxu0 0.0
    %4040 = vmatpush1.msra.mxu0 0.0
    %4041 = vmatprep.mubr.f32.mxu0 0.0
    %v4042 = vand.u32 %v3600, 4294901760
    %4043 = vmatmul.mubr.f32.gmra.mrb[0].mxu0 %v4042
    %v4044 = vpop.f32.mrb[0].mxu0
    %v4045 = vadd.f32 %v3973, %v4044
    %v4046 = vpop.f32.mrb[0].mxu0
    %4047 = vdwg.mxu0
    %v4048 = vadd.f32 %v4045, %v2923
    %v4049 = vld [vmem:[%s2] sm:$0x3]
    %v4050 = vmul.f32 %v4048, %v4049
    %v4051 = vld [vmem:[%s1 + $0x80] sm:$0xff]
    %v4052 = vld [vmem:[%s1 + $0x88] sm:$0xff]
    %v4053 = vld [vmem:[%s1 + $0x90] sm:$0xff]
    %v4054 = vld [vmem:[%s1 + $0x98] sm:$0xff]
    %v4055 = vld [vmem:[%s1 + $0xa0] sm:$0xff]
    %v4056 = vld [vmem:[%s1 + $0xa8] sm:$0xff]
    %v4057 = vld [vmem:[%s1 + $0xb0] sm:$0xff]
    %v4058 = vld [vmem:[%s1 + $0xb8] sm:$0xff]
    %v4059 = vld [vmem:[%s1 + $0xc0] sm:$0x1]
    %v4060 = vlaneseq
    %v4061 = vshrl.u32 %v4060, 7
    %v4062 = vsub.s32 0, %v4061
    %v4063 = vrot.slane %v4059, %v4062
    %v4065 = vsel %vm49, %v4050, 0
    %4067 = vmatprep.subr.mxu0 0.0
    %v4068 = vand.u32 %v4051, 4294901760
    %4069 = vmatpush1.msra.mxu0 %v4068
    %4070 = vmatprep.subr.mxu0 0.0
    %v4071 = vand.u32 %v4052, 4294901760
    %4072 = vmatpush1.msra.mxu0 %v4071
    %4073 = vmatprep.subr.mxu0 0.0
    %v4074 = vand.u32 %v4053, 4294901760
    %4075 = vmatpush1.msra.mxu0 %v4074
    %4076 = vmatprep.subr.mxu0 0.0
    %v4077 = vand.u32 %v4054, 4294901760
    %4078 = vmatpush1.msra.mxu0 %v4077
    %4079 = vmatprep.subr.mxu0 0.0
    %v4080 = vand.u32 %v4055, 4294901760
    %4081 = vmatpush1.msra.mxu0 %v4080
    %4082 = vmatprep.subr.mxu0 0.0
    %v4083 = vand.u32 %v4056, 4294901760
    %4084 = vmatpush1.msra.mxu0 %v4083
    %4085 = vmatprep.subr.mxu0 0.0
    %v4086 = vand.u32 %v4057, 4294901760
    %4087 = vmatpush1.msra.mxu0 %v4086
    %4088 = vmatprep.subr.mxu0 0.0
    %v4089 = vand.u32 %v4058, 4294901760
    %4090 = vmatpush1.msra.mxu0 %v4089
    %4091 = vmatprep.subr.mxu0 0.0
    %4092 = vmatpush1.msra.mxu0 0.0
    %4093 = vmatprep.subr.mxu0 0.0
    %4094 = vmatpush1.msra.mxu0 0.0
    %4095 = vmatprep.subr.mxu0 0.0
    %4096 = vmatpush1.msra.mxu0 0.0
    %4097 = vmatprep.subr.mxu0 0.0
    %4098 = vmatpush1.msra.mxu0 0.0
    %4099 = vmatprep.subr.mxu0 0.0
    %4100 = vmatpush1.msra.mxu0 0.0
    %4101 = vmatprep.subr.mxu0 0.0
    %4102 = vmatpush1.msra.mxu0 0.0
    %4103 = vmatprep.subr.mxu0 0.0
    %4104 = vmatpush1.msra.mxu0 0.0
    %4105 = vmatprep.subr.mxu0 0.0
    %4106 = vmatpush1.msra.mxu0 0.0
    %4107 = vmatprep.subr.mxu0 0.0
    %4108 = vmatpush1.msra.mxu0 0.0
    %4109 = vmatprep.subr.mxu0 0.0
    %4110 = vmatpush1.msra.mxu0 0.0
    %4111 = vmatprep.subr.mxu0 0.0
    %4112 = vmatpush1.msra.mxu0 0.0
    %4113 = vmatprep.subr.mxu0 0.0
    %4114 = vmatpush1.msra.mxu0 0.0
    %4115 = vmatprep.subr.mxu0 0.0
    %4116 = vmatpush1.msra.mxu0 0.0
    %4117 = vmatprep.subr.mxu0 0.0
    %4118 = vmatpush1.msra.mxu0 0.0
    %4119 = vmatprep.subr.mxu0 0.0
    %4120 = vmatpush1.msra.mxu0 0.0
    %4121 = vmatprep.subr.mxu0 0.0
    %4122 = vmatpush1.msra.mxu0 0.0
    %4123 = vmatprep.subr.mxu0 0.0
    %4124 = vmatpush1.msra.mxu0 0.0
    %4125 = vmatprep.subr.mxu0 0.0
    %4126 = vmatpush1.msra.mxu0 0.0
    %4127 = vmatprep.subr.mxu0 0.0
    %4128 = vmatpush1.msra.mxu0 0.0
    %4129 = vmatprep.subr.mxu0 0.0
    %4130 = vmatpush1.msra.mxu0 0.0
    %4131 = vmatprep.subr.mxu0 0.0
    %4132 = vmatpush1.msra.mxu0 0.0
    %4133 = vmatprep.subr.mxu0 0.0
    %4134 = vmatpush1.msra.mxu0 0.0
    %4135 = vmatprep.subr.mxu0 0.0
    %4136 = vmatpush1.msra.mxu0 0.0
    %4137 = vmatprep.subr.mxu0 0.0
    %4138 = vmatpush1.msra.mxu0 0.0
    %4139 = vmatprep.mubr.f32.mxu0 0.0
    %v4140 = vand.u32 %v4065, 4294901760
    %v4141 = vsub.f32 %v4065, %v4140
    %v4142 = vand.u32 %v4141, 4294901760
    %v4143 = vsub.f32 %v4141, %v4142
    %v4144 = vand.u32 %v4143, 4294901760
    %4145 = vmatmul.mubr.f32.gmra.mrb[0].mxu0 %v4144
    %v4146 = vpop.f32.mrb[0].mxu0
    %v4147 = vadd.f32 %v4063, %v4146
    %v4148 = vpop.f32.mrb[0].mxu0
    %4149 = vdwg.mxu0
    %4150 = vmatprep.subr.mxu0 0.0
    %v4151 = vand.u32 %v4051, 4294901760
    %v4152 = vsub.f32 %v4051, %v4151
    %v4153 = vand.u32 %v4152, 4294901760
    %v4154 = vsub.f32 %v4152, %v4153
    %v4155 = vand.u32 %v4154, 4294901760
    %4156 = vmatpush1.msra.mxu0 %v4155
    %4157 = vmatprep.subr.mxu0 0.0
    %v4158 = vand.u32 %v4052, 4294901760
    %v4159 = vsub.f32 %v4052, %v4158
    %v4160 = vand.u32 %v4159, 4294901760
    %v4161 = vsub.f32 %v4159, %v4160
    %v4162 = vand.u32 %v4161, 4294901760
    %4163 = vmatpush1.msra.mxu0 %v4162
    %4164 = vmatprep.subr.mxu0 0.0
    %v4165 = vand.u32 %v4053, 4294901760
    %v4166 = vsub.f32 %v4053, %v4165
    %v4167 = vand.u32 %v4166, 4294901760
    %v4168 = vsub.f32 %v4166, %v4167
    %v4169 = vand.u32 %v4168, 4294901760
    %4170 = vmatpush1.msra.mxu0 %v4169
    %4171 = vmatprep.subr.mxu0 0.0
    %v4172 = vand.u32 %v4054, 4294901760
    %v4173 = vsub.f32 %v4054, %v4172
    %v4174 = vand.u32 %v4173, 4294901760
    %v4175 = vsub.f32 %v4173, %v4174
    %v4176 = vand.u32 %v4175, 4294901760
    %4177 = vmatpush1.msra.mxu0 %v4176
    %4178 = vmatprep.subr.mxu0 0.0
    %v4179 = vand.u32 %v4055, 4294901760
    %v4180 = vsub.f32 %v4055, %v4179
    %v4181 = vand.u32 %v4180, 4294901760
    %v4182 = vsub.f32 %v4180, %v4181
    %v4183 = vand.u32 %v4182, 4294901760
    %4184 = vmatpush1.msra.mxu0 %v4183
    %4185 = vmatprep.subr.mxu0 0.0
    %v4186 = vand.u32 %v4056, 4294901760
    %v4187 = vsub.f32 %v4056, %v4186
    %v4188 = vand.u32 %v4187, 4294901760
    %v4189 = vsub.f32 %v4187, %v4188
    %v4190 = vand.u32 %v4189, 4294901760
    %4191 = vmatpush1.msra.mxu0 %v4190
    %4192 = vmatprep.subr.mxu0 0.0
    %v4193 = vand.u32 %v4057, 4294901760
    %v4194 = vsub.f32 %v4057, %v4193
    %v4195 = vand.u32 %v4194, 4294901760
    %v4196 = vsub.f32 %v4194, %v4195
    %v4197 = vand.u32 %v4196, 4294901760
    %4198 = vmatpush1.msra.mxu0 %v4197
    %4199 = vmatprep.subr.mxu0 0.0
    %v4200 = vand.u32 %v4058, 4294901760
    %v4201 = vsub.f32 %v4058, %v4200
    %v4202 = vand.u32 %v4201, 4294901760
    %v4203 = vsub.f32 %v4201, %v4202
    %v4204 = vand.u32 %v4203, 4294901760
    %4205 = vmatpush1.msra.mxu0 %v4204
    %4206 = vmatprep.subr.mxu0 0.0
    %4207 = vmatpush1.msra.mxu0 0.0
    %4208 = vmatprep.subr.mxu0 0.0
    %4209 = vmatpush1.msra.mxu0 0.0
    %4210 = vmatprep.subr.mxu0 0.0
    %4211 = vmatpush1.msra.mxu0 0.0
    %4212 = vmatprep.subr.mxu0 0.0
    %4213 = vmatpush1.msra.mxu0 0.0
    %4214 = vmatprep.subr.mxu0 0.0
    %4215 = vmatpush1.msra.mxu0 0.0
    %4216 = vmatprep.subr.mxu0 0.0
    %4217 = vmatpush1.msra.mxu0 0.0
    %4218 = vmatprep.subr.mxu0 0.0
    %4219 = vmatpush1.msra.mxu0 0.0
    %4220 = vmatprep.subr.mxu0 0.0
    %4221 = vmatpush1.msra.mxu0 0.0
    %4222 = vmatprep.subr.mxu0 0.0
    %4223 = vmatpush1.msra.mxu0 0.0
    %4224 = vmatprep.subr.mxu0 0.0
    %4225 = vmatpush1.msra.mxu0 0.0
    %4226 = vmatprep.subr.mxu0 0.0
    %4227 = vmatpush1.msra.mxu0 0.0
    %4228 = vmatprep.subr.mxu0 0.0
    %4229 = vmatpush1.msra.mxu0 0.0
    %4230 = vmatprep.subr.mxu0 0.0
    %4231 = vmatpush1.msra.mxu0 0.0
    %4232 = vmatprep.subr.mxu0 0.0
    %4233 = vmatpush1.msra.mxu0 0.0
    %4234 = vmatprep.subr.mxu0 0.0
    %4235 = vmatpush1.msra.mxu0 0.0
    %4236 = vmatprep.subr.mxu0 0.0
    %4237 = vmatpush1.msra.mxu0 0.0
    %4238 = vmatprep.subr.mxu0 0.0
    %4239 = vmatpush1.msra.mxu0 0.0
    %4240 = vmatprep.subr.mxu0 0.0
    %4241 = vmatpush1.msra.mxu0 0.0
    %4242 = vmatprep.subr.mxu0 0.0
    %4243 = vmatpush1.msra.mxu0 0.0
    %4244 = vmatprep.subr.mxu0 0.0
    %4245 = vmatpush1.msra.mxu0 0.0
    %4246 = vmatprep.subr.mxu0 0.0
    %4247 = vmatpush1.msra.mxu0 0.0
    %4248 = vmatprep.subr.mxu0 0.0
    %4249 = vmatpush1.msra.mxu0 0.0
    %4250 = vmatprep.subr.mxu0 0.0
    %4251 = vmatpush1.msra.mxu0 0.0
    %4252 = vmatprep.subr.mxu0 0.0
    %4253 = vmatpush1.msra.mxu0 0.0
    %4254 = vmatprep.mubr.f32.mxu0 0.0
    %v4255 = vand.u32 %v4065, 4294901760
    %4256 = vmatmul.mubr.f32.gmra.mrb[0].mxu0 %v4255
    %v4257 = vpop.f32.mrb[0].mxu0
    %v4258 = vadd.f32 %v4147, %v4257
    %v4259 = vpop.f32.mrb[0].mxu0
    %4260 = vdwg.mxu0
    %4261 = vmatprep.subr.mxu0 0.0
    %v4262 = vand.u32 %v4051, 4294901760
    %v4263 = vsub.f32 %v4051, %v4262
    %4264 = vmatpush1.msra.mxu0 %v4263
    %4265 = vmatprep.subr.mxu0 0.0
    %v4266 = vand.u32 %v4052, 4294901760
    %v4267 = vsub.f32 %v4052, %v4266
    %4268 = vmatpush1.msra.mxu0 %v4267
    %4269 = vmatprep.subr.mxu0 0.0
    %v4270 = vand.u32 %v4053, 4294901760
    %v4271 = vsub.f32 %v4053, %v4270
    %4272 = vmatpush1.msra.mxu0 %v4271
    %4273 = vmatprep.subr.mxu0 0.0
    %v4274 = vand.u32 %v4054, 4294901760
    %v4275 = vsub.f32 %v4054, %v4274
    %4276 = vmatpush1.msra.mxu0 %v4275
    %4277 = vmatprep.subr.mxu0 0.0
    %v4278 = vand.u32 %v4055, 4294901760
    %v4279 = vsub.f32 %v4055, %v4278
    %4280 = vmatpush1.msra.mxu0 %v4279
    %4281 = vmatprep.subr.mxu0 0.0
    %v4282 = vand.u32 %v4056, 4294901760
    %v4283 = vsub.f32 %v4056, %v4282
    %4284 = vmatpush1.msra.mxu0 %v4283
    %4285 = vmatprep.subr.mxu0 0.0
    %v4286 = vand.u32 %v4057, 4294901760
    %v4287 = vsub.f32 %v4057, %v4286
    %4288 = vmatpush1.msra.mxu0 %v4287
    %4289 = vmatprep.subr.mxu0 0.0
    %v4290 = vand.u32 %v4058, 4294901760
    %v4291 = vsub.f32 %v4058, %v4290
    %4292 = vmatpush1.msra.mxu0 %v4291
    %4293 = vmatprep.subr.mxu0 0.0
    %4294 = vmatpush1.msra.mxu0 0.0
    %4295 = vmatprep.subr.mxu0 0.0
    %4296 = vmatpush1.msra.mxu0 0.0
    %4297 = vmatprep.subr.mxu0 0.0
    %4298 = vmatpush1.msra.mxu0 0.0
    %4299 = vmatprep.subr.mxu0 0.0
    %4300 = vmatpush1.msra.mxu0 0.0
    %4301 = vmatprep.subr.mxu0 0.0
    %4302 = vmatpush1.msra.mxu0 0.0
    %4303 = vmatprep.subr.mxu0 0.0
    %4304 = vmatpush1.msra.mxu0 0.0
    %4305 = vmatprep.subr.mxu0 0.0
    %4306 = vmatpush1.msra.mxu0 0.0
    %4307 = vmatprep.subr.mxu0 0.0
    %4308 = vmatpush1.msra.mxu0 0.0
    %4309 = vmatprep.subr.mxu0 0.0
    %4310 = vmatpush1.msra.mxu0 0.0
    %4311 = vmatprep.subr.mxu0 0.0
    %4312 = vmatpush1.msra.mxu0 0.0
    %4313 = vmatprep.subr.mxu0 0.0
    %4314 = vmatpush1.msra.mxu0 0.0
    %4315 = vmatprep.subr.mxu0 0.0
    %4316 = vmatpush1.msra.mxu0 0.0
    %4317 = vmatprep.subr.mxu0 0.0
    %4318 = vmatpush1.msra.mxu0 0.0
    %4319 = vmatprep.subr.mxu0 0.0
    %4320 = vmatpush1.msra.mxu0 0.0
    %4321 = vmatprep.subr.mxu0 0.0
    %4322 = vmatpush1.msra.mxu0 0.0
    %4323 = vmatprep.subr.mxu0 0.0
    %4324 = vmatpush1.msra.mxu0 0.0
    %4325 = vmatprep.subr.mxu0 0.0
    %4326 = vmatpush1.msra.mxu0 0.0
    %4327 = vmatprep.subr.mxu0 0.0
    %4328 = vmatpush1.msra.mxu0 0.0
    %4329 = vmatprep.subr.mxu0 0.0
    %4330 = vmatpush1.msra.mxu0 0.0
    %4331 = vmatprep.subr.mxu0 0.0
    %4332 = vmatpush1.msra.mxu0 0.0
    %4333 = vmatprep.subr.mxu0 0.0
    %4334 = vmatpush1.msra.mxu0 0.0
    %4335 = vmatprep.subr.mxu0 0.0
    %4336 = vmatpush1.msra.mxu0 0.0
    %4337 = vmatprep.subr.mxu0 0.0
    %4338 = vmatpush1.msra.mxu0 0.0
    %4339 = vmatprep.subr.mxu0 0.0
    %4340 = vmatpush1.msra.mxu0 0.0
    %4341 = vmatprep.mubr.f32.mxu0 0.0
    %v4342 = vand.u32 %v4065, 4294901760
    %v4343 = vsub.f32 %v4065, %v4342
    %4344 = vmatmul.mubr.f32.gmra.mrb[0].mxu0 %v4343
    %v4345 = vpop.f32.mrb[0].mxu0
    %v4346 = vadd.f32 %v4258, %v4345
    %v4347 = vpop.f32.mrb[0].mxu0
    %4348 = vdwg.mxu0
    %4349 = vmatprep.subr.mxu0 0.0
    %v4350 = vand.u32 %v4051, 4294901760
    %4351 = vmatpush1.msra.mxu0 %v4350
    %4352 = vmatprep.subr.mxu0 0.0
    %v4353 = vand.u32 %v4052, 4294901760
    %4354 = vmatpush1.msra.mxu0 %v4353
    %4355 = vmatprep.subr.mxu0 0.0
    %v4356 = vand.u32 %v4053, 4294901760
    %4357 = vmatpush1.msra.mxu0 %v4356
    %4358 = vmatprep.subr.mxu0 0.0
    %v4359 = vand.u32 %v4054, 4294901760
    %4360 = vmatpush1.msra.mxu0 %v4359
    %4361 = vmatprep.subr.mxu0 0.0
    %v4362 = vand.u32 %v4055, 4294901760
    %4363 = vmatpush1.msra.mxu0 %v4362
    %4364 = vmatprep.subr.mxu0 0.0
    %v4365 = vand.u32 %v4056, 4294901760
    %4366 = vmatpush1.msra.mxu0 %v4365
    %4367 = vmatprep.subr.mxu0 0.0
    %v4368 = vand.u32 %v4057, 4294901760
    %4369 = vmatpush1.msra.mxu0 %v4368
    %4370 = vmatprep.subr.mxu0 0.0
    %v4371 = vand.u32 %v4058, 4294901760
    %4372 = vmatpush1.msra.mxu0 %v4371
    %4373 = vmatprep.subr.mxu0 0.0
    %4374 = vmatpush1.msra.mxu0 0.0
    %4375 = vmatprep.subr.mxu0 0.0
    %4376 = vmatpush1.msra.mxu0 0.0
    %4377 = vmatprep.subr.mxu0 0.0
    %4378 = vmatpush1.msra.mxu0 0.0
    %4379 = vmatprep.subr.mxu0 0.0
    %4380 = vmatpush1.msra.mxu0 0.0
    %4381 = vmatprep.subr.mxu0 0.0
    %4382 = vmatpush1.msra.mxu0 0.0
    %4383 = vmatprep.subr.mxu0 0.0
    %4384 = vmatpush1.msra.mxu0 0.0
    %4385 = vmatprep.subr.mxu0 0.0
    %4386 = vmatpush1.msra.mxu0 0.0
    %4387 = vmatprep.subr.mxu0 0.0
    %4388 = vmatpush1.msra.mxu0 0.0
    %4389 = vmatprep.subr.mxu0 0.0
    %4390 = vmatpush1.msra.mxu0 0.0
    %4391 = vmatprep.subr.mxu0 0.0
    %4392 = vmatpush1.msra.mxu0 0.0
    %4393 = vmatprep.subr.mxu0 0.0
    %4394 = vmatpush1.msra.mxu0 0.0
    %4395 = vmatprep.subr.mxu0 0.0
    %4396 = vmatpush1.msra.mxu0 0.0
    %4397 = vmatprep.subr.mxu0 0.0
    %4398 = vmatpush1.msra.mxu0 0.0
    %4399 = vmatprep.subr.mxu0 0.0
    %4400 = vmatpush1.msra.mxu0 0.0
    %4401 = vmatprep.subr.mxu0 0.0
    %4402 = vmatpush1.msra.mxu0 0.0
    %4403 = vmatprep.subr.mxu0 0.0
    %4404 = vmatpush1.msra.mxu0 0.0
    %4405 = vmatprep.subr.mxu0 0.0
    %4406 = vmatpush1.msra.mxu0 0.0
    %4407 = vmatprep.subr.mxu0 0.0
    %4408 = vmatpush1.msra.mxu0 0.0
    %4409 = vmatprep.subr.mxu0 0.0
    %4410 = vmatpush1.msra.mxu0 0.0
    %4411 = vmatprep.subr.mxu0 0.0
    %4412 = vmatpush1.msra.mxu0 0.0
    %4413 = vmatprep.subr.mxu0 0.0
    %4414 = vmatpush1.msra.mxu0 0.0
    %4415 = vmatprep.subr.mxu0 0.0
    %4416 = vmatpush1.msra.mxu0 0.0
    %4417 = vmatprep.subr.mxu0 0.0
    %4418 = vmatpush1.msra.mxu0 0.0
    %4419 = vmatprep.subr.mxu0 0.0
    %4420 = vmatpush1.msra.mxu0 0.0
    %4421 = vmatprep.mubr.f32.mxu0 0.0
    %v4422 = vand.u32 %v4065, 4294901760
    %v4423 = vsub.f32 %v4065, %v4422
    %v4424 = vand.u32 %v4423, 4294901760
    %4425 = vmatmul.mubr.f32.gmra.mrb[0].mxu0 %v4424
    %v4426 = vpop.f32.mrb[0].mxu0
    %v4427 = vadd.f32 %v4346, %v4426
    %v4428 = vpop.f32.mrb[0].mxu0
    %4429 = vdwg.mxu0
    %4430 = vmatprep.subr.mxu0 0.0
    %v4431 = vand.u32 %v4051, 4294901760
    %v4432 = vsub.f32 %v4051, %v4431
    %v4433 = vand.u32 %v4432, 4294901760
    %4434 = vmatpush1.msra.mxu0 %v4433
    %4435 = vmatprep.subr.mxu0 0.0
    %v4436 = vand.u32 %v4052, 4294901760
    %v4437 = vsub.f32 %v4052, %v4436
    %v4438 = vand.u32 %v4437, 4294901760
    %4439 = vmatpush1.msra.mxu0 %v4438
    %4440 = vmatprep.subr.mxu0 0.0
    %v4441 = vand.u32 %v4053, 4294901760
    %v4442 = vsub.f32 %v4053, %v4441
    %v4443 = vand.u32 %v4442, 4294901760
    %4444 = vmatpush1.msra.mxu0 %v4443
    %4445 = vmatprep.subr.mxu0 0.0
    %v4446 = vand.u32 %v4054, 4294901760
    %v4447 = vsub.f32 %v4054, %v4446
    %v4448 = vand.u32 %v4447, 4294901760
    %4449 = vmatpush1.msra.mxu0 %v4448
    %4450 = vmatprep.subr.mxu0 0.0
    %v4451 = vand.u32 %v4055, 4294901760
    %v4452 = vsub.f32 %v4055, %v4451
    %v4453 = vand.u32 %v4452, 4294901760
    %4454 = vmatpush1.msra.mxu0 %v4453
    %4455 = vmatprep.subr.mxu0 0.0
    %v4456 = vand.u32 %v4056, 4294901760
    %v4457 = vsub.f32 %v4056, %v4456
    %v4458 = vand.u32 %v4457, 4294901760
    %4459 = vmatpush1.msra.mxu0 %v4458
    %4460 = vmatprep.subr.mxu0 0.0
    %v4461 = vand.u32 %v4057, 4294901760
    %v4462 = vsub.f32 %v4057, %v4461
    %v4463 = vand.u32 %v4462, 4294901760
    %4464 = vmatpush1.msra.mxu0 %v4463
    %4465 = vmatprep.subr.mxu0 0.0
    %v4466 = vand.u32 %v4058, 4294901760
    %v4467 = vsub.f32 %v4058, %v4466
    %v4468 = vand.u32 %v4467, 4294901760
    %4469 = vmatpush1.msra.mxu0 %v4468
    %4470 = vmatprep.subr.mxu0 0.0
    %4471 = vmatpush1.msra.mxu0 0.0
    %4472 = vmatprep.subr.mxu0 0.0
    %4473 = vmatpush1.msra.mxu0 0.0
    %4474 = vmatprep.subr.mxu0 0.0
    %4475 = vmatpush1.msra.mxu0 0.0
    %4476 = vmatprep.subr.mxu0 0.0
    %4477 = vmatpush1.msra.mxu0 0.0
    %4478 = vmatprep.subr.mxu0 0.0
    %4479 = vmatpush1.msra.mxu0 0.0
    %4480 = vmatprep.subr.mxu0 0.0
    %4481 = vmatpush1.msra.mxu0 0.0
    %4482 = vmatprep.subr.mxu0 0.0
    %4483 = vmatpush1.msra.mxu0 0.0
    %4484 = vmatprep.subr.mxu0 0.0
    %4485 = vmatpush1.msra.mxu0 0.0
    %4486 = vmatprep.subr.mxu0 0.0
    %4487 = vmatpush1.msra.mxu0 0.0
    %4488 = vmatprep.subr.mxu0 0.0
    %4489 = vmatpush1.msra.mxu0 0.0
    %4490 = vmatprep.subr.mxu0 0.0
    %4491 = vmatpush1.msra.mxu0 0.0
    %4492 = vmatprep.subr.mxu0 0.0
    %4493 = vmatpush1.msra.mxu0 0.0
    %4494 = vmatprep.subr.mxu0 0.0
    %4495 = vmatpush1.msra.mxu0 0.0
    %4496 = vmatprep.subr.mxu0 0.0
    %4497 = vmatpush1.msra.mxu0 0.0
    %4498 = vmatprep.subr.mxu0 0.0
    %4499 = vmatpush1.msra.mxu0 0.0
    %4500 = vmatprep.subr.mxu0 0.0
    %4501 = vmatpush1.msra.mxu0 0.0
    %4502 = vmatprep.subr.mxu0 0.0
    %4503 = vmatpush1.msra.mxu0 0.0
    %4504 = vmatprep.subr.mxu0 0.0
    %4505 = vmatpush1.msra.mxu0 0.0
    %4506 = vmatprep.subr.mxu0 0.0
    %4507 = vmatpush1.msra.mxu0 0.0
    %4508 = vmatprep.subr.mxu0 0.0
    %4509 = vmatpush1.msra.mxu0 0.0
    %4510 = vmatprep.subr.mxu0 0.0
    %4511 = vmatpush1.msra.mxu0 0.0
    %4512 = vmatprep.subr.mxu0 0.0
    %4513 = vmatpush1.msra.mxu0 0.0
    %4514 = vmatprep.subr.mxu0 0.0
    %4515 = vmatpush1.msra.mxu0 0.0
    %4516 = vmatprep.subr.mxu0 0.0
    %4517 = vmatpush1.msra.mxu0 0.0
    %4518 = vmatprep.mubr.f32.mxu0 0.0
    %v4519 = vand.u32 %v4065, 4294901760
    %4520 = vmatmul.mubr.f32.gmra.mrb[0].mxu0 %v4519
    %v4521 = vpop.f32.mrb[0].mxu0
    %v4522 = vadd.f32 %v4427, %v4521
    %v4523 = vpop.f32.mrb[0].mxu0
    %4524 = vdwg.mxu0
    %4525 = vmatprep.subr.mxu0 0.0
    %v4526 = vand.u32 %v4051, 4294901760
    %4527 = vmatpush1.msra.mxu0 %v4526
    %4528 = vmatprep.subr.mxu0 0.0
    %v4529 = vand.u32 %v4052, 4294901760
    %4530 = vmatpush1.msra.mxu0 %v4529
    %4531 = vmatprep.subr.mxu0 0.0
    %v4532 = vand.u32 %v4053, 4294901760
    %4533 = vmatpush1.msra.mxu0 %v4532
    %4534 = vmatprep.subr.mxu0 0.0
    %v4535 = vand.u32 %v4054, 4294901760
    %4536 = vmatpush1.msra.mxu0 %v4535
    %4537 = vmatprep.subr.mxu0 0.0
    %v4538 = vand.u32 %v4055, 4294901760
    %4539 = vmatpush1.msra.mxu0 %v4538
    %4540 = vmatprep.subr.mxu0 0.0
    %v4541 = vand.u32 %v4056, 4294901760
    %4542 = vmatpush1.msra.mxu0 %v4541
    %4543 = vmatprep.subr.mxu0 0.0
    %v4544 = vand.u32 %v4057, 4294901760
    %4545 = vmatpush1.msra.mxu0 %v4544
    %4546 = vmatprep.subr.mxu0 0.0
    %v4547 = vand.u32 %v4058, 4294901760
    %4548 = vmatpush1.msra.mxu0 %v4547
    %4549 = vmatprep.subr.mxu0 0.0
    %4550 = vmatpush1.msra.mxu0 0.0
    %4551 = vmatprep.subr.mxu0 0.0
    %4552 = vmatpush1.msra.mxu0 0.0
    %4553 = vmatprep.subr.mxu0 0.0
    %4554 = vmatpush1.msra.mxu0 0.0
    %4555 = vmatprep.subr.mxu0 0.0
    %4556 = vmatpush1.msra.mxu0 0.0
    %4557 = vmatprep.subr.mxu0 0.0
    %4558 = vmatpush1.msra.mxu0 0.0
    %4559 = vmatprep.subr.mxu0 0.0
    %4560 = vmatpush1.msra.mxu0 0.0
    %4561 = vmatprep.subr.mxu0 0.0
    %4562 = vmatpush1.msra.mxu0 0.0
    %4563 = vmatprep.subr.mxu0 0.0
    %4564 = vmatpush1.msra.mxu0 0.0
    %4565 = vmatprep.subr.mxu0 0.0
    %4566 = vmatpush1.msra.mxu0 0.0
    %4567 = vmatprep.subr.mxu0 0.0
    %4568 = vmatpush1.msra.mxu0 0.0
    %4569 = vmatprep.subr.mxu0 0.0
    %4570 = vmatpush1.msra.mxu0 0.0
    %4571 = vmatprep.subr.mxu0 0.0
    %4572 = vmatpush1.msra.mxu0 0.0
    %4573 = vmatprep.subr.mxu0 0.0
    %4574 = vmatpush1.msra.mxu0 0.0
    %4575 = vmatprep.subr.mxu0 0.0
    %4576 = vmatpush1.msra.mxu0 0.0
    %4577 = vmatprep.subr.mxu0 0.0
    %4578 = vmatpush1.msra.mxu0 0.0
    %4579 = vmatprep.subr.mxu0 0.0
    %4580 = vmatpush1.msra.mxu0 0.0
    %4581 = vmatprep.subr.mxu0 0.0
    %4582 = vmatpush1.msra.mxu0 0.0
    %4583 = vmatprep.subr.mxu0 0.0
    %4584 = vmatpush1.msra.mxu0 0.0
    %4585 = vmatprep.subr.mxu0 0.0
    %4586 = vmatpush1.msra.mxu0 0.0
    %4587 = vmatprep.subr.mxu0 0.0
    %4588 = vmatpush1.msra.mxu0 0.0
    %4589 = vmatprep.subr.mxu0 0.0
    %4590 = vmatpush1.msra.mxu0 0.0
    %4591 = vmatprep.subr.mxu0 0.0
    %4592 = vmatpush1.msra.mxu0 0.0
    %4593 = vmatprep.subr.mxu0 0.0
    %4594 = vmatpush1.msra.mxu0 0.0
    %4595 = vmatprep.subr.mxu0 0.0
    %4596 = vmatpush1.msra.mxu0 0.0
    %4597 = vmatprep.mubr.f32.mxu0 0.0
    %v4598 = vand.u32 %v4065, 4294901760
    %4599 = vmatmul.mubr.f32.gmra.mrb[0].mxu0 %v4598
    %v4600 = vpop.f32.mrb[0].mxu0
    %v4601 = vadd.f32 %v4522, %v4600
    %v4602 = vpop.f32.mrb[0].mxu0
    %4603 = vdwg.mxu0
    %vm4604 = vcmask 41984
    %4605 = vst.msk [vmem:[#allocation2] sm:$0x3] %vm4604, %v4601
    // Predicated region
    $region14: #{atloc_forward.1} parent=1 // pred_check
      _
    $region15: #{atloc_forward.1} parent=1 // pred_check_branch
      %4607 = sbr.rel (0) target = $region17
    $region16: #{atloc_forward.1} parent=1 // pred_region
      %s4609 = ssub.s32 32, 32
      %4610 = vsyncadd [#allocation3], %s4609
      %s4612 = sshll.u32 [#allocation2], 4
      %s4613 = int_to_ptr.vmem [resolvable:$true] %s4612
      %4615 = dma.vmem_to_hbm [thread:$0]  %s4613, 32, %s3, [#allocation3]
    $region17: #{atloc_forward.1} parent=1 // pred_fallthru
      _
    // Predicated region
    $region18: #{atloc_forward.1} parent=1 // pred_check
      _
    $region19: #{atloc_forward.1} parent=1 // pred_check_branch
      %4617 = sbr.rel (0) target = $region21
    $region20: #{atloc_forward.1} parent=1 // pred_region
      %4618 = dma.done [#allocation3], 32
    $region21: #{atloc_forward.1} parent=1 // pred_fallthru
      _
    %4619 = vsyncpa [#allocation3], 1

</llo_original>
